<compile_context>
chip_gen: v7x
topology: tpu7x:2x2x1
jax: 0.10.0
libtpu: 0.0.40
codegen_flags: <defaults>
</compile_context>

<pallas_src>
import numpy as np
import jax
import jax.numpy as jnp
from jax.experimental import pallas as pl
from jax.experimental.pallas import tpu as pltpu

B, S, D, H, HD = 2, 8, 32, 4, 8     # batch, seq, d_model, heads, head_dim
L = 3                               # decoder layers
FF = 64                             # FFN hidden
EPS = 1e-5
NEG = -1e9                          # large finite negative additive mask bias

# ---- weight slab row offsets (lane width 3*D = 96, zero padded) ----
QKV_OFF = 0                 # 2L blocks of D rows x 96 cols (Q cols pre-scaled)
OUTW_OFF = 2 * L * D        # 2L blocks of D rows x 32 cols
FC1_OFF = 4 * L * D         # L  blocks of D rows x 64 cols
FC2_OFF = 5 * L * D         # L  blocks of FF rows x 32 cols
W_ROWS = 5 * L * D + L * FF

# ---- bias / LayerNorm slab row offsets (lane width 96, zero padded) ----
QKVB_R = 0                  # 2L rows x 96   (Q part pre-scaled)
OUTB_R = 2 * L              # 2L rows x 32
MHG_R = 4 * L               # 2L rows x 32   multihead LN gamma
MHB_R = 6 * L               # 2L rows x 32   multihead LN beta
FCB1_R = 8 * L              # L  rows x 64
FCB2_R = 9 * L              # L  rows x 32
FCG_R = 10 * L              # L  rows x 32   ffn LN gamma
FCBE_R = 11 * L             # L  rows x 32   ffn LN beta
V_ROWS = 12 * L


def decoder_kernel(x_ref, y_ref, c_ref, w_ref, v_ref, o_ref):
    N = y_ref.shape[0]                     # B*S rows (batch folded into sublanes)
    x = x_ref[...]                         # (N, D) encoder output
    y = y_ref[...]                         # (N, D) decoder stream
    head_mask = c_ref[:, 0:D]              # (H*N, D) block-diagonal head selector
    tbias = c_ref[:, D:D + N]              # (H*N, N) fused causal + cross-batch bias
    pbias = c_ref[:, D + N:D + 2 * N]      # (H*N, N) fused pad    + cross-batch bias

    def layernorm(v, gamma, beta):
        mu = jnp.mean(v, axis=-1, keepdims=True)
        var = jnp.mean((v - mu) ** 2, axis=-1, keepdims=True)
        return (v - mu) * jax.lax.rsqrt(var + EPS) * gamma + beta

    def attention(Q, K, V, bias):
        # Fused over batch and heads.  Score rows are (head, batch, query);
        # score cols are (batch', key).  Cross-batch cols are masked by `bias`.
        Qbig = jnp.concatenate([Q] * H, axis=0) * head_mask          # (H*N, D)
        s = jax.lax.dot_general(Qbig, K, (((1,), (1,)), ((), ())),
                                preferred_element_type=jnp.float32)  # (H*N, N)
        s = s + bias                       # scale already folded into Q weights
        s = s - jnp.max(s, axis=-1, keepdims=True)
        e = jnp.exp(s)
        p = e / jnp.sum(e, axis=-1, keepdims=True)   # one softmax for all heads
        ctx = jnp.dot(p, V, preferred_element_type=jnp.float32)      # (H*N, D)
        ctx = ctx * head_mask              # keep only each row-block's own head
        out = ctx[0:N]
        for h in range(1, H):              # fold head row-blocks back to (N, D)
            out = out + ctx[h * N:(h + 1) * N]
        return out                         # heads concatenated along lanes

    def multihead(mi, q_in, kv_in, bias, is_self):
        gamma = v_ref[MHG_R + mi:MHG_R + mi + 1, 0:D]
        beta = v_ref[MHB_R + mi:MHB_R + mi + 1, 0:D]
        qkv_w = w_ref[QKV_OFF + mi * D:QKV_OFF + (mi + 1) * D, :]    # (D, 3D)
        qkv_b = v_ref[QKVB_R + mi:QKVB_R + mi + 1, :]                # (1, 3D)
        out_w = w_ref[OUTW_OFF + mi * D:OUTW_OFF + (mi + 1) * D, 0:D]
        out_b = v_ref[OUTB_R + mi:OUTB_R + mi + 1, 0:D]
        if is_self:
            qn = layernorm(q_in, gamma, beta)          # shared: q == k == v
            proj = jnp.dot(qn, qkv_w, preferred_element_type=jnp.float32) + qkv_b
            Q, K, V = proj[:, 0:D], proj[:, D:2 * D], proj[:, 2 * D:3 * D]
        else:
            # Stack q and k/v streams along sublanes: one LN, one projection matmul.
            st = layernorm(jnp.concatenate([q_in, kv_in], axis=0), gamma, beta)
            proj = jnp.dot(st, qkv_w, preferred_element_type=jnp.float32) + qkv_b
            Q = proj[0:N, 0:D]
            K = proj[N:2 * N, D:2 * D]
            V = proj[N:2 * N, 2 * D:3 * D]
        ctx = attention(Q, K, V, bias)
        out = jnp.dot(ctx, out_w, preferred_element_type=jnp.float32) + out_b
        # TODO(synk): Dropout(p=0.1) skipped (inference semantics -> identity).
        return q_in + out

    def ffn(l, v):
        gamma = v_ref[FCG_R + l:FCG_R + l + 1, 0:D]
        beta = v_ref[FCBE_R + l:FCBE_R + l + 1, 0:D]
        w1 = w_ref[FC1_OFF + l * D:FC1_OFF + (l + 1) * D, 0:FF]
        b1 = v_ref[FCB1_R + l:FCB1_R + l + 1, 0:FF]
        w2 = w_ref[FC2_OFF + l * FF:FC2_OFF + (l + 1) * FF, 0:D]
        b2 = v_ref[FCB2_R + l:FCB2_R + l + 1, 0:D]
        vn = layernorm(v, gamma, beta)
        h1 = jnp.maximum(
            jnp.dot(vn, w1, preferred_element_type=jnp.float32) + b1, 0.0)
        return v + jnp.dot(h1, w2, preferred_element_type=jnp.float32) + b2

    for l in range(L):
        y = multihead(2 * l + 0, y, y, tbias, True)    # self-attn (tril mask)
        y = multihead(2 * l + 1, y, x, pbias, False)   # cross-attn vs x (pad mask)
        y = ffn(l, y)

    o_ref[...] = y


# ------------------------- wrapper -------------------------

def make_consts(mask_pad_x, mask_tril_y, Bv, Sv):
    """Precompute (outside the kernel) the constant slab:
       [ head selector mask | fused tril bias | fused pad bias ]  -> (H*B*S, D+2*B*S)."""
    N = Bv * Sv

    def fuse_bias(mask):
        add = mask.reshape(Bv, Sv, Sv).astype(jnp.float32) * NEG           # (B,S,S)
        eye = jnp.eye(Bv, dtype=jnp.float32)
        # bias[b, s, b', t] = add[b,s,t] if b'==b else NEG  (cross-batch masked)
        b4 = (add[:, :, None, :] * eye[:, None, :, None]
              + NEG * (1.0 - eye)[:, None, :, None])
        return jnp.tile(b4.reshape(N, N), (H, 1))                          # (H*N, N)

    hm = np.zeros((H * N, D), np.float32)
    for h in range(H):
        hm[h * N:(h + 1) * N, h * HD:(h + 1) * HD] = 1.0
    return jnp.concatenate(
        [jnp.asarray(hm), fuse_bias(mask_tril_y), fuse_bias(mask_pad_x)], axis=1)


def run_decoder(x, y, mask_pad_x, mask_tril_y, wslab, vslab):
    Bv, Sv, Dv = x.shape
    N = Bv * Sv
    x2 = x.reshape(N, Dv)                 # fold batch into sublanes
    y2 = y.reshape(N, Dv)
    consts = make_consts(mask_pad_x, mask_tril_y, Bv, Sv)

    vmem = pltpu.MemorySpace.VMEM
    out2 = pl.pallas_call(
        decoder_kernel,
        out_shape=jax.ShapeDtypeStruct((N, Dv), jnp.float32),
        in_specs=[pl.BlockSpec(memory_space=vmem)] * 5,   # whole arrays in VMEM, no grid
        out_specs=pl.BlockSpec(memory_space=vmem),
    )(x2, y2, consts, wslab, vslab)
    return out2.reshape(Bv, Sv, Dv)


# ------------------------- parameter setup (plain JAX glue) -------------------------

def init_params(key):
    keys = jax.random.split(key, 256)
    ki = iter(keys)

    def lin(out_f, in_f):
        w = jax.random.normal(next(ki), (out_f, in_f), jnp.float32) * 0.05
        b = jax.random.normal(next(ki), (out_f,), jnp.float32) * 0.05
        return w, b

    def norm():
        g = 1.0 + 0.1 * jax.random.normal(next(ki), (D,), jnp.float32)
        b = 0.1 * jax.random.normal(next(ki), (D,), jnp.float32)
        return g, b

    layers = []
    for _ in range(L):
        mh = []
        for _ in range(2):
            wq, bq = lin(D, D)
            wk, bk = lin(D, D)
            wv, bv = lin(D, D)
            wo, bo = lin(D, D)
            g, be = norm()
            mh.append(dict(wq=wq, bq=bq, wk=wk, bk=bk, wv=wv, bv=bv,
                           wo=wo, bo=bo, g=g, be=be))
        w1, b1 = lin(FF, D)
        w2, b2 = lin(D, FF)
        g, be = norm()
        layers.append(dict(mh=mh, w1=w1, b1=b1, w2=w2, b2=b2, g=g, be=be))
    return layers


def pack_params(layers):
    """Pack all weights into one (672,96) slab and all bias/LN vectors into one
    (36,96) slab; weights pre-transposed to (in,out) and the softmax 1/sqrt(HD)
    folded into the Q columns."""
    scale = 1.0 / np.sqrt(HD)
    wslab = np.zeros((W_ROWS, 3 * D), np.float32)
    vslab = np.zeros((V_ROWS, 3 * D), np.float32)
    for l, lp in enumerate(layers):
        for m, mp in enumerate(lp["mh"]):
            mi = 2 * l + m
            r = QKV_OFF + mi * D
            wslab[r:r + D, 0:D] = np.asarray(mp["wq"]).T * scale
            wslab[r:r + D, D:2 * D] = np.asarray(mp["wk"]).T
            wslab[r:r + D, 2 * D:3 * D] = np.asarray(mp["wv"]).T
            r = OUTW_OFF + mi * D
            wslab[r:r + D, 0:D] = np.asarray(mp["wo"]).T
            vslab[QKVB_R + mi, 0:D] = np.asarray(mp["bq"]) * scale
            vslab[QKVB_R + mi, D:2 * D] = np.asarray(mp["bk"])
            vslab[QKVB_R + mi, 2 * D:3 * D] = np.asarray(mp["bv"])
            vslab[OUTB_R + mi, 0:D] = np.asarray(mp["bo"])
            vslab[MHG_R + mi, 0:D] = np.asarray(mp["g"])
            vslab[MHB_R + mi, 0:D] = np.asarray(mp["be"])
        r = FC1_OFF + l * D
        wslab[r:r + D, 0:FF] = np.asarray(lp["w1"]).T
        r = FC2_OFF + l * FF
        wslab[r:r + FF, 0:D] = np.asarray(lp["w2"]).T
        vslab[FCB1_R + l, 0:FF] = np.asarray(lp["b1"])
        vslab[FCB2_R + l, 0:D] = np.asarray(lp["b2"])
        vslab[FCG_R + l, 0:D] = np.asarray(lp["g"])
        vslab[FCBE_R + l, 0:D] = np.asarray(lp["be"])
    return jnp.asarray(wslab), jnp.asarray(vslab)


# ------------------------- pure-JAX reference (mirrors the torch code) -------------------------

def reference(x, y, mpad, mtril, layers):
    def layernorm(v, g, b):
        mu = v.mean(-1, keepdims=True)
        var = ((v - mu) ** 2).mean(-1, keepdims=True)
        return (v - mu) / jnp.sqrt(var + EPS) * g + b

    def mh_forward(p, q, k, v, mask):
        clone_q = q
        qn = layernorm(q, p["g"], p["be"])
        kn = layernorm(k, p["g"], p["be"])
        vn = layernorm(v, p["g"], p["be"])
        Q = qn @ p["wq"].T + p["bq"]
        K = kn @ p["wk"].T + p["bk"]
        V = vn @ p["wv"].T + p["bv"]
        b = q.shape[0]
        Q = Q.reshape(b, S, H, HD).transpose(0, 2, 1, 3)
        K = K.reshape(b, S, H, HD).transpose(0, 2, 1, 3)
        V = V.reshape(b, S, H, HD).transpose(0, 2, 1, 3)
        s = jnp.einsum('bhqd,bhkd->bhqk', Q, K) / (HD ** 0.5)
        s = jnp.where(mask > 0, -jnp.inf, s)
        s = jax.nn.softmax(s, axis=-1)
        o = jnp.einsum('bhqk,bhkd->bhqd', s, V)
        o = o.transpose(0, 2, 1, 3).reshape(b, S, D)
        o = o @ p["wo"].T + p["bo"]
        return clone_q + o

    for lp in layers:
        y = mh_forward(lp["mh"][0], y, y, y, mtril)
        y = mh_forward(lp["mh"][1], y, x, x, mpad)
        cl = y
        yn = layernorm(y, lp["g"], lp["be"])
        h1 = jax.nn.relu(yn @ lp["w1"].T + lp["b1"])
        y = cl + h1 @ lp["w2"].T + lp["b2"]
    return y


if __name__ == "__main__":
    key = jax.random.PRNGKey(0)
    kx, ky, kp = jax.random.split(key, 3)
    x = jax.random.normal(kx, (B, S, D), jnp.float32)
    y = jax.random.normal(ky, (B, S, D), jnp.float32)

    # causal (upper-triangular) mask for y self-attention; pad mask hides last 2 x positions
    tril = jnp.triu(jnp.ones((S, S), jnp.float32), k=1)
    mask_tril_y = jnp.broadcast_to(tril, (B, 1, S, S)).astype(jnp.float32)
    pad = jnp.zeros((S,), jnp.float32).at[-2:].set(1.0)
    mask_pad_x = jnp.broadcast_to(pad[None, None, None, :], (B, 1, S, S)).astype(jnp.float32)

    layers = init_params(kp)
    wslab, vslab = pack_params(layers)

    out = run_decoder(x, y, mask_pad_x, mask_tril_y, wslab, vslab)
    out = jax.block_until_ready(out)

    ref = reference(x, y, mask_pad_x, mask_tril_y, layers)
    err = float(np.max(np.abs(np.asarray(out) - np.asarray(ref))))
    assert np.allclose(np.asarray(out), np.asarray(ref), atol=2e-4, rtol=2e-4), err
    print("KERNEL_OK")
</pallas_src>

<mosaic_0001>
module attributes {stable_mosaic.version = 11 : i64} {
  func.func @decoder_kernel(%arg0: memref<16x32xf32, #tpu.memory_space<vmem>>, %arg1: memref<16x32xf32, #tpu.memory_space<vmem>>, %arg2: memref<64x64xf32, #tpu.memory_space<vmem>>, %arg3: memref<672x96xf32, #tpu.memory_space<vmem>>, %arg4: memref<36x96xf32, #tpu.memory_space<vmem>>, %arg5: memref<16x32xf32, #tpu.memory_space<vmem>>) attributes {dimension_semantics = [], scalar_prefetch = 0 : i64, scratch_operands = 0 : i64, tpu.core_type = #tpu.core_type<tc>} {
    %c0 = arith.constant 0 : index
    %c0_0 = arith.constant 0 : index
    %0 = vector.load %arg0[%c0, %c0_0] : memref<16x32xf32, #tpu.memory_space<vmem>>, vector<16x32xf32>
    %c0_1 = arith.constant 0 : index
    %c0_2 = arith.constant 0 : index
    %1 = vector.load %arg1[%c0_1, %c0_2] : memref<16x32xf32, #tpu.memory_space<vmem>>, vector<16x32xf32>
    %c0_3 = arith.constant 0 : index
    %c0_4 = arith.constant 0 : index
    %2 = vector.load %arg2[%c0_3, %c0_4] : memref<64x64xf32, #tpu.memory_space<vmem>>, vector<64x32xf32>
    %c0_5 = arith.constant 0 : index
    %c32 = arith.constant 32 : index
    %3 = vector.load %arg2[%c0_5, %c32] : memref<64x64xf32, #tpu.memory_space<vmem>>, vector<64x16xf32>
    %c0_6 = arith.constant 0 : index
    %c48 = arith.constant 48 : index
    %4 = vector.load %arg2[%c0_6, %c48] : memref<64x64xf32, #tpu.memory_space<vmem>>, vector<64x16xf32>
    %c12 = arith.constant 12 : index
    %c0_7 = arith.constant 0 : index
    %5 = vector.load %arg4[%c12, %c0_7] : memref<36x96xf32, #tpu.memory_space<vmem>>, vector<1x32xf32>
    %c18 = arith.constant 18 : index
    %c0_8 = arith.constant 0 : index
    %6 = vector.load %arg4[%c18, %c0_8] : memref<36x96xf32, #tpu.memory_space<vmem>>, vector<1x32xf32>
    %c0_9 = arith.constant 0 : index
    %c0_10 = arith.constant 0 : index
    %7 = vector.load %arg3[%c0_9, %c0_10] : memref<672x96xf32, #tpu.memory_space<vmem>>, vector<32x96xf32>
    %c0_11 = arith.constant 0 : index
    %c0_12 = arith.constant 0 : index
    %8 = vector.load %arg4[%c0_11, %c0_12] : memref<36x96xf32, #tpu.memory_space<vmem>>, vector<1x96xf32>
    %c192 = arith.constant 192 : index
    %c0_13 = arith.constant 0 : index
    %9 = vector.load %arg3[%c192, %c0_13] : memref<672x96xf32, #tpu.memory_space<vmem>>, vector<32x32xf32>
    %c6 = arith.constant 6 : index
    %c0_14 = arith.constant 0 : index
    %10 = vector.load %arg4[%c6, %c0_14] : memref<36x96xf32, #tpu.memory_space<vmem>>, vector<1x32xf32>
    %cst = arith.constant dense<0.000000e+00> : vector<16xf32>
    %11 = vector.multi_reduction <add>, %1, %cst [1] : vector<16x32xf32> to vector<16xf32>
    %12 = vector.shape_cast %11 : vector<16xf32> to vector<16x1xf32>
    %cst_15 = arith.constant 3.200000e+01 : f32
    %13 = vector.broadcast %cst_15 : f32 to vector<16x1xf32>
    %14 = arith.divf %12, %13 : vector<16x1xf32>
    %15 = vector.broadcast %14 : vector<16x1xf32> to vector<16x32xf32>
    %16 = arith.subf %1, %15 : vector<16x32xf32>
    %17 = arith.mulf %16, %16 : vector<16x32xf32>
    %cst_16 = arith.constant dense<0.000000e+00> : vector<16xf32>
    %18 = vector.multi_reduction <add>, %17, %cst_16 [1] : vector<16x32xf32> to vector<16xf32>
    %19 = vector.shape_cast %18 : vector<16xf32> to vector<16x1xf32>
    %cst_17 = arith.constant 3.200000e+01 : f32
    %20 = vector.broadcast %cst_17 : f32 to vector<16x1xf32>
    %21 = arith.divf %19, %20 : vector<16x1xf32>
    %22 = vector.broadcast %14 : vector<16x1xf32> to vector<16x32xf32>
    %23 = arith.subf %1, %22 : vector<16x32xf32>
    %cst_18 = arith.constant 9.99999974E-6 : f32
    %24 = vector.broadcast %cst_18 : f32 to vector<16x1xf32>
    %25 = arith.addf %21, %24 : vector<16x1xf32>
    %26 = math.rsqrt %25 : vector<16x1xf32>
    %27 = vector.broadcast %26 : vector<16x1xf32> to vector<16x32xf32>
    %28 = arith.mulf %23, %27 : vector<16x32xf32>
    %29 = vector.broadcast %5 : vector<1x32xf32> to vector<16x32xf32>
    %30 = arith.mulf %28, %29 : vector<16x32xf32>
    %31 = vector.broadcast %6 : vector<1x32xf32> to vector<16x32xf32>
    %32 = arith.addf %30, %31 : vector<16x32xf32>
    %cst_19 = arith.constant dense<0.000000e+00> : vector<16x96xf32>
    %33 = tpu.matmul %32, %7, %cst_19 {dimension_numbers = #tpu.dot_dimension_numbers<[1], [0], [0], [1], [0, 0, 1, 1], [], []>} : vector<16x32xf32>, vector<32x96xf32>, vector<16x96xf32> -> vector<16x96xf32>
    %34 = vector.broadcast %8 : vector<1x96xf32> to vector<16x96xf32>
    %35 = arith.addf %33, %34 : vector<16x96xf32>
    %36 = vector.extract_strided_slice %35 {offsets = [0, 0], sizes = [16, 32], strides = [1, 1]} : vector<16x96xf32> to vector<16x32xf32>
    %37 = vector.extract_strided_slice %35 {offsets = [0, 32], sizes = [16, 32], strides = [1, 1]} : vector<16x96xf32> to vector<16x32xf32>
    %38 = vector.extract_strided_slice %35 {offsets = [0, 64], sizes = [16, 32], strides = [1, 1]} : vector<16x96xf32> to vector<16x32xf32>
    %39 = tpu.concatenate %36, %36, %36, %36 in 0 : vector<16x32xf32>, vector<16x32xf32>, vector<16x32xf32>, vector<16x32xf32> -> vector<64x32xf32>
    %40 = arith.mulf %39, %2 : vector<64x32xf32>
    %cst_20 = arith.constant dense<0.000000e+00> : vector<64x16xf32>
    %41 = tpu.matmul %40, %37, %cst_20 {dimension_numbers = #tpu.dot_dimension_numbers<[1], [1], [0], [0], [0, 0, 1, 0], [], []>} : vector<64x32xf32>, vector<16x32xf32>, vector<64x16xf32> -> vector<64x16xf32>
    %42 = arith.addf %41, %3 : vector<64x16xf32>
    %cst_21 = arith.constant dense<0xFF800000> : vector<64xf32>
    %43 = vector.multi_reduction <maximumf>, %42, %cst_21 [1] : vector<64x16xf32> to vector<64xf32>
    %44 = vector.shape_cast %43 : vector<64xf32> to vector<64x1xf32>
    %45 = vector.broadcast %44 : vector<64x1xf32> to vector<64x16xf32>
    %46 = arith.subf %42, %45 : vector<64x16xf32>
    %47 = math.exp %46 : vector<64x16xf32>
    %cst_22 = arith.constant dense<0.000000e+00> : vector<64xf32>
    %48 = vector.multi_reduction <add>, %47, %cst_22 [1] : vector<64x16xf32> to vector<64xf32>
    %49 = vector.shape_cast %48 : vector<64xf32> to vector<64x1xf32>
    %50 = vector.broadcast %49 : vector<64x1xf32> to vector<64x16xf32>
    %51 = arith.divf %47, %50 : vector<64x16xf32>
    %cst_23 = arith.constant dense<0.000000e+00> : vector<64x32xf32>
    %52 = tpu.matmul %51, %38, %cst_23 {dimension_numbers = #tpu.dot_dimension_numbers<[1], [0], [0], [1], [0, 0, 1, 1], [], []>} : vector<64x16xf32>, vector<16x32xf32>, vector<64x32xf32> -> vector<64x32xf32>
    %53 = arith.mulf %52, %2 : vector<64x32xf32>
    %54 = vector.extract_strided_slice %53 {offsets = [0, 0], sizes = [16, 32], strides = [1, 1]} : vector<64x32xf32> to vector<16x32xf32>
    %55 = vector.extract_strided_slice %53 {offsets = [16, 0], sizes = [16, 32], strides = [1, 1]} : vector<64x32xf32> to vector<16x32xf32>
    %56 = arith.addf %54, %55 : vector<16x32xf32>
    %57 = vector.extract_strided_slice %53 {offsets = [32, 0], sizes = [16, 32], strides = [1, 1]} : vector<64x32xf32> to vector<16x32xf32>
    %58 = arith.addf %56, %57 : vector<16x32xf32>
    %59 = vector.extract_strided_slice %53 {offsets = [48, 0], sizes = [16, 32], strides = [1, 1]} : vector<64x32xf32> to vector<16x32xf32>
    %60 = arith.addf %58, %59 : vector<16x32xf32>
    %cst_24 = arith.constant dense<0.000000e+00> : vector<16x32xf32>
    %61 = tpu.matmul %60, %9, %cst_24 {dimension_numbers = #tpu.dot_dimension_numbers<[1], [0], [0], [1], [0, 0, 1, 1], [], []>} : vector<16x32xf32>, vector<32x32xf32>, vector<16x32xf32> -> vector<16x32xf32>
    %62 = vector.broadcast %10 : vector<1x32xf32> to vector<16x32xf32>
    %63 = arith.addf %61, %62 : vector<16x32xf32>
    %64 = arith.addf %1, %63 : vector<16x32xf32>
    %c13 = arith.constant 13 : index
    %c0_25 = arith.constant 0 : index
    %65 = vector.load %arg4[%c13, %c0_25] : memref<36x96xf32, #tpu.memory_space<vmem>>, vector<1x32xf32>
    %c19 = arith.constant 19 : index
    %c0_26 = arith.constant 0 : index
    %66 = vector.load %arg4[%c19, %c0_26] : memref<36x96xf32, #tpu.memory_space<vmem>>, vector<1x32xf32>
    %c32_27 = arith.constant 32 : index
    %c0_28 = arith.constant 0 : index
    %67 = vector.load %arg3[%c32_27, %c0_28] : memref<672x96xf32, #tpu.memory_space<vmem>>, vector<32x96xf32>
    %c1 = arith.constant 1 : index
    %c0_29 = arith.constant 0 : index
    %68 = vector.load %arg4[%c1, %c0_29] : memref<36x96xf32, #tpu.memory_space<vmem>>, vector<1x96xf32>
    %c224 = arith.constant 224 : index
    %c0_30 = arith.constant 0 : index
    %69 = vector.load %arg3[%c224, %c0_30] : memref<672x96xf32, #tpu.memory_space<vmem>>, vector<32x32xf32>
    %c7 = arith.constant 7 : index
    %c0_31 = arith.constant 0 : index
    %70 = vector.load %arg4[%c7, %c0_31] : memref<36x96xf32, #tpu.memory_space<vmem>>, vector<1x32xf32>
    %71 = tpu.concatenate %64, %0 in 0 : vector<16x32xf32>, vector<16x32xf32> -> vector<32x32xf32>
    %cst_32 = arith.constant dense<0.000000e+00> : vector<32xf32>
    %72 = vector.multi_reduction <add>, %71, %cst_32 [1] : vector<32x32xf32> to vector<32xf32>
    %73 = vector.shape_cast %72 : vector<32xf32> to vector<32x1xf32>
    %cst_33 = arith.constant 3.200000e+01 : f32
    %74 = vector.broadcast %cst_33 : f32 to vector<32x1xf32>
    %75 = arith.divf %73, %74 : vector<32x1xf32>
    %76 = vector.broadcast %75 : vector<32x1xf32> to vector<32x32xf32>
    %77 = arith.subf %71, %76 : vector<32x32xf32>
    %78 = arith.mulf %77, %77 : vector<32x32xf32>
    %cst_34 = arith.constant dense<0.000000e+00> : vector<32xf32>
    %79 = vector.multi_reduction <add>, %78, %cst_34 [1] : vector<32x32xf32> to vector<32xf32>
    %80 = vector.shape_cast %79 : vector<32xf32> to vector<32x1xf32>
    %cst_35 = arith.constant 3.200000e+01 : f32
    %81 = vector.broadcast %cst_35 : f32 to vector<32x1xf32>
    %82 = arith.divf %80, %81 : vector<32x1xf32>
    %83 = vector.broadcast %75 : vector<32x1xf32> to vector<32x32xf32>
    %84 = arith.subf %71, %83 : vector<32x32xf32>
    %cst_36 = arith.constant 9.99999974E-6 : f32
    %85 = vector.broadcast %cst_36 : f32 to vector<32x1xf32>
    %86 = arith.addf %82, %85 : vector<32x1xf32>
    %87 = math.rsqrt %86 : vector<32x1xf32>
    %88 = vector.broadcast %87 : vector<32x1xf32> to vector<32x32xf32>
    %89 = arith.mulf %84, %88 : vector<32x32xf32>
    %90 = vector.broadcast %65 : vector<1x32xf32> to vector<32x32xf32>
    %91 = arith.mulf %89, %90 : vector<32x32xf32>
    %92 = vector.broadcast %66 : vector<1x32xf32> to vector<32x32xf32>
    %93 = arith.addf %91, %92 : vector<32x32xf32>
    %cst_37 = arith.constant dense<0.000000e+00> : vector<32x96xf32>
    %94 = tpu.matmul %93, %67, %cst_37 {dimension_numbers = #tpu.dot_dimension_numbers<[1], [0], [0], [1], [0, 0, 1, 1], [], []>} : vector<32x32xf32>, vector<32x96xf32>, vector<32x96xf32> -> vector<32x96xf32>
    %95 = vector.broadcast %68 : vector<1x96xf32> to vector<32x96xf32>
    %96 = arith.addf %94, %95 : vector<32x96xf32>
    %97 = vector.extract_strided_slice %96 {offsets = [0, 0], sizes = [16, 32], strides = [1, 1]} : vector<32x96xf32> to vector<16x32xf32>
    %98 = vector.extract_strided_slice %96 {offsets = [16, 32], sizes = [16, 32], strides = [1, 1]} : vector<32x96xf32> to vector<16x32xf32>
    %99 = vector.extract_strided_slice %96 {offsets = [16, 64], sizes = [16, 32], strides = [1, 1]} : vector<32x96xf32> to vector<16x32xf32>
    %100 = tpu.concatenate %97, %97, %97, %97 in 0 : vector<16x32xf32>, vector<16x32xf32>, vector<16x32xf32>, vector<16x32xf32> -> vector<64x32xf32>
    %101 = arith.mulf %100, %2 : vector<64x32xf32>
    %cst_38 = arith.constant dense<0.000000e+00> : vector<64x16xf32>
    %102 = tpu.matmul %101, %98, %cst_38 {dimension_numbers = #tpu.dot_dimension_numbers<[1], [1], [0], [0], [0, 0, 1, 0], [], []>} : vector<64x32xf32>, vector<16x32xf32>, vector<64x16xf32> -> vector<64x16xf32>
    %103 = arith.addf %102, %4 : vector<64x16xf32>
    %cst_39 = arith.constant dense<0xFF800000> : vector<64xf32>
    %104 = vector.multi_reduction <maximumf>, %103, %cst_39 [1] : vector<64x16xf32> to vector<64xf32>
    %105 = vector.shape_cast %104 : vector<64xf32> to vector<64x1xf32>
    %106 = vector.broadcast %105 : vector<64x1xf32> to vector<64x16xf32>
    %107 = arith.subf %103, %106 : vector<64x16xf32>
    %108 = math.exp %107 : vector<64x16xf32>
    %cst_40 = arith.constant dense<0.000000e+00> : vector<64xf32>
    %109 = vector.multi_reduction <add>, %108, %cst_40 [1] : vector<64x16xf32> to vector<64xf32>
    %110 = vector.shape_cast %109 : vector<64xf32> to vector<64x1xf32>
    %111 = vector.broadcast %110 : vector<64x1xf32> to vector<64x16xf32>
    %112 = arith.divf %108, %111 : vector<64x16xf32>
    %cst_41 = arith.constant dense<0.000000e+00> : vector<64x32xf32>
    %113 = tpu.matmul %112, %99, %cst_41 {dimension_numbers = #tpu.dot_dimension_numbers<[1], [0], [0], [1], [0, 0, 1, 1], [], []>} : vector<64x16xf32>, vector<16x32xf32>, vector<64x32xf32> -> vector<64x32xf32>
    %114 = arith.mulf %113, %2 : vector<64x32xf32>
    %115 = vector.extract_strided_slice %114 {offsets = [0, 0], sizes = [16, 32], strides = [1, 1]} : vector<64x32xf32> to vector<16x32xf32>
    %116 = vector.extract_strided_slice %114 {offsets = [16, 0], sizes = [16, 32], strides = [1, 1]} : vector<64x32xf32> to vector<16x32xf32>
    %117 = arith.addf %115, %116 : vector<16x32xf32>
    %118 = vector.extract_strided_slice %114 {offsets = [32, 0], sizes = [16, 32], strides = [1, 1]} : vector<64x32xf32> to vector<16x32xf32>
    %119 = arith.addf %117, %118 : vector<16x32xf32>
    %120 = vector.extract_strided_slice %114 {offsets = [48, 0], sizes = [16, 32], strides = [1, 1]} : vector<64x32xf32> to vector<16x32xf32>
    %121 = arith.addf %119, %120 : vector<16x32xf32>
    %cst_42 = arith.constant dense<0.000000e+00> : vector<16x32xf32>
    %122 = tpu.matmul %121, %69, %cst_42 {dimension_numbers = #tpu.dot_dimension_numbers<[1], [0], [0], [1], [0, 0, 1, 1], [], []>} : vector<16x32xf32>, vector<32x32xf32>, vector<16x32xf32> -> vector<16x32xf32>
    %123 = vector.broadcast %70 : vector<1x32xf32> to vector<16x32xf32>
    %124 = arith.addf %122, %123 : vector<16x32xf32>
    %125 = arith.addf %64, %124 : vector<16x32xf32>
    %c30 = arith.constant 30 : index
    %c0_43 = arith.constant 0 : index
    %126 = vector.load %arg4[%c30, %c0_43] : memref<36x96xf32, #tpu.memory_space<vmem>>, vector<1x32xf32>
    %c33 = arith.constant 33 : index
    %c0_44 = arith.constant 0 : index
    %127 = vector.load %arg4[%c33, %c0_44] : memref<36x96xf32, #tpu.memory_space<vmem>>, vector<1x32xf32>
    %c384 = arith.constant 384 : index
    %c0_45 = arith.constant 0 : index
    %128 = vector.load %arg3[%c384, %c0_45] : memref<672x96xf32, #tpu.memory_space<vmem>>, vector<32x64xf32>
    %c24 = arith.constant 24 : index
    %c0_46 = arith.constant 0 : index
    %129 = vector.load %arg4[%c24, %c0_46] : memref<36x96xf32, #tpu.memory_space<vmem>>, vector<1x64xf32>
    %c480 = arith.constant 480 : index
    %c0_47 = arith.constant 0 : index
    %130 = vector.load %arg3[%c480, %c0_47] : memref<672x96xf32, #tpu.memory_space<vmem>>, vector<64x32xf32>
    %c27 = arith.constant 27 : index
    %c0_48 = arith.constant 0 : index
    %131 = vector.load %arg4[%c27, %c0_48] : memref<36x96xf32, #tpu.memory_space<vmem>>, vector<1x32xf32>
    %cst_49 = arith.constant dense<0.000000e+00> : vector<16xf32>
    %132 = vector.multi_reduction <add>, %125, %cst_49 [1] : vector<16x32xf32> to vector<16xf32>
    %133 = vector.shape_cast %132 : vector<16xf32> to vector<16x1xf32>
    %cst_50 = arith.constant 3.200000e+01 : f32
    %134 = vector.broadcast %cst_50 : f32 to vector<16x1xf32>
    %135 = arith.divf %133, %134 : vector<16x1xf32>
    %136 = vector.broadcast %135 : vector<16x1xf32> to vector<16x32xf32>
    %137 = arith.subf %125, %136 : vector<16x32xf32>
    %138 = arith.mulf %137, %137 : vector<16x32xf32>
    %cst_51 = arith.constant dense<0.000000e+00> : vector<16xf32>
    %139 = vector.multi_reduction <add>, %138, %cst_51 [1] : vector<16x32xf32> to vector<16xf32>
    %140 = vector.shape_cast %139 : vector<16xf32> to vector<16x1xf32>
    %cst_52 = arith.constant 3.200000e+01 : f32
    %141 = vector.broadcast %cst_52 : f32 to vector<16x1xf32>
    %142 = arith.divf %140, %141 : vector<16x1xf32>
    %143 = vector.broadcast %135 : vector<16x1xf32> to vector<16x32xf32>
    %144 = arith.subf %125, %143 : vector<16x32xf32>
    %cst_53 = arith.constant 9.99999974E-6 : f32
    %145 = vector.broadcast %cst_53 : f32 to vector<16x1xf32>
    %146 = arith.addf %142, %145 : vector<16x1xf32>
    %147 = math.rsqrt %146 : vector<16x1xf32>
    %148 = vector.broadcast %147 : vector<16x1xf32> to vector<16x32xf32>
    %149 = arith.mulf %144, %148 : vector<16x32xf32>
    %150 = vector.broadcast %126 : vector<1x32xf32> to vector<16x32xf32>
    %151 = arith.mulf %149, %150 : vector<16x32xf32>
    %152 = vector.broadcast %127 : vector<1x32xf32> to vector<16x32xf32>
    %153 = arith.addf %151, %152 : vector<16x32xf32>
    %cst_54 = arith.constant dense<0.000000e+00> : vector<16x64xf32>
    %154 = tpu.matmul %153, %128, %cst_54 {dimension_numbers = #tpu.dot_dimension_numbers<[1], [0], [0], [1], [0, 0, 1, 1], [], []>} : vector<16x32xf32>, vector<32x64xf32>, vector<16x64xf32> -> vector<16x64xf32>
    %155 = vector.broadcast %129 : vector<1x64xf32> to vector<16x64xf32>
    %156 = arith.addf %154, %155 : vector<16x64xf32>
    %cst_55 = arith.constant 0.000000e+00 : f32
    %157 = vector.broadcast %cst_55 : f32 to vector<16x64xf32>
    %158 = arith.maximumf %156, %157 : vector<16x64xf32>
    %cst_56 = arith.constant dense<0.000000e+00> : vector<16x32xf32>
    %159 = tpu.matmul %158, %130, %cst_56 {dimension_numbers = #tpu.dot_dimension_numbers<[1], [0], [0], [1], [0, 0, 1, 1], [], []>} : vector<16x64xf32>, vector<64x32xf32>, vector<16x32xf32> -> vector<16x32xf32>
    %160 = arith.addf %125, %159 : vector<16x32xf32>
    %161 = vector.broadcast %131 : vector<1x32xf32> to vector<16x32xf32>
    %162 = arith.addf %160, %161 : vector<16x32xf32>
    %c14 = arith.constant 14 : index
    %c0_57 = arith.constant 0 : index
    %163 = vector.load %arg4[%c14, %c0_57] : memref<36x96xf32, #tpu.memory_space<vmem>>, vector<1x32xf32>
    %c20 = arith.constant 20 : index
    %c0_58 = arith.constant 0 : index
    %164 = vector.load %arg4[%c20, %c0_58] : memref<36x96xf32, #tpu.memory_space<vmem>>, vector<1x32xf32>
    %c64 = arith.constant 64 : index
    %c0_59 = arith.constant 0 : index
    %165 = vector.load %arg3[%c64, %c0_59] : memref<672x96xf32, #tpu.memory_space<vmem>>, vector<32x96xf32>
    %c2 = arith.constant 2 : index
    %c0_60 = arith.constant 0 : index
    %166 = vector.load %arg4[%c2, %c0_60] : memref<36x96xf32, #tpu.memory_space<vmem>>, vector<1x96xf32>
    %c256 = arith.constant 256 : index
    %c0_61 = arith.constant 0 : index
    %167 = vector.load %arg3[%c256, %c0_61] : memref<672x96xf32, #tpu.memory_space<vmem>>, vector<32x32xf32>
    %c8 = arith.constant 8 : index
    %c0_62 = arith.constant 0 : index
    %168 = vector.load %arg4[%c8, %c0_62] : memref<36x96xf32, #tpu.memory_space<vmem>>, vector<1x32xf32>
    %cst_63 = arith.constant dense<0.000000e+00> : vector<16xf32>
    %169 = vector.multi_reduction <add>, %162, %cst_63 [1] : vector<16x32xf32> to vector<16xf32>
    %170 = vector.shape_cast %169 : vector<16xf32> to vector<16x1xf32>
    %cst_64 = arith.constant 3.200000e+01 : f32
    %171 = vector.broadcast %cst_64 : f32 to vector<16x1xf32>
    %172 = arith.divf %170, %171 : vector<16x1xf32>
    %173 = vector.broadcast %172 : vector<16x1xf32> to vector<16x32xf32>
    %174 = arith.subf %162, %173 : vector<16x32xf32>
    %175 = arith.mulf %174, %174 : vector<16x32xf32>
    %cst_65 = arith.constant dense<0.000000e+00> : vector<16xf32>
    %176 = vector.multi_reduction <add>, %175, %cst_65 [1] : vector<16x32xf32> to vector<16xf32>
    %177 = vector.shape_cast %176 : vector<16xf32> to vector<16x1xf32>
    %cst_66 = arith.constant 3.200000e+01 : f32
    %178 = vector.broadcast %cst_66 : f32 to vector<16x1xf32>
    %179 = arith.divf %177, %178 : vector<16x1xf32>
    %180 = vector.broadcast %172 : vector<16x1xf32> to vector<16x32xf32>
    %181 = arith.subf %162, %180 : vector<16x32xf32>
    %cst_67 = arith.constant 9.99999974E-6 : f32
    %182 = vector.broadcast %cst_67 : f32 to vector<16x1xf32>
    %183 = arith.addf %179, %182 : vector<16x1xf32>
    %184 = math.rsqrt %183 : vector<16x1xf32>
    %185 = vector.broadcast %184 : vector<16x1xf32> to vector<16x32xf32>
    %186 = arith.mulf %181, %185 : vector<16x32xf32>
    %187 = vector.broadcast %163 : vector<1x32xf32> to vector<16x32xf32>
    %188 = arith.mulf %186, %187 : vector<16x32xf32>
    %189 = vector.broadcast %164 : vector<1x32xf32> to vector<16x32xf32>
    %190 = arith.addf %188, %189 : vector<16x32xf32>
    %cst_68 = arith.constant dense<0.000000e+00> : vector<16x96xf32>
    %191 = tpu.matmul %190, %165, %cst_68 {dimension_numbers = #tpu.dot_dimension_numbers<[1], [0], [0], [1], [0, 0, 1, 1], [], []>} : vector<16x32xf32>, vector<32x96xf32>, vector<16x96xf32> -> vector<16x96xf32>
    %192 = vector.broadcast %166 : vector<1x96xf32> to vector<16x96xf32>
    %193 = arith.addf %191, %192 : vector<16x96xf32>
    %194 = vector.extract_strided_slice %193 {offsets = [0, 0], sizes = [16, 32], strides = [1, 1]} : vector<16x96xf32> to vector<16x32xf32>
    %195 = vector.extract_strided_slice %193 {offsets = [0, 32], sizes = [16, 32], strides = [1, 1]} : vector<16x96xf32> to vector<16x32xf32>
    %196 = vector.extract_strided_slice %193 {offsets = [0, 64], sizes = [16, 32], strides = [1, 1]} : vector<16x96xf32> to vector<16x32xf32>
    %197 = tpu.concatenate %194, %194, %194, %194 in 0 : vector<16x32xf32>, vector<16x32xf32>, vector<16x32xf32>, vector<16x32xf32> -> vector<64x32xf32>
    %198 = arith.mulf %197, %2 : vector<64x32xf32>
    %cst_69 = arith.constant dense<0.000000e+00> : vector<64x16xf32>
    %199 = tpu.matmul %198, %195, %cst_69 {dimension_numbers = #tpu.dot_dimension_numbers<[1], [1], [0], [0], [0, 0, 1, 0], [], []>} : vector<64x32xf32>, vector<16x32xf32>, vector<64x16xf32> -> vector<64x16xf32>
    %200 = arith.addf %199, %3 : vector<64x16xf32>
    %cst_70 = arith.constant dense<0xFF800000> : vector<64xf32>
    %201 = vector.multi_reduction <maximumf>, %200, %cst_70 [1] : vector<64x16xf32> to vector<64xf32>
    %202 = vector.shape_cast %201 : vector<64xf32> to vector<64x1xf32>
    %203 = vector.broadcast %202 : vector<64x1xf32> to vector<64x16xf32>
    %204 = arith.subf %200, %203 : vector<64x16xf32>
    %205 = math.exp %204 : vector<64x16xf32>
    %cst_71 = arith.constant dense<0.000000e+00> : vector<64xf32>
    %206 = vector.multi_reduction <add>, %205, %cst_71 [1] : vector<64x16xf32> to vector<64xf32>
    %207 = vector.shape_cast %206 : vector<64xf32> to vector<64x1xf32>
    %208 = vector.broadcast %207 : vector<64x1xf32> to vector<64x16xf32>
    %209 = arith.divf %205, %208 : vector<64x16xf32>
    %cst_72 = arith.constant dense<0.000000e+00> : vector<64x32xf32>
    %210 = tpu.matmul %209, %196, %cst_72 {dimension_numbers = #tpu.dot_dimension_numbers<[1], [0], [0], [1], [0, 0, 1, 1], [], []>} : vector<64x16xf32>, vector<16x32xf32>, vector<64x32xf32> -> vector<64x32xf32>
    %211 = arith.mulf %210, %2 : vector<64x32xf32>
    %212 = vector.extract_strided_slice %211 {offsets = [0, 0], sizes = [16, 32], strides = [1, 1]} : vector<64x32xf32> to vector<16x32xf32>
    %213 = vector.extract_strided_slice %211 {offsets = [16, 0], sizes = [16, 32], strides = [1, 1]} : vector<64x32xf32> to vector<16x32xf32>
    %214 = arith.addf %212, %213 : vector<16x32xf32>
    %215 = vector.extract_strided_slice %211 {offsets = [32, 0], sizes = [16, 32], strides = [1, 1]} : vector<64x32xf32> to vector<16x32xf32>
    %216 = arith.addf %214, %215 : vector<16x32xf32>
    %217 = vector.extract_strided_slice %211 {offsets = [48, 0], sizes = [16, 32], strides = [1, 1]} : vector<64x32xf32> to vector<16x32xf32>
    %218 = arith.addf %216, %217 : vector<16x32xf32>
    %cst_73 = arith.constant dense<0.000000e+00> : vector<16x32xf32>
    %219 = tpu.matmul %218, %167, %cst_73 {dimension_numbers = #tpu.dot_dimension_numbers<[1], [0], [0], [1], [0, 0, 1, 1], [], []>} : vector<16x32xf32>, vector<32x32xf32>, vector<16x32xf32> -> vector<16x32xf32>
    %220 = vector.broadcast %168 : vector<1x32xf32> to vector<16x32xf32>
    %221 = arith.addf %219, %220 : vector<16x32xf32>
    %222 = arith.addf %162, %221 : vector<16x32xf32>
    %c15 = arith.constant 15 : index
    %c0_74 = arith.constant 0 : index
    %223 = vector.load %arg4[%c15, %c0_74] : memref<36x96xf32, #tpu.memory_space<vmem>>, vector<1x32xf32>
    %c21 = arith.constant 21 : index
    %c0_75 = arith.constant 0 : index
    %224 = vector.load %arg4[%c21, %c0_75] : memref<36x96xf32, #tpu.memory_space<vmem>>, vector<1x32xf32>
    %c96 = arith.constant 96 : index
    %c0_76 = arith.constant 0 : index
    %225 = vector.load %arg3[%c96, %c0_76] : memref<672x96xf32, #tpu.memory_space<vmem>>, vector<32x96xf32>
    %c3 = arith.constant 3 : index
    %c0_77 = arith.constant 0 : index
    %226 = vector.load %arg4[%c3, %c0_77] : memref<36x96xf32, #tpu.memory_space<vmem>>, vector<1x96xf32>
    %c288 = arith.constant 288 : index
    %c0_78 = arith.constant 0 : index
    %227 = vector.load %arg3[%c288, %c0_78] : memref<672x96xf32, #tpu.memory_space<vmem>>, vector<32x32xf32>
    %c9 = arith.constant 9 : index
    %c0_79 = arith.constant 0 : index
    %228 = vector.load %arg4[%c9, %c0_79] : memref<36x96xf32, #tpu.memory_space<vmem>>, vector<1x32xf32>
    %229 = tpu.concatenate %222, %0 in 0 : vector<16x32xf32>, vector<16x32xf32> -> vector<32x32xf32>
    %cst_80 = arith.constant dense<0.000000e+00> : vector<32xf32>
    %230 = vector.multi_reduction <add>, %229, %cst_80 [1] : vector<32x32xf32> to vector<32xf32>
    %231 = vector.shape_cast %230 : vector<32xf32> to vector<32x1xf32>
    %cst_81 = arith.constant 3.200000e+01 : f32
    %232 = vector.broadcast %cst_81 : f32 to vector<32x1xf32>
    %233 = arith.divf %231, %232 : vector<32x1xf32>
    %234 = vector.broadcast %233 : vector<32x1xf32> to vector<32x32xf32>
    %235 = arith.subf %229, %234 : vector<32x32xf32>
    %236 = arith.mulf %235, %235 : vector<32x32xf32>
    %cst_82 = arith.constant dense<0.000000e+00> : vector<32xf32>
    %237 = vector.multi_reduction <add>, %236, %cst_82 [1] : vector<32x32xf32> to vector<32xf32>
    %238 = vector.shape_cast %237 : vector<32xf32> to vector<32x1xf32>
    %cst_83 = arith.constant 3.200000e+01 : f32
    %239 = vector.broadcast %cst_83 : f32 to vector<32x1xf32>
    %240 = arith.divf %238, %239 : vector<32x1xf32>
    %241 = vector.broadcast %233 : vector<32x1xf32> to vector<32x32xf32>
    %242 = arith.subf %229, %241 : vector<32x32xf32>
    %cst_84 = arith.constant 9.99999974E-6 : f32
    %243 = vector.broadcast %cst_84 : f32 to vector<32x1xf32>
    %244 = arith.addf %240, %243 : vector<32x1xf32>
    %245 = math.rsqrt %244 : vector<32x1xf32>
    %246 = vector.broadcast %245 : vector<32x1xf32> to vector<32x32xf32>
    %247 = arith.mulf %242, %246 : vector<32x32xf32>
    %248 = vector.broadcast %223 : vector<1x32xf32> to vector<32x32xf32>
    %249 = arith.mulf %247, %248 : vector<32x32xf32>
    %250 = vector.broadcast %224 : vector<1x32xf32> to vector<32x32xf32>
    %251 = arith.addf %249, %250 : vector<32x32xf32>
    %cst_85 = arith.constant dense<0.000000e+00> : vector<32x96xf32>
    %252 = tpu.matmul %251, %225, %cst_85 {dimension_numbers = #tpu.dot_dimension_numbers<[1], [0], [0], [1], [0, 0, 1, 1], [], []>} : vector<32x32xf32>, vector<32x96xf32>, vector<32x96xf32> -> vector<32x96xf32>
    %253 = vector.broadcast %226 : vector<1x96xf32> to vector<32x96xf32>
    %254 = arith.addf %252, %253 : vector<32x96xf32>
    %255 = vector.extract_strided_slice %254 {offsets = [0, 0], sizes = [16, 32], strides = [1, 1]} : vector<32x96xf32> to vector<16x32xf32>
    %256 = vector.extract_strided_slice %254 {offsets = [16, 32], sizes = [16, 32], strides = [1, 1]} : vector<32x96xf32> to vector<16x32xf32>
    %257 = vector.extract_strided_slice %254 {offsets = [16, 64], sizes = [16, 32], strides = [1, 1]} : vector<32x96xf32> to vector<16x32xf32>
    %258 = tpu.concatenate %255, %255, %255, %255 in 0 : vector<16x32xf32>, vector<16x32xf32>, vector<16x32xf32>, vector<16x32xf32> -> vector<64x32xf32>
    %259 = arith.mulf %258, %2 : vector<64x32xf32>
    %cst_86 = arith.constant dense<0.000000e+00> : vector<64x16xf32>
    %260 = tpu.matmul %259, %256, %cst_86 {dimension_numbers = #tpu.dot_dimension_numbers<[1], [1], [0], [0], [0, 0, 1, 0], [], []>} : vector<64x32xf32>, vector<16x32xf32>, vector<64x16xf32> -> vector<64x16xf32>
    %261 = arith.addf %260, %4 : vector<64x16xf32>
    %cst_87 = arith.constant dense<0xFF800000> : vector<64xf32>
    %262 = vector.multi_reduction <maximumf>, %261, %cst_87 [1] : vector<64x16xf32> to vector<64xf32>
    %263 = vector.shape_cast %262 : vector<64xf32> to vector<64x1xf32>
    %264 = vector.broadcast %263 : vector<64x1xf32> to vector<64x16xf32>
    %265 = arith.subf %261, %264 : vector<64x16xf32>
    %266 = math.exp %265 : vector<64x16xf32>
    %cst_88 = arith.constant dense<0.000000e+00> : vector<64xf32>
    %267 = vector.multi_reduction <add>, %266, %cst_88 [1] : vector<64x16xf32> to vector<64xf32>
    %268 = vector.shape_cast %267 : vector<64xf32> to vector<64x1xf32>
    %269 = vector.broadcast %268 : vector<64x1xf32> to vector<64x16xf32>
    %270 = arith.divf %266, %269 : vector<64x16xf32>
    %cst_89 = arith.constant dense<0.000000e+00> : vector<64x32xf32>
    %271 = tpu.matmul %270, %257, %cst_89 {dimension_numbers = #tpu.dot_dimension_numbers<[1], [0], [0], [1], [0, 0, 1, 1], [], []>} : vector<64x16xf32>, vector<16x32xf32>, vector<64x32xf32> -> vector<64x32xf32>
    %272 = arith.mulf %271, %2 : vector<64x32xf32>
    %273 = vector.extract_strided_slice %272 {offsets = [0, 0], sizes = [16, 32], strides = [1, 1]} : vector<64x32xf32> to vector<16x32xf32>
    %274 = vector.extract_strided_slice %272 {offsets = [16, 0], sizes = [16, 32], strides = [1, 1]} : vector<64x32xf32> to vector<16x32xf32>
    %275 = arith.addf %273, %274 : vector<16x32xf32>
    %276 = vector.extract_strided_slice %272 {offsets = [32, 0], sizes = [16, 32], strides = [1, 1]} : vector<64x32xf32> to vector<16x32xf32>
    %277 = arith.addf %275, %276 : vector<16x32xf32>
    %278 = vector.extract_strided_slice %272 {offsets = [48, 0], sizes = [16, 32], strides = [1, 1]} : vector<64x32xf32> to vector<16x32xf32>
    %279 = arith.addf %277, %278 : vector<16x32xf32>
    %cst_90 = arith.constant dense<0.000000e+00> : vector<16x32xf32>
    %280 = tpu.matmul %279, %227, %cst_90 {dimension_numbers = #tpu.dot_dimension_numbers<[1], [0], [0], [1], [0, 0, 1, 1], [], []>} : vector<16x32xf32>, vector<32x32xf32>, vector<16x32xf32> -> vector<16x32xf32>
    %281 = vector.broadcast %228 : vector<1x32xf32> to vector<16x32xf32>
    %282 = arith.addf %280, %281 : vector<16x32xf32>
    %283 = arith.addf %222, %282 : vector<16x32xf32>
    %c31 = arith.constant 31 : index
    %c0_91 = arith.constant 0 : index
    %284 = vector.load %arg4[%c31, %c0_91] : memref<36x96xf32, #tpu.memory_space<vmem>>, vector<1x32xf32>
    %c34 = arith.constant 34 : index
    %c0_92 = arith.constant 0 : index
    %285 = vector.load %arg4[%c34, %c0_92] : memref<36x96xf32, #tpu.memory_space<vmem>>, vector<1x32xf32>
    %c416 = arith.constant 416 : index
    %c0_93 = arith.constant 0 : index
    %286 = vector.load %arg3[%c416, %c0_93] : memref<672x96xf32, #tpu.memory_space<vmem>>, vector<32x64xf32>
    %c25 = arith.constant 25 : index
    %c0_94 = arith.constant 0 : index
    %287 = vector.load %arg4[%c25, %c0_94] : memref<36x96xf32, #tpu.memory_space<vmem>>, vector<1x64xf32>
    %c544 = arith.constant 544 : index
    %c0_95 = arith.constant 0 : index
    %288 = vector.load %arg3[%c544, %c0_95] : memref<672x96xf32, #tpu.memory_space<vmem>>, vector<64x32xf32>
    %c28 = arith.constant 28 : index
    %c0_96 = arith.constant 0 : index
    %289 = vector.load %arg4[%c28, %c0_96] : memref<36x96xf32, #tpu.memory_space<vmem>>, vector<1x32xf32>
    %cst_97 = arith.constant dense<0.000000e+00> : vector<16xf32>
    %290 = vector.multi_reduction <add>, %283, %cst_97 [1] : vector<16x32xf32> to vector<16xf32>
    %291 = vector.shape_cast %290 : vector<16xf32> to vector<16x1xf32>
    %cst_98 = arith.constant 3.200000e+01 : f32
    %292 = vector.broadcast %cst_98 : f32 to vector<16x1xf32>
    %293 = arith.divf %291, %292 : vector<16x1xf32>
    %294 = vector.broadcast %293 : vector<16x1xf32> to vector<16x32xf32>
    %295 = arith.subf %283, %294 : vector<16x32xf32>
    %296 = arith.mulf %295, %295 : vector<16x32xf32>
    %cst_99 = arith.constant dense<0.000000e+00> : vector<16xf32>
    %297 = vector.multi_reduction <add>, %296, %cst_99 [1] : vector<16x32xf32> to vector<16xf32>
    %298 = vector.shape_cast %297 : vector<16xf32> to vector<16x1xf32>
    %cst_100 = arith.constant 3.200000e+01 : f32
    %299 = vector.broadcast %cst_100 : f32 to vector<16x1xf32>
    %300 = arith.divf %298, %299 : vector<16x1xf32>
    %301 = vector.broadcast %293 : vector<16x1xf32> to vector<16x32xf32>
    %302 = arith.subf %283, %301 : vector<16x32xf32>
    %cst_101 = arith.constant 9.99999974E-6 : f32
    %303 = vector.broadcast %cst_101 : f32 to vector<16x1xf32>
    %304 = arith.addf %300, %303 : vector<16x1xf32>
    %305 = math.rsqrt %304 : vector<16x1xf32>
    %306 = vector.broadcast %305 : vector<16x1xf32> to vector<16x32xf32>
    %307 = arith.mulf %302, %306 : vector<16x32xf32>
    %308 = vector.broadcast %284 : vector<1x32xf32> to vector<16x32xf32>
    %309 = arith.mulf %307, %308 : vector<16x32xf32>
    %310 = vector.broadcast %285 : vector<1x32xf32> to vector<16x32xf32>
    %311 = arith.addf %309, %310 : vector<16x32xf32>
    %cst_102 = arith.constant dense<0.000000e+00> : vector<16x64xf32>
    %312 = tpu.matmul %311, %286, %cst_102 {dimension_numbers = #tpu.dot_dimension_numbers<[1], [0], [0], [1], [0, 0, 1, 1], [], []>} : vector<16x32xf32>, vector<32x64xf32>, vector<16x64xf32> -> vector<16x64xf32>
    %313 = vector.broadcast %287 : vector<1x64xf32> to vector<16x64xf32>
    %314 = arith.addf %312, %313 : vector<16x64xf32>
    %cst_103 = arith.constant 0.000000e+00 : f32
    %315 = vector.broadcast %cst_103 : f32 to vector<16x64xf32>
    %316 = arith.maximumf %314, %315 : vector<16x64xf32>
    %cst_104 = arith.constant dense<0.000000e+00> : vector<16x32xf32>
    %317 = tpu.matmul %316, %288, %cst_104 {dimension_numbers = #tpu.dot_dimension_numbers<[1], [0], [0], [1], [0, 0, 1, 1], [], []>} : vector<16x64xf32>, vector<64x32xf32>, vector<16x32xf32> -> vector<16x32xf32>
    %318 = arith.addf %283, %317 : vector<16x32xf32>
    %319 = vector.broadcast %289 : vector<1x32xf32> to vector<16x32xf32>
    %320 = arith.addf %318, %319 : vector<16x32xf32>
    %c16 = arith.constant 16 : index
    %c0_105 = arith.constant 0 : index
    %321 = vector.load %arg4[%c16, %c0_105] : memref<36x96xf32, #tpu.memory_space<vmem>>, vector<1x32xf32>
    %c22 = arith.constant 22 : index
    %c0_106 = arith.constant 0 : index
    %322 = vector.load %arg4[%c22, %c0_106] : memref<36x96xf32, #tpu.memory_space<vmem>>, vector<1x32xf32>
    %c128 = arith.constant 128 : index
    %c0_107 = arith.constant 0 : index
    %323 = vector.load %arg3[%c128, %c0_107] : memref<672x96xf32, #tpu.memory_space<vmem>>, vector<32x96xf32>
    %c4 = arith.constant 4 : index
    %c0_108 = arith.constant 0 : index
    %324 = vector.load %arg4[%c4, %c0_108] : memref<36x96xf32, #tpu.memory_space<vmem>>, vector<1x96xf32>
    %c320 = arith.constant 320 : index
    %c0_109 = arith.constant 0 : index
    %325 = vector.load %arg3[%c320, %c0_109] : memref<672x96xf32, #tpu.memory_space<vmem>>, vector<32x32xf32>
    %c10 = arith.constant 10 : index
    %c0_110 = arith.constant 0 : index
    %326 = vector.load %arg4[%c10, %c0_110] : memref<36x96xf32, #tpu.memory_space<vmem>>, vector<1x32xf32>
    %cst_111 = arith.constant dense<0.000000e+00> : vector<16xf32>
    %327 = vector.multi_reduction <add>, %320, %cst_111 [1] : vector<16x32xf32> to vector<16xf32>
    %328 = vector.shape_cast %327 : vector<16xf32> to vector<16x1xf32>
    %cst_112 = arith.constant 3.200000e+01 : f32
    %329 = vector.broadcast %cst_112 : f32 to vector<16x1xf32>
    %330 = arith.divf %328, %329 : vector<16x1xf32>
    %331 = vector.broadcast %330 : vector<16x1xf32> to vector<16x32xf32>
    %332 = arith.subf %320, %331 : vector<16x32xf32>
    %333 = arith.mulf %332, %332 : vector<16x32xf32>
    %cst_113 = arith.constant dense<0.000000e+00> : vector<16xf32>
    %334 = vector.multi_reduction <add>, %333, %cst_113 [1] : vector<16x32xf32> to vector<16xf32>
    %335 = vector.shape_cast %334 : vector<16xf32> to vector<16x1xf32>
    %cst_114 = arith.constant 3.200000e+01 : f32
    %336 = vector.broadcast %cst_114 : f32 to vector<16x1xf32>
    %337 = arith.divf %335, %336 : vector<16x1xf32>
    %338 = vector.broadcast %330 : vector<16x1xf32> to vector<16x32xf32>
    %339 = arith.subf %320, %338 : vector<16x32xf32>
    %cst_115 = arith.constant 9.99999974E-6 : f32
    %340 = vector.broadcast %cst_115 : f32 to vector<16x1xf32>
    %341 = arith.addf %337, %340 : vector<16x1xf32>
    %342 = math.rsqrt %341 : vector<16x1xf32>
    %343 = vector.broadcast %342 : vector<16x1xf32> to vector<16x32xf32>
    %344 = arith.mulf %339, %343 : vector<16x32xf32>
    %345 = vector.broadcast %321 : vector<1x32xf32> to vector<16x32xf32>
    %346 = arith.mulf %344, %345 : vector<16x32xf32>
    %347 = vector.broadcast %322 : vector<1x32xf32> to vector<16x32xf32>
    %348 = arith.addf %346, %347 : vector<16x32xf32>
    %cst_116 = arith.constant dense<0.000000e+00> : vector<16x96xf32>
    %349 = tpu.matmul %348, %323, %cst_116 {dimension_numbers = #tpu.dot_dimension_numbers<[1], [0], [0], [1], [0, 0, 1, 1], [], []>} : vector<16x32xf32>, vector<32x96xf32>, vector<16x96xf32> -> vector<16x96xf32>
    %350 = vector.broadcast %324 : vector<1x96xf32> to vector<16x96xf32>
    %351 = arith.addf %349, %350 : vector<16x96xf32>
    %352 = vector.extract_strided_slice %351 {offsets = [0, 0], sizes = [16, 32], strides = [1, 1]} : vector<16x96xf32> to vector<16x32xf32>
    %353 = vector.extract_strided_slice %351 {offsets = [0, 32], sizes = [16, 32], strides = [1, 1]} : vector<16x96xf32> to vector<16x32xf32>
    %354 = vector.extract_strided_slice %351 {offsets = [0, 64], sizes = [16, 32], strides = [1, 1]} : vector<16x96xf32> to vector<16x32xf32>
    %355 = tpu.concatenate %352, %352, %352, %352 in 0 : vector<16x32xf32>, vector<16x32xf32>, vector<16x32xf32>, vector<16x32xf32> -> vector<64x32xf32>
    %356 = arith.mulf %355, %2 : vector<64x32xf32>
    %cst_117 = arith.constant dense<0.000000e+00> : vector<64x16xf32>
    %357 = tpu.matmul %356, %353, %cst_117 {dimension_numbers = #tpu.dot_dimension_numbers<[1], [1], [0], [0], [0, 0, 1, 0], [], []>} : vector<64x32xf32>, vector<16x32xf32>, vector<64x16xf32> -> vector<64x16xf32>
    %358 = arith.addf %357, %3 : vector<64x16xf32>
    %cst_118 = arith.constant dense<0xFF800000> : vector<64xf32>
    %359 = vector.multi_reduction <maximumf>, %358, %cst_118 [1] : vector<64x16xf32> to vector<64xf32>
    %360 = vector.shape_cast %359 : vector<64xf32> to vector<64x1xf32>
    %361 = vector.broadcast %360 : vector<64x1xf32> to vector<64x16xf32>
    %362 = arith.subf %358, %361 : vector<64x16xf32>
    %363 = math.exp %362 : vector<64x16xf32>
    %cst_119 = arith.constant dense<0.000000e+00> : vector<64xf32>
    %364 = vector.multi_reduction <add>, %363, %cst_119 [1] : vector<64x16xf32> to vector<64xf32>
    %365 = vector.shape_cast %364 : vector<64xf32> to vector<64x1xf32>
    %366 = vector.broadcast %365 : vector<64x1xf32> to vector<64x16xf32>
    %367 = arith.divf %363, %366 : vector<64x16xf32>
    %cst_120 = arith.constant dense<0.000000e+00> : vector<64x32xf32>
    %368 = tpu.matmul %367, %354, %cst_120 {dimension_numbers = #tpu.dot_dimension_numbers<[1], [0], [0], [1], [0, 0, 1, 1], [], []>} : vector<64x16xf32>, vector<16x32xf32>, vector<64x32xf32> -> vector<64x32xf32>
    %369 = arith.mulf %368, %2 : vector<64x32xf32>
    %370 = vector.extract_strided_slice %369 {offsets = [0, 0], sizes = [16, 32], strides = [1, 1]} : vector<64x32xf32> to vector<16x32xf32>
    %371 = vector.extract_strided_slice %369 {offsets = [16, 0], sizes = [16, 32], strides = [1, 1]} : vector<64x32xf32> to vector<16x32xf32>
    %372 = arith.addf %370, %371 : vector<16x32xf32>
    %373 = vector.extract_strided_slice %369 {offsets = [32, 0], sizes = [16, 32], strides = [1, 1]} : vector<64x32xf32> to vector<16x32xf32>
    %374 = arith.addf %372, %373 : vector<16x32xf32>
    %375 = vector.extract_strided_slice %369 {offsets = [48, 0], sizes = [16, 32], strides = [1, 1]} : vector<64x32xf32> to vector<16x32xf32>
    %376 = arith.addf %374, %375 : vector<16x32xf32>
    %cst_121 = arith.constant dense<0.000000e+00> : vector<16x32xf32>
    %377 = tpu.matmul %376, %325, %cst_121 {dimension_numbers = #tpu.dot_dimension_numbers<[1], [0], [0], [1], [0, 0, 1, 1], [], []>} : vector<16x32xf32>, vector<32x32xf32>, vector<16x32xf32> -> vector<16x32xf32>
    %378 = vector.broadcast %326 : vector<1x32xf32> to vector<16x32xf32>
    %379 = arith.addf %377, %378 : vector<16x32xf32>
    %380 = arith.addf %320, %379 : vector<16x32xf32>
    %c17 = arith.constant 17 : index
    %c0_122 = arith.constant 0 : index
    %381 = vector.load %arg4[%c17, %c0_122] : memref<36x96xf32, #tpu.memory_space<vmem>>, vector<1x32xf32>
    %c23 = arith.constant 23 : index
    %c0_123 = arith.constant 0 : index
    %382 = vector.load %arg4[%c23, %c0_123] : memref<36x96xf32, #tpu.memory_space<vmem>>, vector<1x32xf32>
    %c160 = arith.constant 160 : index
    %c0_124 = arith.constant 0 : index
    %383 = vector.load %arg3[%c160, %c0_124] : memref<672x96xf32, #tpu.memory_space<vmem>>, vector<32x96xf32>
    %c5 = arith.constant 5 : index
    %c0_125 = arith.constant 0 : index
    %384 = vector.load %arg4[%c5, %c0_125] : memref<36x96xf32, #tpu.memory_space<vmem>>, vector<1x96xf32>
    %c352 = arith.constant 352 : index
    %c0_126 = arith.constant 0 : index
    %385 = vector.load %arg3[%c352, %c0_126] : memref<672x96xf32, #tpu.memory_space<vmem>>, vector<32x32xf32>
    %c11 = arith.constant 11 : index
    %c0_127 = arith.constant 0 : index
    %386 = vector.load %arg4[%c11, %c0_127] : memref<36x96xf32, #tpu.memory_space<vmem>>, vector<1x32xf32>
    %387 = tpu.concatenate %380, %0 in 0 : vector<16x32xf32>, vector<16x32xf32> -> vector<32x32xf32>
    %cst_128 = arith.constant dense<0.000000e+00> : vector<32xf32>
    %388 = vector.multi_reduction <add>, %387, %cst_128 [1] : vector<32x32xf32> to vector<32xf32>
    %389 = vector.shape_cast %388 : vector<32xf32> to vector<32x1xf32>
    %cst_129 = arith.constant 3.200000e+01 : f32
    %390 = vector.broadcast %cst_129 : f32 to vector<32x1xf32>
    %391 = arith.divf %389, %390 : vector<32x1xf32>
    %392 = vector.broadcast %391 : vector<32x1xf32> to vector<32x32xf32>
    %393 = arith.subf %387, %392 : vector<32x32xf32>
    %394 = arith.mulf %393, %393 : vector<32x32xf32>
    %cst_130 = arith.constant dense<0.000000e+00> : vector<32xf32>
    %395 = vector.multi_reduction <add>, %394, %cst_130 [1] : vector<32x32xf32> to vector<32xf32>
    %396 = vector.shape_cast %395 : vector<32xf32> to vector<32x1xf32>
    %cst_131 = arith.constant 3.200000e+01 : f32
    %397 = vector.broadcast %cst_131 : f32 to vector<32x1xf32>
    %398 = arith.divf %396, %397 : vector<32x1xf32>
    %399 = vector.broadcast %391 : vector<32x1xf32> to vector<32x32xf32>
    %400 = arith.subf %387, %399 : vector<32x32xf32>
    %cst_132 = arith.constant 9.99999974E-6 : f32
    %401 = vector.broadcast %cst_132 : f32 to vector<32x1xf32>
    %402 = arith.addf %398, %401 : vector<32x1xf32>
    %403 = math.rsqrt %402 : vector<32x1xf32>
    %404 = vector.broadcast %403 : vector<32x1xf32> to vector<32x32xf32>
    %405 = arith.mulf %400, %404 : vector<32x32xf32>
    %406 = vector.broadcast %381 : vector<1x32xf32> to vector<32x32xf32>
    %407 = arith.mulf %405, %406 : vector<32x32xf32>
    %408 = vector.broadcast %382 : vector<1x32xf32> to vector<32x32xf32>
    %409 = arith.addf %407, %408 : vector<32x32xf32>
    %cst_133 = arith.constant dense<0.000000e+00> : vector<32x96xf32>
    %410 = tpu.matmul %409, %383, %cst_133 {dimension_numbers = #tpu.dot_dimension_numbers<[1], [0], [0], [1], [0, 0, 1, 1], [], []>} : vector<32x32xf32>, vector<32x96xf32>, vector<32x96xf32> -> vector<32x96xf32>
    %411 = vector.broadcast %384 : vector<1x96xf32> to vector<32x96xf32>
    %412 = arith.addf %410, %411 : vector<32x96xf32>
    %413 = vector.extract_strided_slice %412 {offsets = [0, 0], sizes = [16, 32], strides = [1, 1]} : vector<32x96xf32> to vector<16x32xf32>
    %414 = vector.extract_strided_slice %412 {offsets = [16, 32], sizes = [16, 32], strides = [1, 1]} : vector<32x96xf32> to vector<16x32xf32>
    %415 = vector.extract_strided_slice %412 {offsets = [16, 64], sizes = [16, 32], strides = [1, 1]} : vector<32x96xf32> to vector<16x32xf32>
    %416 = tpu.concatenate %413, %413, %413, %413 in 0 : vector<16x32xf32>, vector<16x32xf32>, vector<16x32xf32>, vector<16x32xf32> -> vector<64x32xf32>
    %417 = arith.mulf %416, %2 : vector<64x32xf32>
    %cst_134 = arith.constant dense<0.000000e+00> : vector<64x16xf32>
    %418 = tpu.matmul %417, %414, %cst_134 {dimension_numbers = #tpu.dot_dimension_numbers<[1], [1], [0], [0], [0, 0, 1, 0], [], []>} : vector<64x32xf32>, vector<16x32xf32>, vector<64x16xf32> -> vector<64x16xf32>
    %419 = arith.addf %418, %4 : vector<64x16xf32>
    %cst_135 = arith.constant dense<0xFF800000> : vector<64xf32>
    %420 = vector.multi_reduction <maximumf>, %419, %cst_135 [1] : vector<64x16xf32> to vector<64xf32>
    %421 = vector.shape_cast %420 : vector<64xf32> to vector<64x1xf32>
    %422 = vector.broadcast %421 : vector<64x1xf32> to vector<64x16xf32>
    %423 = arith.subf %419, %422 : vector<64x16xf32>
    %424 = math.exp %423 : vector<64x16xf32>
    %cst_136 = arith.constant dense<0.000000e+00> : vector<64xf32>
    %425 = vector.multi_reduction <add>, %424, %cst_136 [1] : vector<64x16xf32> to vector<64xf32>
    %426 = vector.shape_cast %425 : vector<64xf32> to vector<64x1xf32>
    %427 = vector.broadcast %426 : vector<64x1xf32> to vector<64x16xf32>
    %428 = arith.divf %424, %427 : vector<64x16xf32>
    %cst_137 = arith.constant dense<0.000000e+00> : vector<64x32xf32>
    %429 = tpu.matmul %428, %415, %cst_137 {dimension_numbers = #tpu.dot_dimension_numbers<[1], [0], [0], [1], [0, 0, 1, 1], [], []>} : vector<64x16xf32>, vector<16x32xf32>, vector<64x32xf32> -> vector<64x32xf32>
    %430 = arith.mulf %429, %2 : vector<64x32xf32>
    %431 = vector.extract_strided_slice %430 {offsets = [0, 0], sizes = [16, 32], strides = [1, 1]} : vector<64x32xf32> to vector<16x32xf32>
    %432 = vector.extract_strided_slice %430 {offsets = [16, 0], sizes = [16, 32], strides = [1, 1]} : vector<64x32xf32> to vector<16x32xf32>
    %433 = arith.addf %431, %432 : vector<16x32xf32>
    %434 = vector.extract_strided_slice %430 {offsets = [32, 0], sizes = [16, 32], strides = [1, 1]} : vector<64x32xf32> to vector<16x32xf32>
    %435 = arith.addf %433, %434 : vector<16x32xf32>
    %436 = vector.extract_strided_slice %430 {offsets = [48, 0], sizes = [16, 32], strides = [1, 1]} : vector<64x32xf32> to vector<16x32xf32>
    %437 = arith.addf %435, %436 : vector<16x32xf32>
    %cst_138 = arith.constant dense<0.000000e+00> : vector<16x32xf32>
    %438 = tpu.matmul %437, %385, %cst_138 {dimension_numbers = #tpu.dot_dimension_numbers<[1], [0], [0], [1], [0, 0, 1, 1], [], []>} : vector<16x32xf32>, vector<32x32xf32>, vector<16x32xf32> -> vector<16x32xf32>
    %439 = vector.broadcast %386 : vector<1x32xf32> to vector<16x32xf32>
    %440 = arith.addf %438, %439 : vector<16x32xf32>
    %441 = arith.addf %380, %440 : vector<16x32xf32>
    %c32_139 = arith.constant 32 : index
    %c0_140 = arith.constant 0 : index
    %442 = vector.load %arg4[%c32_139, %c0_140] : memref<36x96xf32, #tpu.memory_space<vmem>>, vector<1x32xf32>
    %c35 = arith.constant 35 : index
    %c0_141 = arith.constant 0 : index
    %443 = vector.load %arg4[%c35, %c0_141] : memref<36x96xf32, #tpu.memory_space<vmem>>, vector<1x32xf32>
    %c448 = arith.constant 448 : index
    %c0_142 = arith.constant 0 : index
    %444 = vector.load %arg3[%c448, %c0_142] : memref<672x96xf32, #tpu.memory_space<vmem>>, vector<32x64xf32>
    %c26 = arith.constant 26 : index
    %c0_143 = arith.constant 0 : index
    %445 = vector.load %arg4[%c26, %c0_143] : memref<36x96xf32, #tpu.memory_space<vmem>>, vector<1x64xf32>
    %c608 = arith.constant 608 : index
    %c0_144 = arith.constant 0 : index
    %446 = vector.load %arg3[%c608, %c0_144] : memref<672x96xf32, #tpu.memory_space<vmem>>, vector<64x32xf32>
    %c29 = arith.constant 29 : index
    %c0_145 = arith.constant 0 : index
    %447 = vector.load %arg4[%c29, %c0_145] : memref<36x96xf32, #tpu.memory_space<vmem>>, vector<1x32xf32>
    %cst_146 = arith.constant dense<0.000000e+00> : vector<16xf32>
    %448 = vector.multi_reduction <add>, %441, %cst_146 [1] : vector<16x32xf32> to vector<16xf32>
    %449 = vector.shape_cast %448 : vector<16xf32> to vector<16x1xf32>
    %cst_147 = arith.constant 3.200000e+01 : f32
    %450 = vector.broadcast %cst_147 : f32 to vector<16x1xf32>
    %451 = arith.divf %449, %450 : vector<16x1xf32>
    %452 = vector.broadcast %451 : vector<16x1xf32> to vector<16x32xf32>
    %453 = arith.subf %441, %452 : vector<16x32xf32>
    %454 = arith.mulf %453, %453 : vector<16x32xf32>
    %cst_148 = arith.constant dense<0.000000e+00> : vector<16xf32>
    %455 = vector.multi_reduction <add>, %454, %cst_148 [1] : vector<16x32xf32> to vector<16xf32>
    %456 = vector.shape_cast %455 : vector<16xf32> to vector<16x1xf32>
    %cst_149 = arith.constant 3.200000e+01 : f32
    %457 = vector.broadcast %cst_149 : f32 to vector<16x1xf32>
    %458 = arith.divf %456, %457 : vector<16x1xf32>
    %459 = vector.broadcast %451 : vector<16x1xf32> to vector<16x32xf32>
    %460 = arith.subf %441, %459 : vector<16x32xf32>
    %cst_150 = arith.constant 9.99999974E-6 : f32
    %461 = vector.broadcast %cst_150 : f32 to vector<16x1xf32>
    %462 = arith.addf %458, %461 : vector<16x1xf32>
    %463 = math.rsqrt %462 : vector<16x1xf32>
    %464 = vector.broadcast %463 : vector<16x1xf32> to vector<16x32xf32>
    %465 = arith.mulf %460, %464 : vector<16x32xf32>
    %466 = vector.broadcast %442 : vector<1x32xf32> to vector<16x32xf32>
    %467 = arith.mulf %465, %466 : vector<16x32xf32>
    %468 = vector.broadcast %443 : vector<1x32xf32> to vector<16x32xf32>
    %469 = arith.addf %467, %468 : vector<16x32xf32>
    %cst_151 = arith.constant dense<0.000000e+00> : vector<16x64xf32>
    %470 = tpu.matmul %469, %444, %cst_151 {dimension_numbers = #tpu.dot_dimension_numbers<[1], [0], [0], [1], [0, 0, 1, 1], [], []>} : vector<16x32xf32>, vector<32x64xf32>, vector<16x64xf32> -> vector<16x64xf32>
    %471 = vector.broadcast %445 : vector<1x64xf32> to vector<16x64xf32>
    %472 = arith.addf %470, %471 : vector<16x64xf32>
    %cst_152 = arith.constant 0.000000e+00 : f32
    %473 = vector.broadcast %cst_152 : f32 to vector<16x64xf32>
    %474 = arith.maximumf %472, %473 : vector<16x64xf32>
    %cst_153 = arith.constant dense<0.000000e+00> : vector<16x32xf32>
    %475 = tpu.matmul %474, %446, %cst_153 {dimension_numbers = #tpu.dot_dimension_numbers<[1], [0], [0], [1], [0, 0, 1, 1], [], []>} : vector<16x64xf32>, vector<64x32xf32>, vector<16x32xf32> -> vector<16x32xf32>
    %476 = arith.addf %441, %475 : vector<16x32xf32>
    %477 = vector.broadcast %447 : vector<1x32xf32> to vector<16x32xf32>
    %478 = arith.addf %476, %477 : vector<16x32xf32>
    %c0_154 = arith.constant 0 : index
    %c0_155 = arith.constant 0 : index
    %479 = vector.load %arg5[%c0_154, %c0_155] : memref<16x32xf32, #tpu.memory_space<vmem>>, vector<16x32xf32>
    tpu.vector_store %arg5[%c0_154, %c0_155], %478 {strides = array<i32>} : memref<16x32xf32, #tpu.memory_space<vmem>>, vector<16x32xf32>,
    return
  }
}

</mosaic_0001>

<llo_original>
// kernel: tpu_custom_call.1
$region0: #{tpu_custom_call.1}
  #allocation0 [shape = 'u32[]', space=smem, size = 0x4, offset = 0x4, fixed_abs, tag = 'smem constant byte address 0x4 - core index']
  #allocation1 [shape = 'u32[144,128]{1,0:T(1,128)}', space=vmem, size = 0x12000, scoped, tag = 'internal scratch']
  %s0 = inlined_call_operand.vmem [shape: f32[16,32], index: 0, kind: input, shape index: {}]
  %s1 = inlined_call_operand.vmem [shape: f32[16,32], index: 1, kind: input, shape index: {}]
  %s2 = inlined_call_operand.vmem [shape: f32[64,64], index: 2, kind: input, shape index: {}]
  %s3 = inlined_call_operand.vmem [shape: f32[672,96], index: 3, kind: input, shape index: {}]
  %s4 = inlined_call_operand.vmem [shape: f32[36,96], index: 4, kind: input, shape index: {}]
  %s5 = inlined_call_operand.hbm [shape: f32[16,32], index: 5, kind: output, shape index: {}]
  %s6 = sld [smem:[#allocation0]]
  $region30: #{tpu_custom_call.1} parent=0
    _
  %s8 = ssub.s32 1, %s6
  %s9 = scalar_select 0, %s8, %s6
  $region1: #{tpu_custom_call.1} parent=0
    #allocation2 [shape = 'u8[8192]{0}', space=vmem, size = 0x2000, scoped, tag = 'output window, operand 0, single buffered']
    #allocation3 [shape = 's32[1]{0}', space=sflag, size = 0x4, scoped, tag = 'scoped memory for tpu_custom_call.1']
    %10 = vsyncpa [#allocation3], 0
    // Predicated region
    $region2: #{tpu_custom_call.1} parent=1 // pred_check
      _
    $region3: #{tpu_custom_call.1} parent=1 // pred_check_branch
      %12 = sbr.rel (0) target = $region5
    $region4: #{tpu_custom_call.1} parent=1 // pred_region
      _
    $region5: #{tpu_custom_call.1} parent=1 // pred_fallthru
      _
    // Predicated region
    $region6: #{tpu_custom_call.1} parent=1 // pred_check
      _
    $region7: #{tpu_custom_call.1} parent=1 // pred_check_branch
      %14 = sbr.rel (0) target = $region9
    $region8: #{tpu_custom_call.1} parent=1 // pred_region
      _
    $region9: #{tpu_custom_call.1} parent=1 // pred_fallthru
      _
    // Predicated region
    $region10: #{tpu_custom_call.1} parent=1 // pred_check
      _
    $region11: #{tpu_custom_call.1} parent=1 // pred_check_branch
      %16 = sbr.rel (0) target = $region13
    $region12: #{tpu_custom_call.1} parent=1 // pred_region
      _
    $region13: #{tpu_custom_call.1} parent=1 // pred_fallthru
      _
    // Predicated region
    $region14: #{tpu_custom_call.1} parent=1 // pred_check
      _
    $region15: #{tpu_custom_call.1} parent=1 // pred_check_branch
      %18 = sbr.rel (0) target = $region17
    $region16: #{tpu_custom_call.1} parent=1 // pred_region
      _
    $region17: #{tpu_custom_call.1} parent=1 // pred_fallthru
      _
    // Predicated region
    $region18: #{tpu_custom_call.1} parent=1 // pred_check
      _
    $region19: #{tpu_custom_call.1} parent=1 // pred_check_branch
      %20 = sbr.rel (0) target = $region21
    $region20: #{tpu_custom_call.1} parent=1 // pred_region
      _
    $region21: #{tpu_custom_call.1} parent=1 // pred_fallthru
      _
    %v21 = vld [vmem:[%s0] sm:$0xff]
    %v22 = vld [vmem:[%s0 + $0x8] sm:$0xff]
    %v23 = vld [vmem:[%s1] sm:$0xff]
    %v24 = vld [vmem:[%s1 + $0x8] sm:$0xff]
    %v25 = vld [vmem:[%s2] sm:$0xff]
    %v26 = vld [vmem:[%s2 + $0x8] sm:$0xff]
    %v27 = vld [vmem:[%s2 + $0x10] sm:$0xff]
    %v28 = vld [vmem:[%s2 + $0x18] sm:$0xff]
    %v29 = vld [vmem:[%s2 + $0x20] sm:$0xff]
    %v30 = vld [vmem:[%s2 + $0x28] sm:$0xff]
    %v31 = vld [vmem:[%s2 + $0x30] sm:$0xff]
    %v32 = vld [vmem:[%s2 + $0x38] sm:$0xff]
    %v33 = vld [vmem:[%s4 + $0xc] sm:$0x1]
    %v34 = vld [vmem:[%s4 + $0x12] sm:$0x1]
    %v35 = vld [vmem:[%s3] sm:$0xff]
    %v36 = vld [vmem:[%s3 + $0x8] sm:$0xff]
    %v37 = vld [vmem:[%s3 + $0x10] sm:$0xff]
    %v38 = vld [vmem:[%s3 + $0x18] sm:$0xff]
    %v39 = vld [vmem:[%s4] sm:$0x1]
    %v40 = vld [vmem:[%s3 + $0xc0] sm:$0xff]
    %v41 = vld [vmem:[%s3 + $0xc8] sm:$0xff]
    %v42 = vld [vmem:[%s3 + $0xd0] sm:$0xff]
    %v43 = vld [vmem:[%s3 + $0xd8] sm:$0xff]
    %v44 = vld [vmem:[%s4 + $0x6] sm:$0x1]
    %vm45 = vcmask 261120
    %v46 = vsel %vm45, %v23, 0.0
    %47 = vadd.xlane.f32.xlu0 %v46
    %v48 = vpop.xlane.xlu0 %47
    %v49 = vsel %vm45, %v24, 0.0
    %50 = vadd.xlane.f32.xlu0 %v49
    %v51 = vpop.xlane.xlu0 %50
    %v52 = vrcp.pop 32.0
    %v53 = vmul.f32 %v48, %v52
    %v54 = vmul.f32 %v51, %v52
    %v55 = vsub.f32 %v23, %v53
    %v56 = vsub.f32 %v24, %v54
    %v57 = vmul.f32 %v55, %v55
    %v58 = vmul.f32 %v56, %v56
    %v59 = vsel %vm45, %v57, 0.0
    %60 = vadd.xlane.f32.xlu0 %v59
    %v61 = vpop.xlane.xlu0 %60
    %v62 = vsel %vm45, %v58, 0.0
    %63 = vadd.xlane.f32.xlu0 %v62
    %v64 = vpop.xlane.xlu0 %63
    %v65 = vmul.f32 %v61, %v52
    %v66 = vmul.f32 %v64, %v52
    %v67 = vadd.f32 %v65, 1e-05
    %v68 = vadd.f32 %v66, 1e-05
    %v69 = vrsqrt.pop %v67
    %v70 = vrsqrt.pop %v68
    %v71 = vmul.f32 %v55, %v69
    %v72 = vmul.f32 %v56, %v70
    %v73 = vlaneseq
    %v74 = vshrl.u32 %v73, 7
    %v75 = vsub.s32 0, %v74
    %v76 = vrot.slane %v33, %v75
    %v77 = vmul.f32 %v71, %v76
    %v78 = vmul.f32 %v72, %v76
    %v79 = vlaneseq
    %v80 = vshrl.u32 %v79, 7
    %v81 = vsub.s32 0, %v80
    %v82 = vrot.slane %v34, %v81
    %v83 = vadd.f32 %v77, %v82
    %v84 = vadd.f32 %v78, %v82
    %v85 = vlaneseq
    %v86 = vshrl.u32 %v85, 7
    %v87 = vsub.s32 0, %v86
    %v88 = vrot.slane %v39, %v87
    %v90 = vsel %vm45, %v83, 0
    %v93 = vsel %vm45, %v84, 0
    %95 = vmatprep.subr.mxu0 0.0
    %96 = vmatpush1.msra.mxu0 %v35
    %97 = vmatprep.subr.mxu0 0.0
    %98 = vmatpush1.msra.mxu0 %v36
    %99 = vmatprep.subr.mxu0 0.0
    %100 = vmatpush1.msra.mxu0 %v37
    %101 = vmatprep.subr.mxu0 0.0
    %102 = vmatpush1.msra.mxu0 %v38
    %103 = vmatprep.subr.mxu0 0.0
    %104 = vmatpush1.msra.mxu0 0.0
    %105 = vmatprep.subr.mxu0 0.0
    %106 = vmatpush1.msra.mxu0 0.0
    %107 = vmatprep.subr.mxu0 0.0
    %108 = vmatpush1.msra.mxu0 0.0
    %109 = vmatprep.subr.mxu0 0.0
    %110 = vmatpush1.msra.mxu0 0.0
    %111 = vmatprep.subr.mxu0 0.0
    %112 = vmatpush1.msra.mxu0 0.0
    %113 = vmatprep.subr.mxu0 0.0
    %114 = vmatpush1.msra.mxu0 0.0
    %115 = vmatprep.subr.mxu0 0.0
    %116 = vmatpush1.msra.mxu0 0.0
    %117 = vmatprep.subr.mxu0 0.0
    %118 = vmatpush1.msra.mxu0 0.0
    %119 = vmatprep.subr.mxu0 0.0
    %120 = vmatpush1.msra.mxu0 0.0
    %121 = vmatprep.subr.mxu0 0.0
    %122 = vmatpush1.msra.mxu0 0.0
    %123 = vmatprep.subr.mxu0 0.0
    %124 = vmatpush1.msra.mxu0 0.0
    %125 = vmatprep.subr.mxu0 0.0
    %126 = vmatpush1.msra.mxu0 0.0
    %127 = vmatprep.subr.mxu0 0.0
    %128 = vmatpush1.msra.mxu0 0.0
    %129 = vmatprep.subr.mxu0 0.0
    %130 = vmatpush1.msra.mxu0 0.0
    %131 = vmatprep.subr.mxu0 0.0
    %132 = vmatpush1.msra.mxu0 0.0
    %133 = vmatprep.subr.mxu0 0.0
    %134 = vmatpush1.msra.mxu0 0.0
    %135 = vmatprep.subr.mxu0 0.0
    %136 = vmatpush1.msra.mxu0 0.0
    %137 = vmatprep.subr.mxu0 0.0
    %138 = vmatpush1.msra.mxu0 0.0
    %139 = vmatprep.subr.mxu0 0.0
    %140 = vmatpush1.msra.mxu0 0.0
    %141 = vmatprep.subr.mxu0 0.0
    %142 = vmatpush1.msra.mxu0 0.0
    %143 = vmatprep.subr.mxu0 0.0
    %144 = vmatpush1.msra.mxu0 0.0
    %145 = vmatprep.subr.mxu0 0.0
    %146 = vmatpush1.msra.mxu0 0.0
    %147 = vmatprep.subr.mxu0 0.0
    %148 = vmatpush1.msra.mxu0 0.0
    %149 = vmatprep.subr.mxu0 0.0
    %150 = vmatpush1.msra.mxu0 0.0
    %151 = vmatprep.subr.mxu0 0.0
    %152 = vmatpush1.msra.mxu0 0.0
    %153 = vmatprep.subr.mxu0 0.0
    %154 = vmatpush1.msra.mxu0 0.0
    %155 = vmatprep.subr.mxu0 0.0
    %156 = vmatpush1.msra.mxu0 0.0
    %157 = vmatprep.subr.mxu0 0.0
    %158 = vmatpush1.msra.mxu0 0.0
    %159 = vmatprep.mubr.f32.mxu0 0.0
    %160 = vmatmul.mubr.f32.gmra.mrb[0].mxu0 %v90
    %v161 = vpop.f32.mrb[0].mxu0
    %v162 = vadd.f32 %v88, %v161
    %v163 = vpop.f32.mrb[0].mxu0
    %164 = vmatprep.mubr.f32.mxu0 0.0
    %165 = vmatmul.mubr.f32.gmra.mrb[0].mxu0 %v93
    %v166 = vpop.f32.mrb[0].mxu0
    %v167 = vadd.f32 %v88, %v166
    %v168 = vpop.f32.mrb[0].mxu0
    %169 = vdwg.mxu0
    %v170 = vmul.f32 %v162, %v25
    %v171 = vmul.f32 %v167, %v26
    %v172 = vmul.f32 %v162, %v27
    %v173 = vmul.f32 %v167, %v28
    %v174 = vmul.f32 %v162, %v29
    %v175 = vmul.f32 %v167, %v30
    %v176 = vmul.f32 %v162, %v31
    %v177 = vmul.f32 %v167, %v32
    %180 = vrot.lane.b32.xlu0 %v162, 96
    %v181 = vpop.permute.xlu0 %180
    %182 = vrot.lane.b32.xlu0 %v167, 96
    %v183 = vpop.permute.xlu0 %182
    %192 = vrot.lane.b32.xlu0 %v25, 96
    %v193 = vpop.permute.xlu0 %192
    %194 = vrot.lane.b32.xlu0 %v26, 96
    %v195 = vpop.permute.xlu0 %194
    %196 = vrot.lane.b32.xlu0 %v27, 96
    %v197 = vpop.permute.xlu0 %196
    %198 = vrot.lane.b32.xlu0 %v28, 96
    %v199 = vpop.permute.xlu0 %198
    %200 = vrot.lane.b32.xlu0 %v29, 96
    %v201 = vpop.permute.xlu0 %200
    %202 = vrot.lane.b32.xlu0 %v30, 96
    %v203 = vpop.permute.xlu0 %202
    %204 = vrot.lane.b32.xlu0 %v31, 96
    %v205 = vpop.permute.xlu0 %204
    %206 = vrot.lane.b32.xlu0 %v32, 96
    %v207 = vpop.permute.xlu0 %206
    %v217 = vsel %vm45, %v170, 0
    %v220 = vsel %vm45, %v171, 0
    %v223 = vsel %vm45, %v172, 0
    %v226 = vsel %vm45, %v173, 0
    %v229 = vsel %vm45, %v174, 0
    %v232 = vsel %vm45, %v175, 0
    %v235 = vsel %vm45, %v176, 0
    %v238 = vsel %vm45, %v177, 0
    %v240 = vsel %vm45, %v181, 0
    %v242 = vsel %vm45, %v183, 0
    %244 = vmatprep.subr.mxu0 0.0
    %245 = vmatpush1.xpose.msra.mxu0 %v240
    %246 = vmatprep.subr.mxu0 0.0
    %247 = vmatpush1.xpose.msra.mxu0 %v242
    %248 = vmatprep.subr.mxu0 0.0
    %249 = vmatpush1.xpose.msra.mxu0 0.0
    %250 = vmatprep.subr.mxu0 0.0
    %251 = vmatpush1.xpose.msra.mxu0 0.0
    %252 = vmatprep.subr.mxu0 0.0
    %253 = vmatpush1.xpose.msra.mxu0 0.0
    %254 = vmatprep.subr.mxu0 0.0
    %255 = vmatpush1.xpose.msra.mxu0 0.0
    %256 = vmatprep.subr.mxu0 0.0
    %257 = vmatpush1.xpose.msra.mxu0 0.0
    %258 = vmatprep.subr.mxu0 0.0
    %259 = vmatpush1.xpose.msra.mxu0 0.0
    %260 = vmatprep.subr.mxu0 0.0
    %261 = vmatpush1.xpose.msra.mxu0 0.0
    %262 = vmatprep.subr.mxu0 0.0
    %263 = vmatpush1.xpose.msra.mxu0 0.0
    %264 = vmatprep.subr.mxu0 0.0
    %265 = vmatpush1.xpose.msra.mxu0 0.0
    %266 = vmatprep.subr.mxu0 0.0
    %267 = vmatpush1.xpose.msra.mxu0 0.0
    %268 = vmatprep.subr.mxu0 0.0
    %269 = vmatpush1.xpose.msra.mxu0 0.0
    %270 = vmatprep.subr.mxu0 0.0
    %271 = vmatpush1.xpose.msra.mxu0 0.0
    %272 = vmatprep.subr.mxu0 0.0
    %273 = vmatpush1.xpose.msra.mxu0 0.0
    %274 = vmatprep.subr.mxu0 0.0
    %275 = vmatpush1.xpose.msra.mxu0 0.0
    %276 = vmatprep.subr.mxu0 0.0
    %277 = vmatpush1.xpose.msra.mxu0 0.0
    %278 = vmatprep.subr.mxu0 0.0
    %279 = vmatpush1.xpose.msra.mxu0 0.0
    %280 = vmatprep.subr.mxu0 0.0
    %281 = vmatpush1.xpose.msra.mxu0 0.0
    %282 = vmatprep.subr.mxu0 0.0
    %283 = vmatpush1.xpose.msra.mxu0 0.0
    %284 = vmatprep.subr.mxu0 0.0
    %285 = vmatpush1.xpose.msra.mxu0 0.0
    %286 = vmatprep.subr.mxu0 0.0
    %287 = vmatpush1.xpose.msra.mxu0 0.0
    %288 = vmatprep.subr.mxu0 0.0
    %289 = vmatpush1.xpose.msra.mxu0 0.0
    %290 = vmatprep.subr.mxu0 0.0
    %291 = vmatpush1.xpose.msra.mxu0 0.0
    %292 = vmatprep.subr.mxu0 0.0
    %293 = vmatpush1.xpose.msra.mxu0 0.0
    %294 = vmatprep.subr.mxu0 0.0
    %295 = vmatpush1.xpose.msra.mxu0 0.0
    %296 = vmatprep.subr.mxu0 0.0
    %297 = vmatpush1.xpose.msra.mxu0 0.0
    %298 = vmatprep.subr.mxu0 0.0
    %299 = vmatpush1.xpose.msra.mxu0 0.0
    %300 = vmatprep.subr.mxu0 0.0
    %301 = vmatpush1.xpose.msra.mxu0 0.0
    %302 = vmatprep.subr.mxu0 0.0
    %303 = vmatpush1.xpose.msra.mxu0 0.0
    %304 = vmatprep.subr.mxu0 0.0
    %305 = vmatpush1.xpose.msra.mxu0 0.0
    %306 = vmatprep.subr.mxu0 0.0
    %307 = vmatpush1.xpose.msra.mxu0 0.0
    %308 = vmatprep.mubr.f32.mxu0 0.0
    %309 = vmatmul.mubr.f32.gmra.mrb[0].mxu0 %v217
    %v310 = vpop.f32.mrb[0].mxu0
    %v311 = vadd.f32 %v193, %v310
    %v312 = vpop.f32.mrb[0].mxu0
    %313 = vmatprep.mubr.f32.mxu0 0.0
    %314 = vmatmul.mubr.f32.gmra.mrb[0].mxu0 %v220
    %v315 = vpop.f32.mrb[0].mxu0
    %v316 = vadd.f32 %v195, %v315
    %v317 = vpop.f32.mrb[0].mxu0
    %318 = vmatprep.mubr.f32.mxu0 0.0
    %319 = vmatmul.mubr.f32.gmra.mrb[0].mxu0 %v223
    %v320 = vpop.f32.mrb[0].mxu0
    %v321 = vadd.f32 %v197, %v320
    %v322 = vpop.f32.mrb[0].mxu0
    %323 = vmatprep.mubr.f32.mxu0 0.0
    %324 = vmatmul.mubr.f32.gmra.mrb[0].mxu0 %v226
    %v325 = vpop.f32.mrb[0].mxu0
    %v326 = vadd.f32 %v199, %v325
    %v327 = vpop.f32.mrb[0].mxu0
    %328 = vmatprep.mubr.f32.mxu0 0.0
    %329 = vmatmul.mubr.f32.gmra.mrb[0].mxu0 %v229
    %v330 = vpop.f32.mrb[0].mxu0
    %v331 = vadd.f32 %v201, %v330
    %v332 = vpop.f32.mrb[0].mxu0
    %333 = vmatprep.mubr.f32.mxu0 0.0
    %334 = vmatmul.mubr.f32.gmra.mrb[0].mxu0 %v232
    %v335 = vpop.f32.mrb[0].mxu0
    %v336 = vadd.f32 %v203, %v335
    %v337 = vpop.f32.mrb[0].mxu0
    %338 = vmatprep.mubr.f32.mxu0 0.0
    %339 = vmatmul.mubr.f32.gmra.mrb[0].mxu0 %v235
    %v340 = vpop.f32.mrb[0].mxu0
    %v341 = vadd.f32 %v205, %v340
    %v342 = vpop.f32.mrb[0].mxu0
    %343 = vmatprep.mubr.f32.mxu0 0.0
    %344 = vmatmul.mubr.f32.gmra.mrb[0].mxu0 %v238
    %v345 = vpop.f32.mrb[0].mxu0
    %v346 = vadd.f32 %v207, %v345
    %v347 = vpop.f32.mrb[0].mxu0
    %348 = vdwg.mxu0
    %vm349 = vcmask 130048
    %v350 = vsel %vm349, %v311, -inf
    %351 = vmax.xlane.f32.xlu0 %v350
    %v352 = vpop.xlane.xlu0 %351
    %v353 = vsel %vm349, %v316, -inf
    %354 = vmax.xlane.f32.xlu0 %v353
    %v355 = vpop.xlane.xlu0 %354
    %v356 = vsel %vm349, %v321, -inf
    %357 = vmax.xlane.f32.xlu0 %v356
    %v358 = vpop.xlane.xlu0 %357
    %v359 = vsel %vm349, %v326, -inf
    %360 = vmax.xlane.f32.xlu0 %v359
    %v361 = vpop.xlane.xlu0 %360
    %v362 = vsel %vm349, %v331, -inf
    %363 = vmax.xlane.f32.xlu0 %v362
    %v364 = vpop.xlane.xlu0 %363
    %v365 = vsel %vm349, %v336, -inf
    %366 = vmax.xlane.f32.xlu0 %v365
    %v367 = vpop.xlane.xlu0 %366
    %v368 = vsel %vm349, %v341, -inf
    %369 = vmax.xlane.f32.xlu0 %v368
    %v370 = vpop.xlane.xlu0 %369
    %v371 = vsel %vm349, %v346, -inf
    %372 = vmax.xlane.f32.xlu0 %v371
    %v373 = vpop.xlane.xlu0 %372
    %v374 = vsub.f32 %v311, %v352
    %v375 = vsub.f32 %v316, %v355
    %v376 = vsub.f32 %v321, %v358
    %v377 = vsub.f32 %v326, %v361
    %v378 = vsub.f32 %v331, %v364
    %v379 = vsub.f32 %v336, %v367
    %v380 = vsub.f32 %v341, %v370
    %v381 = vsub.f32 %v346, %v373
    %v382 = vmul.f32 %v374, 1.442695
    %v383 = vpow.pop %v382
    %v384 = vmul.f32 %v375, 1.442695
    %v385 = vpow.pop %v384
    %v386 = vmul.f32 %v376, 1.442695
    %v387 = vpow.pop %v386
    %v388 = vmul.f32 %v377, 1.442695
    %v389 = vpow.pop %v388
    %v390 = vmul.f32 %v378, 1.442695
    %v391 = vpow.pop %v390
    %v392 = vmul.f32 %v379, 1.442695
    %v393 = vpow.pop %v392
    %v394 = vmul.f32 %v380, 1.442695
    %v395 = vpow.pop %v394
    %v396 = vmul.f32 %v381, 1.442695
    %v397 = vpow.pop %v396
    %v398 = vsel %vm349, %v383, 0.0
    %399 = vadd.xlane.f32.xlu0 %v398
    %v400 = vpop.xlane.xlu0 %399
    %v401 = vsel %vm349, %v385, 0.0
    %402 = vadd.xlane.f32.xlu0 %v401
    %v403 = vpop.xlane.xlu0 %402
    %v404 = vsel %vm349, %v387, 0.0
    %405 = vadd.xlane.f32.xlu0 %v404
    %v406 = vpop.xlane.xlu0 %405
    %v407 = vsel %vm349, %v389, 0.0
    %408 = vadd.xlane.f32.xlu0 %v407
    %v409 = vpop.xlane.xlu0 %408
    %v410 = vsel %vm349, %v391, 0.0
    %411 = vadd.xlane.f32.xlu0 %v410
    %v412 = vpop.xlane.xlu0 %411
    %v413 = vsel %vm349, %v393, 0.0
    %414 = vadd.xlane.f32.xlu0 %v413
    %v415 = vpop.xlane.xlu0 %414
    %v416 = vsel %vm349, %v395, 0.0
    %417 = vadd.xlane.f32.xlu0 %v416
    %v418 = vpop.xlane.xlu0 %417
    %v419 = vsel %vm349, %v397, 0.0
    %420 = vadd.xlane.f32.xlu0 %v419
    %v421 = vpop.xlane.xlu0 %420
    %v422 = vrcp.pop %v400
    %v423 = vmul.f32 %v383, %v422
    %v424 = vrcp.pop %v403
    %v425 = vmul.f32 %v385, %v424
    %v426 = vrcp.pop %v406
    %v427 = vmul.f32 %v387, %v426
    %v428 = vrcp.pop %v409
    %v429 = vmul.f32 %v389, %v428
    %v430 = vrcp.pop %v412
    %v431 = vmul.f32 %v391, %v430
    %v432 = vrcp.pop %v415
    %v433 = vmul.f32 %v393, %v432
    %v434 = vrcp.pop %v418
    %v435 = vmul.f32 %v395, %v434
    %v436 = vrcp.pop %v421
    %v437 = vmul.f32 %v397, %v436
    %438 = vrot.lane.b32.xlu0 %v162, 64
    %v439 = vpop.permute.xlu0 %438
    %440 = vrot.lane.b32.xlu0 %v167, 64
    %v441 = vpop.permute.xlu0 %440
    %v445 = vsel %vm349, %v423, 0
    %v448 = vsel %vm349, %v425, 0
    %v451 = vsel %vm349, %v427, 0
    %v454 = vsel %vm349, %v429, 0
    %v457 = vsel %vm349, %v431, 0
    %v460 = vsel %vm349, %v433, 0
    %v463 = vsel %vm349, %v435, 0
    %v466 = vsel %vm349, %v437, 0
    %468 = vmatprep.subr.mxu0 0.0
    %469 = vmatpush1.msra.mxu0 %v439
    %470 = vmatprep.subr.mxu0 0.0
    %471 = vmatpush1.msra.mxu0 %v441
    %472 = vmatprep.subr.mxu0 0.0
    %473 = vmatpush1.msra.mxu0 0.0
    %474 = vmatprep.subr.mxu0 0.0
    %475 = vmatpush1.msra.mxu0 0.0
    %476 = vmatprep.subr.mxu0 0.0
    %477 = vmatpush1.msra.mxu0 0.0
    %478 = vmatprep.subr.mxu0 0.0
    %479 = vmatpush1.msra.mxu0 0.0
    %480 = vmatprep.subr.mxu0 0.0
    %481 = vmatpush1.msra.mxu0 0.0
    %482 = vmatprep.subr.mxu0 0.0
    %483 = vmatpush1.msra.mxu0 0.0
    %484 = vmatprep.subr.mxu0 0.0
    %485 = vmatpush1.msra.mxu0 0.0
    %486 = vmatprep.subr.mxu0 0.0
    %487 = vmatpush1.msra.mxu0 0.0
    %488 = vmatprep.subr.mxu0 0.0
    %489 = vmatpush1.msra.mxu0 0.0
    %490 = vmatprep.subr.mxu0 0.0
    %491 = vmatpush1.msra.mxu0 0.0
    %492 = vmatprep.subr.mxu0 0.0
    %493 = vmatpush1.msra.mxu0 0.0
    %494 = vmatprep.subr.mxu0 0.0
    %495 = vmatpush1.msra.mxu0 0.0
    %496 = vmatprep.subr.mxu0 0.0
    %497 = vmatpush1.msra.mxu0 0.0
    %498 = vmatprep.subr.mxu0 0.0
    %499 = vmatpush1.msra.mxu0 0.0
    %500 = vmatprep.subr.mxu0 0.0
    %501 = vmatpush1.msra.mxu0 0.0
    %502 = vmatprep.subr.mxu0 0.0
    %503 = vmatpush1.msra.mxu0 0.0
    %504 = vmatprep.subr.mxu0 0.0
    %505 = vmatpush1.msra.mxu0 0.0
    %506 = vmatprep.subr.mxu0 0.0
    %507 = vmatpush1.msra.mxu0 0.0
    %508 = vmatprep.subr.mxu0 0.0
    %509 = vmatpush1.msra.mxu0 0.0
    %510 = vmatprep.subr.mxu0 0.0
    %511 = vmatpush1.msra.mxu0 0.0
    %512 = vmatprep.subr.mxu0 0.0
    %513 = vmatpush1.msra.mxu0 0.0
    %514 = vmatprep.subr.mxu0 0.0
    %515 = vmatpush1.msra.mxu0 0.0
    %516 = vmatprep.subr.mxu0 0.0
    %517 = vmatpush1.msra.mxu0 0.0
    %518 = vmatprep.subr.mxu0 0.0
    %519 = vmatpush1.msra.mxu0 0.0
    %520 = vmatprep.subr.mxu0 0.0
    %521 = vmatpush1.msra.mxu0 0.0
    %522 = vmatprep.subr.mxu0 0.0
    %523 = vmatpush1.msra.mxu0 0.0
    %524 = vmatprep.subr.mxu0 0.0
    %525 = vmatpush1.msra.mxu0 0.0
    %526 = vmatprep.subr.mxu0 0.0
    %527 = vmatpush1.msra.mxu0 0.0
    %528 = vmatprep.subr.mxu0 0.0
    %529 = vmatpush1.msra.mxu0 0.0
    %530 = vmatprep.subr.mxu0 0.0
    %531 = vmatpush1.msra.mxu0 0.0
    %532 = vmatprep.mubr.f32.mxu0 0.0
    %533 = vmatmul.mubr.f32.gmra.mrb[0].mxu0 %v445
    %v534 = vpop.f32.mrb[0].mxu0
    %v535 = vadd.f32 0.0, %v534
    %v536 = vpop.f32.mrb[0].mxu0
    %537 = vmatprep.mubr.f32.mxu0 0.0
    %538 = vmatmul.mubr.f32.gmra.mrb[0].mxu0 %v448
    %v539 = vpop.f32.mrb[0].mxu0
    %v540 = vadd.f32 0.0, %v539
    %v541 = vpop.f32.mrb[0].mxu0
    %542 = vmatprep.mubr.f32.mxu0 0.0
    %543 = vmatmul.mubr.f32.gmra.mrb[0].mxu0 %v451
    %v544 = vpop.f32.mrb[0].mxu0
    %v545 = vadd.f32 0.0, %v544
    %v546 = vpop.f32.mrb[0].mxu0
    %547 = vmatprep.mubr.f32.mxu0 0.0
    %548 = vmatmul.mubr.f32.gmra.mrb[0].mxu0 %v454
    %v549 = vpop.f32.mrb[0].mxu0
    %v550 = vadd.f32 0.0, %v549
    %v551 = vpop.f32.mrb[0].mxu0
    %552 = vmatprep.mubr.f32.mxu0 0.0
    %553 = vmatmul.mubr.f32.gmra.mrb[0].mxu0 %v457
    %v554 = vpop.f32.mrb[0].mxu0
    %v555 = vadd.f32 0.0, %v554
    %v556 = vpop.f32.mrb[0].mxu0
    %557 = vmatprep.mubr.f32.mxu0 0.0
    %558 = vmatmul.mubr.f32.gmra.mrb[0].mxu0 %v460
    %v559 = vpop.f32.mrb[0].mxu0
    %v560 = vadd.f32 0.0, %v559
    %v561 = vpop.f32.mrb[0].mxu0
    %562 = vmatprep.mubr.f32.mxu0 0.0
    %563 = vmatmul.mubr.f32.gmra.mrb[0].mxu0 %v463
    %v564 = vpop.f32.mrb[0].mxu0
    %v565 = vadd.f32 0.0, %v564
    %v566 = vpop.f32.mrb[0].mxu0
    %567 = vmatprep.mubr.f32.mxu0 0.0
    %568 = vmatmul.mubr.f32.gmra.mrb[0].mxu0 %v466
    %v569 = vpop.f32.mrb[0].mxu0
    %v570 = vadd.f32 0.0, %v569
    %v571 = vpop.f32.mrb[0].mxu0
    %572 = vdwg.mxu0
    %v573 = vmul.f32 %v535, %v25
    %v574 = vmul.f32 %v540, %v26
    %v575 = vmul.f32 %v545, %v27
    %v576 = vmul.f32 %v550, %v28
    %v577 = vmul.f32 %v555, %v29
    %v578 = vmul.f32 %v560, %v30
    %v579 = vmul.f32 %v565, %v31
    %v580 = vmul.f32 %v570, %v32
    %v581 = vadd.f32 %v573, %v575
    %v582 = vadd.f32 %v574, %v576
    %v583 = vadd.f32 %v581, %v577
    %v584 = vadd.f32 %v582, %v578
    %v585 = vadd.f32 %v583, %v579
    %v586 = vadd.f32 %v584, %v580
    %v587 = vlaneseq
    %v588 = vshrl.u32 %v587, 7
    %v589 = vsub.s32 0, %v588
    %v590 = vrot.slane %v44, %v589
    %v592 = vsel %vm45, %v585, 0
    %v595 = vsel %vm45, %v586, 0
    %597 = vmatprep.subr.mxu0 0.0
    %598 = vmatpush1.msra.mxu0 %v40
    %599 = vmatprep.subr.mxu0 0.0
    %600 = vmatpush1.msra.mxu0 %v41
    %601 = vmatprep.subr.mxu0 0.0
    %602 = vmatpush1.msra.mxu0 %v42
    %603 = vmatprep.subr.mxu0 0.0
    %604 = vmatpush1.msra.mxu0 %v43
    %605 = vmatprep.subr.mxu0 0.0
    %606 = vmatpush1.msra.mxu0 0.0
    %607 = vmatprep.subr.mxu0 0.0
    %608 = vmatpush1.msra.mxu0 0.0
    %609 = vmatprep.subr.mxu0 0.0
    %610 = vmatpush1.msra.mxu0 0.0
    %611 = vmatprep.subr.mxu0 0.0
    %612 = vmatpush1.msra.mxu0 0.0
    %613 = vmatprep.subr.mxu0 0.0
    %614 = vmatpush1.msra.mxu0 0.0
    %615 = vmatprep.subr.mxu0 0.0
    %616 = vmatpush1.msra.mxu0 0.0
    %617 = vmatprep.subr.mxu0 0.0
    %618 = vmatpush1.msra.mxu0 0.0
    %619 = vmatprep.subr.mxu0 0.0
    %620 = vmatpush1.msra.mxu0 0.0
    %621 = vmatprep.subr.mxu0 0.0
    %622 = vmatpush1.msra.mxu0 0.0
    %623 = vmatprep.subr.mxu0 0.0
    %624 = vmatpush1.msra.mxu0 0.0
    %625 = vmatprep.subr.mxu0 0.0
    %626 = vmatpush1.msra.mxu0 0.0
    %627 = vmatprep.subr.mxu0 0.0
    %628 = vmatpush1.msra.mxu0 0.0
    %629 = vmatprep.subr.mxu0 0.0
    %630 = vmatpush1.msra.mxu0 0.0
    %631 = vmatprep.subr.mxu0 0.0
    %632 = vmatpush1.msra.mxu0 0.0
    %633 = vmatprep.subr.mxu0 0.0
    %634 = vmatpush1.msra.mxu0 0.0
    %635 = vmatprep.subr.mxu0 0.0
    %636 = vmatpush1.msra.mxu0 0.0
    %637 = vmatprep.subr.mxu0 0.0
    %638 = vmatpush1.msra.mxu0 0.0
    %639 = vmatprep.subr.mxu0 0.0
    %640 = vmatpush1.msra.mxu0 0.0
    %641 = vmatprep.subr.mxu0 0.0
    %642 = vmatpush1.msra.mxu0 0.0
    %643 = vmatprep.subr.mxu0 0.0
    %644 = vmatpush1.msra.mxu0 0.0
    %645 = vmatprep.subr.mxu0 0.0
    %646 = vmatpush1.msra.mxu0 0.0
    %647 = vmatprep.subr.mxu0 0.0
    %648 = vmatpush1.msra.mxu0 0.0
    %649 = vmatprep.subr.mxu0 0.0
    %650 = vmatpush1.msra.mxu0 0.0
    %651 = vmatprep.subr.mxu0 0.0
    %652 = vmatpush1.msra.mxu0 0.0
    %653 = vmatprep.subr.mxu0 0.0
    %654 = vmatpush1.msra.mxu0 0.0
    %655 = vmatprep.subr.mxu0 0.0
    %656 = vmatpush1.msra.mxu0 0.0
    %657 = vmatprep.subr.mxu0 0.0
    %658 = vmatpush1.msra.mxu0 0.0
    %659 = vmatprep.subr.mxu0 0.0
    %660 = vmatpush1.msra.mxu0 0.0
    %661 = vmatprep.mubr.f32.mxu0 0.0
    %662 = vmatmul.mubr.f32.gmra.mrb[0].mxu0 %v592
    %v663 = vpop.f32.mrb[0].mxu0
    %v664 = vadd.f32 %v590, %v663
    %v665 = vpop.f32.mrb[0].mxu0
    %666 = vmatprep.mubr.f32.mxu0 0.0
    %667 = vmatmul.mubr.f32.gmra.mrb[0].mxu0 %v595
    %v668 = vpop.f32.mrb[0].mxu0
    %v669 = vadd.f32 %v590, %v668
    %v670 = vpop.f32.mrb[0].mxu0
    %671 = vdwg.mxu0
    %v672 = vadd.f32 %v23, %v664
    %v673 = vadd.f32 %v24, %v669
    %v674 = vld [vmem:[%s4 + $0xd] sm:$0x1]
    %v675 = vld [vmem:[%s4 + $0x13] sm:$0x1]
    %v676 = vld [vmem:[%s3 + $0x20] sm:$0xff]
    %v677 = vld [vmem:[%s3 + $0x28] sm:$0xff]
    %v678 = vld [vmem:[%s3 + $0x30] sm:$0xff]
    %v679 = vld [vmem:[%s3 + $0x38] sm:$0xff]
    %v680 = vld [vmem:[%s4 + $0x1] sm:$0x1]
    %v681 = vld [vmem:[%s3 + $0xe0] sm:$0xff]
    %v682 = vld [vmem:[%s3 + $0xe8] sm:$0xff]
    %v683 = vld [vmem:[%s3 + $0xf0] sm:$0xff]
    %v684 = vld [vmem:[%s3 + $0xf8] sm:$0xff]
    %v685 = vld [vmem:[%s4 + $0x7] sm:$0x1]
    %v686 = vsel %vm45, %v672, 0.0
    %687 = vadd.xlane.f32.xlu0 %v686
    %v688 = vpop.xlane.xlu0 %687
    %v689 = vsel %vm45, %v673, 0.0
    %690 = vadd.xlane.f32.xlu0 %v689
    %v691 = vpop.xlane.xlu0 %690
    %v692 = vsel %vm45, %v21, 0.0
    %693 = vadd.xlane.f32.xlu0 %v692
    %v694 = vpop.xlane.xlu0 %693
    %v695 = vsel %vm45, %v22, 0.0
    %696 = vadd.xlane.f32.xlu0 %v695
    %v697 = vpop.xlane.xlu0 %696
    %v698 = vmul.f32 %v688, %v52
    %v699 = vmul.f32 %v691, %v52
    %v700 = vmul.f32 %v694, %v52
    %v701 = vmul.f32 %v697, %v52
    %v702 = vsub.f32 %v672, %v698
    %v703 = vsub.f32 %v673, %v699
    %v704 = vsub.f32 %v21, %v700
    %v705 = vsub.f32 %v22, %v701
    %v706 = vmul.f32 %v702, %v702
    %v707 = vmul.f32 %v703, %v703
    %v708 = vmul.f32 %v704, %v704
    %v709 = vmul.f32 %v705, %v705
    %v710 = vsel %vm45, %v706, 0.0
    %711 = vadd.xlane.f32.xlu0 %v710
    %v712 = vpop.xlane.xlu0 %711
    %v713 = vsel %vm45, %v707, 0.0
    %714 = vadd.xlane.f32.xlu0 %v713
    %v715 = vpop.xlane.xlu0 %714
    %v716 = vsel %vm45, %v708, 0.0
    %717 = vadd.xlane.f32.xlu0 %v716
    %v718 = vpop.xlane.xlu0 %717
    %v719 = vsel %vm45, %v709, 0.0
    %720 = vadd.xlane.f32.xlu0 %v719
    %v721 = vpop.xlane.xlu0 %720
    %v722 = vmul.f32 %v712, %v52
    %v723 = vmul.f32 %v715, %v52
    %v724 = vmul.f32 %v718, %v52
    %v725 = vmul.f32 %v721, %v52
    %v726 = vadd.f32 %v722, 1e-05
    %v727 = vadd.f32 %v723, 1e-05
    %v728 = vadd.f32 %v724, 1e-05
    %v729 = vadd.f32 %v725, 1e-05
    %v730 = vrsqrt.pop %v726
    %v731 = vrsqrt.pop %v727
    %v732 = vrsqrt.pop %v728
    %v733 = vrsqrt.pop %v729
    %v734 = vmul.f32 %v702, %v730
    %v735 = vmul.f32 %v703, %v731
    %v736 = vmul.f32 %v704, %v732
    %v737 = vmul.f32 %v705, %v733
    %v738 = vlaneseq
    %v739 = vshrl.u32 %v738, 7
    %v740 = vsub.s32 0, %v739
    %v741 = vrot.slane %v674, %v740
    %v742 = vmul.f32 %v734, %v741
    %v743 = vmul.f32 %v735, %v741
    %v744 = vmul.f32 %v736, %v741
    %v745 = vmul.f32 %v737, %v741
    %v746 = vlaneseq
    %v747 = vshrl.u32 %v746, 7
    %v748 = vsub.s32 0, %v747
    %v749 = vrot.slane %v675, %v748
    %v750 = vadd.f32 %v742, %v749
    %v751 = vadd.f32 %v743, %v749
    %v752 = vadd.f32 %v744, %v749
    %v753 = vadd.f32 %v745, %v749
    %v754 = vlaneseq
    %v755 = vshrl.u32 %v754, 7
    %v756 = vsub.s32 0, %v755
    %v757 = vrot.slane %v680, %v756
    %v759 = vsel %vm45, %v750, 0
    %v762 = vsel %vm45, %v751, 0
    %v765 = vsel %vm45, %v752, 0
    %v768 = vsel %vm45, %v753, 0
    %770 = vmatprep.subr.mxu0 0.0
    %771 = vmatpush1.msra.mxu0 %v676
    %772 = vmatprep.subr.mxu0 0.0
    %773 = vmatpush1.msra.mxu0 %v677
    %774 = vmatprep.subr.mxu0 0.0
    %775 = vmatpush1.msra.mxu0 %v678
    %776 = vmatprep.subr.mxu0 0.0
    %777 = vmatpush1.msra.mxu0 %v679
    %778 = vmatprep.subr.mxu0 0.0
    %779 = vmatpush1.msra.mxu0 0.0
    %780 = vmatprep.subr.mxu0 0.0
    %781 = vmatpush1.msra.mxu0 0.0
    %782 = vmatprep.subr.mxu0 0.0
    %783 = vmatpush1.msra.mxu0 0.0
    %784 = vmatprep.subr.mxu0 0.0
    %785 = vmatpush1.msra.mxu0 0.0
    %786 = vmatprep.subr.mxu0 0.0
    %787 = vmatpush1.msra.mxu0 0.0
    %788 = vmatprep.subr.mxu0 0.0
    %789 = vmatpush1.msra.mxu0 0.0
    %790 = vmatprep.subr.mxu0 0.0
    %791 = vmatpush1.msra.mxu0 0.0
    %792 = vmatprep.subr.mxu0 0.0
    %793 = vmatpush1.msra.mxu0 0.0
    %794 = vmatprep.subr.mxu0 0.0
    %795 = vmatpush1.msra.mxu0 0.0
    %796 = vmatprep.subr.mxu0 0.0
    %797 = vmatpush1.msra.mxu0 0.0
    %798 = vmatprep.subr.mxu0 0.0
    %799 = vmatpush1.msra.mxu0 0.0
    %800 = vmatprep.subr.mxu0 0.0
    %801 = vmatpush1.msra.mxu0 0.0
    %802 = vmatprep.subr.mxu0 0.0
    %803 = vmatpush1.msra.mxu0 0.0
    %804 = vmatprep.subr.mxu0 0.0
    %805 = vmatpush1.msra.mxu0 0.0
    %806 = vmatprep.subr.mxu0 0.0
    %807 = vmatpush1.msra.mxu0 0.0
    %808 = vmatprep.subr.mxu0 0.0
    %809 = vmatpush1.msra.mxu0 0.0
    %810 = vmatprep.subr.mxu0 0.0
    %811 = vmatpush1.msra.mxu0 0.0
    %812 = vmatprep.subr.mxu0 0.0
    %813 = vmatpush1.msra.mxu0 0.0
    %814 = vmatprep.subr.mxu0 0.0
    %815 = vmatpush1.msra.mxu0 0.0
    %816 = vmatprep.subr.mxu0 0.0
    %817 = vmatpush1.msra.mxu0 0.0
    %818 = vmatprep.subr.mxu0 0.0
    %819 = vmatpush1.msra.mxu0 0.0
    %820 = vmatprep.subr.mxu0 0.0
    %821 = vmatpush1.msra.mxu0 0.0
    %822 = vmatprep.subr.mxu0 0.0
    %823 = vmatpush1.msra.mxu0 0.0
    %824 = vmatprep.subr.mxu0 0.0
    %825 = vmatpush1.msra.mxu0 0.0
    %826 = vmatprep.subr.mxu0 0.0
    %827 = vmatpush1.msra.mxu0 0.0
    %828 = vmatprep.subr.mxu0 0.0
    %829 = vmatpush1.msra.mxu0 0.0
    %830 = vmatprep.subr.mxu0 0.0
    %831 = vmatpush1.msra.mxu0 0.0
    %832 = vmatprep.subr.mxu0 0.0
    %833 = vmatpush1.msra.mxu0 0.0
    %834 = vmatprep.mubr.f32.mxu0 0.0
    %835 = vmatmul.mubr.f32.gmra.mrb[0].mxu0 %v759
    %v836 = vpop.f32.mrb[0].mxu0
    %v837 = vadd.f32 %v757, %v836
    %v838 = vpop.f32.mrb[0].mxu0
    %839 = vmatprep.mubr.f32.mxu0 0.0
    %840 = vmatmul.mubr.f32.gmra.mrb[0].mxu0 %v762
    %v841 = vpop.f32.mrb[0].mxu0
    %v842 = vadd.f32 %v757, %v841
    %v843 = vpop.f32.mrb[0].mxu0
    %844 = vmatprep.mubr.f32.mxu0 0.0
    %845 = vmatmul.mubr.f32.gmra.mrb[0].mxu0 %v765
    %v846 = vpop.f32.mrb[0].mxu0
    %v847 = vadd.f32 %v757, %v846
    %v848 = vpop.f32.mrb[0].mxu0
    %849 = vmatprep.mubr.f32.mxu0 0.0
    %850 = vmatmul.mubr.f32.gmra.mrb[0].mxu0 %v768
    %v851 = vpop.f32.mrb[0].mxu0
    %v852 = vadd.f32 %v757, %v851
    %v853 = vpop.f32.mrb[0].mxu0
    %854 = vdwg.mxu0
    %v855 = vmul.f32 %v837, %v25
    %v856 = vmul.f32 %v842, %v26
    %v857 = vmul.f32 %v837, %v27
    %v858 = vmul.f32 %v842, %v28
    %v859 = vmul.f32 %v837, %v29
    %v860 = vmul.f32 %v842, %v30
    %v861 = vmul.f32 %v837, %v31
    %v862 = vmul.f32 %v842, %v32
    %865 = vrot.lane.b32.xlu0 %v847, 96
    %v866 = vpop.permute.xlu0 %865
    %867 = vrot.lane.b32.xlu0 %v852, 96
    %v868 = vpop.permute.xlu0 %867
    %869 = vrot.lane.b32.xlu0 %v25, 80
    %v870 = vpop.permute.xlu0 %869
    %871 = vrot.lane.b32.xlu0 %v26, 80
    %v872 = vpop.permute.xlu0 %871
    %873 = vrot.lane.b32.xlu0 %v27, 80
    %v874 = vpop.permute.xlu0 %873
    %875 = vrot.lane.b32.xlu0 %v28, 80
    %v876 = vpop.permute.xlu0 %875
    %877 = vrot.lane.b32.xlu0 %v29, 80
    %v878 = vpop.permute.xlu0 %877
    %879 = vrot.lane.b32.xlu0 %v30, 80
    %v880 = vpop.permute.xlu0 %879
    %881 = vrot.lane.b32.xlu0 %v31, 80
    %v882 = vpop.permute.xlu0 %881
    %883 = vrot.lane.b32.xlu0 %v32, 80
    %v884 = vpop.permute.xlu0 %883
    %v894 = vsel %vm45, %v855, 0
    %v897 = vsel %vm45, %v856, 0
    %v900 = vsel %vm45, %v857, 0
    %v903 = vsel %vm45, %v858, 0
    %v906 = vsel %vm45, %v859, 0
    %v909 = vsel %vm45, %v860, 0
    %v912 = vsel %vm45, %v861, 0
    %v915 = vsel %vm45, %v862, 0
    %v917 = vsel %vm45, %v866, 0
    %v919 = vsel %vm45, %v868, 0
    %921 = vmatprep.subr.mxu0 0.0
    %922 = vmatpush1.xpose.msra.mxu0 %v917
    %923 = vmatprep.subr.mxu0 0.0
    %924 = vmatpush1.xpose.msra.mxu0 %v919
    %925 = vmatprep.subr.mxu0 0.0
    %926 = vmatpush1.xpose.msra.mxu0 0.0
    %927 = vmatprep.subr.mxu0 0.0
    %928 = vmatpush1.xpose.msra.mxu0 0.0
    %929 = vmatprep.subr.mxu0 0.0
    %930 = vmatpush1.xpose.msra.mxu0 0.0
    %931 = vmatprep.subr.mxu0 0.0
    %932 = vmatpush1.xpose.msra.mxu0 0.0
    %933 = vmatprep.subr.mxu0 0.0
    %934 = vmatpush1.xpose.msra.mxu0 0.0
    %935 = vmatprep.subr.mxu0 0.0
    %936 = vmatpush1.xpose.msra.mxu0 0.0
    %937 = vmatprep.subr.mxu0 0.0
    %938 = vmatpush1.xpose.msra.mxu0 0.0
    %939 = vmatprep.subr.mxu0 0.0
    %940 = vmatpush1.xpose.msra.mxu0 0.0
    %941 = vmatprep.subr.mxu0 0.0
    %942 = vmatpush1.xpose.msra.mxu0 0.0
    %943 = vmatprep.subr.mxu0 0.0
    %944 = vmatpush1.xpose.msra.mxu0 0.0
    %945 = vmatprep.subr.mxu0 0.0
    %946 = vmatpush1.xpose.msra.mxu0 0.0
    %947 = vmatprep.subr.mxu0 0.0
    %948 = vmatpush1.xpose.msra.mxu0 0.0
    %949 = vmatprep.subr.mxu0 0.0
    %950 = vmatpush1.xpose.msra.mxu0 0.0
    %951 = vmatprep.subr.mxu0 0.0
    %952 = vmatpush1.xpose.msra.mxu0 0.0
    %953 = vmatprep.subr.mxu0 0.0
    %954 = vmatpush1.xpose.msra.mxu0 0.0
    %955 = vmatprep.subr.mxu0 0.0
    %956 = vmatpush1.xpose.msra.mxu0 0.0
    %957 = vmatprep.subr.mxu0 0.0
    %958 = vmatpush1.xpose.msra.mxu0 0.0
    %959 = vmatprep.subr.mxu0 0.0
    %960 = vmatpush1.xpose.msra.mxu0 0.0
    %961 = vmatprep.subr.mxu0 0.0
    %962 = vmatpush1.xpose.msra.mxu0 0.0
    %963 = vmatprep.subr.mxu0 0.0
    %964 = vmatpush1.xpose.msra.mxu0 0.0
    %965 = vmatprep.subr.mxu0 0.0
    %966 = vmatpush1.xpose.msra.mxu0 0.0
    %967 = vmatprep.subr.mxu0 0.0
    %968 = vmatpush1.xpose.msra.mxu0 0.0
    %969 = vmatprep.subr.mxu0 0.0
    %970 = vmatpush1.xpose.msra.mxu0 0.0
    %971 = vmatprep.subr.mxu0 0.0
    %972 = vmatpush1.xpose.msra.mxu0 0.0
    %973 = vmatprep.subr.mxu0 0.0
    %974 = vmatpush1.xpose.msra.mxu0 0.0
    %975 = vmatprep.subr.mxu0 0.0
    %976 = vmatpush1.xpose.msra.mxu0 0.0
    %977 = vmatprep.subr.mxu0 0.0
    %978 = vmatpush1.xpose.msra.mxu0 0.0
    %979 = vmatprep.subr.mxu0 0.0
    %980 = vmatpush1.xpose.msra.mxu0 0.0
    %981 = vmatprep.subr.mxu0 0.0
    %982 = vmatpush1.xpose.msra.mxu0 0.0
    %983 = vmatprep.subr.mxu0 0.0
    %984 = vmatpush1.xpose.msra.mxu0 0.0
    %985 = vmatprep.mubr.f32.mxu0 0.0
    %986 = vmatmul.mubr.f32.gmra.mrb[0].mxu0 %v894
    %v987 = vpop.f32.mrb[0].mxu0
    %v988 = vadd.f32 %v870, %v987
    %v989 = vpop.f32.mrb[0].mxu0
    %990 = vmatprep.mubr.f32.mxu0 0.0
    %991 = vmatmul.mubr.f32.gmra.mrb[0].mxu0 %v897
    %v992 = vpop.f32.mrb[0].mxu0
    %v993 = vadd.f32 %v872, %v992
    %v994 = vpop.f32.mrb[0].mxu0
    %995 = vmatprep.mubr.f32.mxu0 0.0
    %996 = vmatmul.mubr.f32.gmra.mrb[0].mxu0 %v900
    %v997 = vpop.f32.mrb[0].mxu0
    %v998 = vadd.f32 %v874, %v997
    %v999 = vpop.f32.mrb[0].mxu0
    %1000 = vmatprep.mubr.f32.mxu0 0.0
    %1001 = vmatmul.mubr.f32.gmra.mrb[0].mxu0 %v903
    %v1002 = vpop.f32.mrb[0].mxu0
    %v1003 = vadd.f32 %v876, %v1002
    %v1004 = vpop.f32.mrb[0].mxu0
    %1005 = vmatprep.mubr.f32.mxu0 0.0
    %1006 = vmatmul.mubr.f32.gmra.mrb[0].mxu0 %v906
    %v1007 = vpop.f32.mrb[0].mxu0
    %v1008 = vadd.f32 %v878, %v1007
    %v1009 = vpop.f32.mrb[0].mxu0
    %1010 = vmatprep.mubr.f32.mxu0 0.0
    %1011 = vmatmul.mubr.f32.gmra.mrb[0].mxu0 %v909
    %v1012 = vpop.f32.mrb[0].mxu0
    %v1013 = vadd.f32 %v880, %v1012
    %v1014 = vpop.f32.mrb[0].mxu0
    %1015 = vmatprep.mubr.f32.mxu0 0.0
    %1016 = vmatmul.mubr.f32.gmra.mrb[0].mxu0 %v912
    %v1017 = vpop.f32.mrb[0].mxu0
    %v1018 = vadd.f32 %v882, %v1017
    %v1019 = vpop.f32.mrb[0].mxu0
    %1020 = vmatprep.mubr.f32.mxu0 0.0
    %1021 = vmatmul.mubr.f32.gmra.mrb[0].mxu0 %v915
    %v1022 = vpop.f32.mrb[0].mxu0
    %v1023 = vadd.f32 %v884, %v1022
    %v1024 = vpop.f32.mrb[0].mxu0
    %1025 = vdwg.mxu0
    %v1026 = vsel %vm349, %v988, -inf
    %1027 = vmax.xlane.f32.xlu0 %v1026
    %v1028 = vpop.xlane.xlu0 %1027
    %v1029 = vsel %vm349, %v993, -inf
    %1030 = vmax.xlane.f32.xlu0 %v1029
    %v1031 = vpop.xlane.xlu0 %1030
    %v1032 = vsel %vm349, %v998, -inf
    %1033 = vmax.xlane.f32.xlu0 %v1032
    %v1034 = vpop.xlane.xlu0 %1033
    %v1035 = vsel %vm349, %v1003, -inf
    %1036 = vmax.xlane.f32.xlu0 %v1035
    %v1037 = vpop.xlane.xlu0 %1036
    %v1038 = vsel %vm349, %v1008, -inf
    %1039 = vmax.xlane.f32.xlu0 %v1038
    %v1040 = vpop.xlane.xlu0 %1039
    %v1041 = vsel %vm349, %v1013, -inf
    %1042 = vmax.xlane.f32.xlu0 %v1041
    %v1043 = vpop.xlane.xlu0 %1042
    %v1044 = vsel %vm349, %v1018, -inf
    %1045 = vmax.xlane.f32.xlu0 %v1044
    %v1046 = vpop.xlane.xlu0 %1045
    %v1047 = vsel %vm349, %v1023, -inf
    %1048 = vmax.xlane.f32.xlu0 %v1047
    %v1049 = vpop.xlane.xlu0 %1048
    %v1050 = vsub.f32 %v988, %v1028
    %v1051 = vsub.f32 %v993, %v1031
    %v1052 = vsub.f32 %v998, %v1034
    %v1053 = vsub.f32 %v1003, %v1037
    %v1054 = vsub.f32 %v1008, %v1040
    %v1055 = vsub.f32 %v1013, %v1043
    %v1056 = vsub.f32 %v1018, %v1046
    %v1057 = vsub.f32 %v1023, %v1049
    %v1058 = vmul.f32 %v1050, 1.442695
    %v1059 = vpow.pop %v1058
    %v1060 = vmul.f32 %v1051, 1.442695
    %v1061 = vpow.pop %v1060
    %v1062 = vmul.f32 %v1052, 1.442695
    %v1063 = vpow.pop %v1062
    %v1064 = vmul.f32 %v1053, 1.442695
    %v1065 = vpow.pop %v1064
    %v1066 = vmul.f32 %v1054, 1.442695
    %v1067 = vpow.pop %v1066
    %v1068 = vmul.f32 %v1055, 1.442695
    %v1069 = vpow.pop %v1068
    %v1070 = vmul.f32 %v1056, 1.442695
    %v1071 = vpow.pop %v1070
    %v1072 = vmul.f32 %v1057, 1.442695
    %v1073 = vpow.pop %v1072
    %v1074 = vsel %vm349, %v1059, 0.0
    %1075 = vadd.xlane.f32.xlu0 %v1074
    %v1076 = vpop.xlane.xlu0 %1075
    %v1077 = vsel %vm349, %v1061, 0.0
    %1078 = vadd.xlane.f32.xlu0 %v1077
    %v1079 = vpop.xlane.xlu0 %1078
    %v1080 = vsel %vm349, %v1063, 0.0
    %1081 = vadd.xlane.f32.xlu0 %v1080
    %v1082 = vpop.xlane.xlu0 %1081
    %v1083 = vsel %vm349, %v1065, 0.0
    %1084 = vadd.xlane.f32.xlu0 %v1083
    %v1085 = vpop.xlane.xlu0 %1084
    %v1086 = vsel %vm349, %v1067, 0.0
    %1087 = vadd.xlane.f32.xlu0 %v1086
    %v1088 = vpop.xlane.xlu0 %1087
    %v1089 = vsel %vm349, %v1069, 0.0
    %1090 = vadd.xlane.f32.xlu0 %v1089
    %v1091 = vpop.xlane.xlu0 %1090
    %v1092 = vsel %vm349, %v1071, 0.0
    %1093 = vadd.xlane.f32.xlu0 %v1092
    %v1094 = vpop.xlane.xlu0 %1093
    %v1095 = vsel %vm349, %v1073, 0.0
    %1096 = vadd.xlane.f32.xlu0 %v1095
    %v1097 = vpop.xlane.xlu0 %1096
    %v1098 = vrcp.pop %v1076
    %v1099 = vmul.f32 %v1059, %v1098
    %v1100 = vrcp.pop %v1079
    %v1101 = vmul.f32 %v1061, %v1100
    %v1102 = vrcp.pop %v1082
    %v1103 = vmul.f32 %v1063, %v1102
    %v1104 = vrcp.pop %v1085
    %v1105 = vmul.f32 %v1065, %v1104
    %v1106 = vrcp.pop %v1088
    %v1107 = vmul.f32 %v1067, %v1106
    %v1108 = vrcp.pop %v1091
    %v1109 = vmul.f32 %v1069, %v1108
    %v1110 = vrcp.pop %v1094
    %v1111 = vmul.f32 %v1071, %v1110
    %v1112 = vrcp.pop %v1097
    %v1113 = vmul.f32 %v1073, %v1112
    %1114 = vrot.lane.b32.xlu0 %v847, 64
    %v1115 = vpop.permute.xlu0 %1114
    %1116 = vrot.lane.b32.xlu0 %v852, 64
    %v1117 = vpop.permute.xlu0 %1116
    %v1121 = vsel %vm349, %v1099, 0
    %v1124 = vsel %vm349, %v1101, 0
    %v1127 = vsel %vm349, %v1103, 0
    %v1130 = vsel %vm349, %v1105, 0
    %v1133 = vsel %vm349, %v1107, 0
    %v1136 = vsel %vm349, %v1109, 0
    %v1139 = vsel %vm349, %v1111, 0
    %v1142 = vsel %vm349, %v1113, 0
    %1144 = vmatprep.subr.mxu0 0.0
    %1145 = vmatpush1.msra.mxu0 %v1115
    %1146 = vmatprep.subr.mxu0 0.0
    %1147 = vmatpush1.msra.mxu0 %v1117
    %1148 = vmatprep.subr.mxu0 0.0
    %1149 = vmatpush1.msra.mxu0 0.0
    %1150 = vmatprep.subr.mxu0 0.0
    %1151 = vmatpush1.msra.mxu0 0.0
    %1152 = vmatprep.subr.mxu0 0.0
    %1153 = vmatpush1.msra.mxu0 0.0
    %1154 = vmatprep.subr.mxu0 0.0
    %1155 = vmatpush1.msra.mxu0 0.0
    %1156 = vmatprep.subr.mxu0 0.0
    %1157 = vmatpush1.msra.mxu0 0.0
    %1158 = vmatprep.subr.mxu0 0.0
    %1159 = vmatpush1.msra.mxu0 0.0
    %1160 = vmatprep.subr.mxu0 0.0
    %1161 = vmatpush1.msra.mxu0 0.0
    %1162 = vmatprep.subr.mxu0 0.0
    %1163 = vmatpush1.msra.mxu0 0.0
    %1164 = vmatprep.subr.mxu0 0.0
    %1165 = vmatpush1.msra.mxu0 0.0
    %1166 = vmatprep.subr.mxu0 0.0
    %1167 = vmatpush1.msra.mxu0 0.0
    %1168 = vmatprep.subr.mxu0 0.0
    %1169 = vmatpush1.msra.mxu0 0.0
    %1170 = vmatprep.subr.mxu0 0.0
    %1171 = vmatpush1.msra.mxu0 0.0
    %1172 = vmatprep.subr.mxu0 0.0
    %1173 = vmatpush1.msra.mxu0 0.0
    %1174 = vmatprep.subr.mxu0 0.0
    %1175 = vmatpush1.msra.mxu0 0.0
    %1176 = vmatprep.subr.mxu0 0.0
    %1177 = vmatpush1.msra.mxu0 0.0
    %1178 = vmatprep.subr.mxu0 0.0
    %1179 = vmatpush1.msra.mxu0 0.0
    %1180 = vmatprep.subr.mxu0 0.0
    %1181 = vmatpush1.msra.mxu0 0.0
    %1182 = vmatprep.subr.mxu0 0.0
    %1183 = vmatpush1.msra.mxu0 0.0
    %1184 = vmatprep.subr.mxu0 0.0
    %1185 = vmatpush1.msra.mxu0 0.0
    %1186 = vmatprep.subr.mxu0 0.0
    %1187 = vmatpush1.msra.mxu0 0.0
    %1188 = vmatprep.subr.mxu0 0.0
    %1189 = vmatpush1.msra.mxu0 0.0
    %1190 = vmatprep.subr.mxu0 0.0
    %1191 = vmatpush1.msra.mxu0 0.0
    %1192 = vmatprep.subr.mxu0 0.0
    %1193 = vmatpush1.msra.mxu0 0.0
    %1194 = vmatprep.subr.mxu0 0.0
    %1195 = vmatpush1.msra.mxu0 0.0
    %1196 = vmatprep.subr.mxu0 0.0
    %1197 = vmatpush1.msra.mxu0 0.0
    %1198 = vmatprep.subr.mxu0 0.0
    %1199 = vmatpush1.msra.mxu0 0.0
    %1200 = vmatprep.subr.mxu0 0.0
    %1201 = vmatpush1.msra.mxu0 0.0
    %1202 = vmatprep.subr.mxu0 0.0
    %1203 = vmatpush1.msra.mxu0 0.0
    %1204 = vmatprep.subr.mxu0 0.0
    %1205 = vmatpush1.msra.mxu0 0.0
    %1206 = vmatprep.subr.mxu0 0.0
    %1207 = vmatpush1.msra.mxu0 0.0
    %1208 = vmatprep.mubr.f32.mxu0 0.0
    %1209 = vmatmul.mubr.f32.gmra.mrb[0].mxu0 %v1121
    %v1210 = vpop.f32.mrb[0].mxu0
    %v1211 = vadd.f32 0.0, %v1210
    %v1212 = vpop.f32.mrb[0].mxu0
    %1213 = vmatprep.mubr.f32.mxu0 0.0
    %1214 = vmatmul.mubr.f32.gmra.mrb[0].mxu0 %v1124
    %v1215 = vpop.f32.mrb[0].mxu0
    %v1216 = vadd.f32 0.0, %v1215
    %v1217 = vpop.f32.mrb[0].mxu0
    %1218 = vmatprep.mubr.f32.mxu0 0.0
    %1219 = vmatmul.mubr.f32.gmra.mrb[0].mxu0 %v1127
    %v1220 = vpop.f32.mrb[0].mxu0
    %v1221 = vadd.f32 0.0, %v1220
    %v1222 = vpop.f32.mrb[0].mxu0
    %1223 = vmatprep.mubr.f32.mxu0 0.0
    %1224 = vmatmul.mubr.f32.gmra.mrb[0].mxu0 %v1130
    %v1225 = vpop.f32.mrb[0].mxu0
    %v1226 = vadd.f32 0.0, %v1225
    %v1227 = vpop.f32.mrb[0].mxu0
    %1228 = vmatprep.mubr.f32.mxu0 0.0
    %1229 = vmatmul.mubr.f32.gmra.mrb[0].mxu0 %v1133
    %v1230 = vpop.f32.mrb[0].mxu0
    %v1231 = vadd.f32 0.0, %v1230
    %v1232 = vpop.f32.mrb[0].mxu0
    %1233 = vmatprep.mubr.f32.mxu0 0.0
    %1234 = vmatmul.mubr.f32.gmra.mrb[0].mxu0 %v1136
    %v1235 = vpop.f32.mrb[0].mxu0
    %v1236 = vadd.f32 0.0, %v1235
    %v1237 = vpop.f32.mrb[0].mxu0
    %1238 = vmatprep.mubr.f32.mxu0 0.0
    %1239 = vmatmul.mubr.f32.gmra.mrb[0].mxu0 %v1139
    %v1240 = vpop.f32.mrb[0].mxu0
    %v1241 = vadd.f32 0.0, %v1240
    %v1242 = vpop.f32.mrb[0].mxu0
    %1243 = vmatprep.mubr.f32.mxu0 0.0
    %1244 = vmatmul.mubr.f32.gmra.mrb[0].mxu0 %v1142
    %v1245 = vpop.f32.mrb[0].mxu0
    %v1246 = vadd.f32 0.0, %v1245
    %v1247 = vpop.f32.mrb[0].mxu0
    %1248 = vdwg.mxu0
    %v1249 = vmul.f32 %v1211, %v25
    %v1250 = vmul.f32 %v1216, %v26
    %v1251 = vmul.f32 %v1221, %v27
    %v1252 = vmul.f32 %v1226, %v28
    %v1253 = vmul.f32 %v1231, %v29
    %v1254 = vmul.f32 %v1236, %v30
    %v1255 = vmul.f32 %v1241, %v31
    %v1256 = vmul.f32 %v1246, %v32
    %v1257 = vadd.f32 %v1249, %v1251
    %v1258 = vadd.f32 %v1250, %v1252
    %v1259 = vadd.f32 %v1257, %v1253
    %v1260 = vadd.f32 %v1258, %v1254
    %v1261 = vadd.f32 %v1259, %v1255
    %v1262 = vadd.f32 %v1260, %v1256
    %v1263 = vlaneseq
    %v1264 = vshrl.u32 %v1263, 7
    %v1265 = vsub.s32 0, %v1264
    %v1266 = vrot.slane %v685, %v1265
    %v1268 = vsel %vm45, %v1261, 0
    %v1271 = vsel %vm45, %v1262, 0
    %1273 = vmatprep.subr.mxu0 0.0
    %1274 = vmatpush1.msra.mxu0 %v681
    %1275 = vmatprep.subr.mxu0 0.0
    %1276 = vmatpush1.msra.mxu0 %v682
    %1277 = vmatprep.subr.mxu0 0.0
    %1278 = vmatpush1.msra.mxu0 %v683
    %1279 = vmatprep.subr.mxu0 0.0
    %1280 = vmatpush1.msra.mxu0 %v684
    %1281 = vmatprep.subr.mxu0 0.0
    %1282 = vmatpush1.msra.mxu0 0.0
    %1283 = vmatprep.subr.mxu0 0.0
    %1284 = vmatpush1.msra.mxu0 0.0
    %1285 = vmatprep.subr.mxu0 0.0
    %1286 = vmatpush1.msra.mxu0 0.0
    %1287 = vmatprep.subr.mxu0 0.0
    %1288 = vmatpush1.msra.mxu0 0.0
    %1289 = vmatprep.subr.mxu0 0.0
    %1290 = vmatpush1.msra.mxu0 0.0
    %1291 = vmatprep.subr.mxu0 0.0
    %1292 = vmatpush1.msra.mxu0 0.0
    %1293 = vmatprep.subr.mxu0 0.0
    %1294 = vmatpush1.msra.mxu0 0.0
    %1295 = vmatprep.subr.mxu0 0.0
    %1296 = vmatpush1.msra.mxu0 0.0
    %1297 = vmatprep.subr.mxu0 0.0
    %1298 = vmatpush1.msra.mxu0 0.0
    %1299 = vmatprep.subr.mxu0 0.0
    %1300 = vmatpush1.msra.mxu0 0.0
    %1301 = vmatprep.subr.mxu0 0.0
    %1302 = vmatpush1.msra.mxu0 0.0
    %1303 = vmatprep.subr.mxu0 0.0
    %1304 = vmatpush1.msra.mxu0 0.0
    %1305 = vmatprep.subr.mxu0 0.0
    %1306 = vmatpush1.msra.mxu0 0.0
    %1307 = vmatprep.subr.mxu0 0.0
    %1308 = vmatpush1.msra.mxu0 0.0
    %1309 = vmatprep.subr.mxu0 0.0
    %1310 = vmatpush1.msra.mxu0 0.0
    %1311 = vmatprep.subr.mxu0 0.0
    %1312 = vmatpush1.msra.mxu0 0.0
    %1313 = vmatprep.subr.mxu0 0.0
    %1314 = vmatpush1.msra.mxu0 0.0
    %1315 = vmatprep.subr.mxu0 0.0
    %1316 = vmatpush1.msra.mxu0 0.0
    %1317 = vmatprep.subr.mxu0 0.0
    %1318 = vmatpush1.msra.mxu0 0.0
    %1319 = vmatprep.subr.mxu0 0.0
    %1320 = vmatpush1.msra.mxu0 0.0
    %1321 = vmatprep.subr.mxu0 0.0
    %1322 = vmatpush1.msra.mxu0 0.0
    %1323 = vmatprep.subr.mxu0 0.0
    %1324 = vmatpush1.msra.mxu0 0.0
    %1325 = vmatprep.subr.mxu0 0.0
    %1326 = vmatpush1.msra.mxu0 0.0
    %1327 = vmatprep.subr.mxu0 0.0
    %1328 = vmatpush1.msra.mxu0 0.0
    %1329 = vmatprep.subr.mxu0 0.0
    %1330 = vmatpush1.msra.mxu0 0.0
    %1331 = vmatprep.subr.mxu0 0.0
    %1332 = vmatpush1.msra.mxu0 0.0
    %1333 = vmatprep.subr.mxu0 0.0
    %1334 = vmatpush1.msra.mxu0 0.0
    %1335 = vmatprep.subr.mxu0 0.0
    %1336 = vmatpush1.msra.mxu0 0.0
    %1337 = vmatprep.mubr.f32.mxu0 0.0
    %1338 = vmatmul.mubr.f32.gmra.mrb[0].mxu0 %v1268
    %v1339 = vpop.f32.mrb[0].mxu0
    %v1340 = vadd.f32 %v1266, %v1339
    %v1341 = vpop.f32.mrb[0].mxu0
    %1342 = vmatprep.mubr.f32.mxu0 0.0
    %1343 = vmatmul.mubr.f32.gmra.mrb[0].mxu0 %v1271
    %v1344 = vpop.f32.mrb[0].mxu0
    %v1345 = vadd.f32 %v1266, %v1344
    %v1346 = vpop.f32.mrb[0].mxu0
    %1347 = vdwg.mxu0
    %v1348 = vadd.f32 %v672, %v1340
    %v1349 = vadd.f32 %v673, %v1345
    %v1350 = vld [vmem:[%s4 + $0x1e] sm:$0x1]
    %v1351 = vld [vmem:[%s4 + $0x21] sm:$0x1]
    %v1352 = vld [vmem:[%s3 + $0x180] sm:$0xff]
    %v1353 = vld [vmem:[%s3 + $0x188] sm:$0xff]
    %v1354 = vld [vmem:[%s3 + $0x190] sm:$0xff]
    %v1355 = vld [vmem:[%s3 + $0x198] sm:$0xff]
    %v1356 = vld [vmem:[%s4 + $0x18] sm:$0x1]
    %v1357 = vld [vmem:[%s3 + $0x1e0] sm:$0xff]
    %v1358 = vld [vmem:[%s3 + $0x1e8] sm:$0xff]
    %v1359 = vld [vmem:[%s3 + $0x1f0] sm:$0xff]
    %v1360 = vld [vmem:[%s3 + $0x1f8] sm:$0xff]
    %v1361 = vld [vmem:[%s3 + $0x200] sm:$0xff]
    %v1362 = vld [vmem:[%s3 + $0x208] sm:$0xff]
    %v1363 = vld [vmem:[%s3 + $0x210] sm:$0xff]
    %v1364 = vld [vmem:[%s3 + $0x218] sm:$0xff]
    %v1365 = vld [vmem:[%s4 + $0x1b] sm:$0x1]
    %v1366 = vsel %vm45, %v1348, 0.0
    %1367 = vadd.xlane.f32.xlu0 %v1366
    %v1368 = vpop.xlane.xlu0 %1367
    %v1369 = vsel %vm45, %v1349, 0.0
    %1370 = vadd.xlane.f32.xlu0 %v1369
    %v1371 = vpop.xlane.xlu0 %1370
    %v1372 = vmul.f32 %v1368, %v52
    %v1373 = vmul.f32 %v1371, %v52
    %v1374 = vsub.f32 %v1348, %v1372
    %v1375 = vsub.f32 %v1349, %v1373
    %v1376 = vmul.f32 %v1374, %v1374
    %v1377 = vmul.f32 %v1375, %v1375
    %v1378 = vsel %vm45, %v1376, 0.0
    %1379 = vadd.xlane.f32.xlu0 %v1378
    %v1380 = vpop.xlane.xlu0 %1379
    %v1381 = vsel %vm45, %v1377, 0.0
    %1382 = vadd.xlane.f32.xlu0 %v1381
    %v1383 = vpop.xlane.xlu0 %1382
    %v1384 = vmul.f32 %v1380, %v52
    %v1385 = vmul.f32 %v1383, %v52
    %v1386 = vadd.f32 %v1384, 1e-05
    %v1387 = vadd.f32 %v1385, 1e-05
    %v1388 = vrsqrt.pop %v1386
    %v1389 = vrsqrt.pop %v1387
    %v1390 = vmul.f32 %v1374, %v1388
    %v1391 = vmul.f32 %v1375, %v1389
    %v1392 = vlaneseq
    %v1393 = vshrl.u32 %v1392, 7
    %v1394 = vsub.s32 0, %v1393
    %v1395 = vrot.slane %v1350, %v1394
    %v1396 = vmul.f32 %v1390, %v1395
    %v1397 = vmul.f32 %v1391, %v1395
    %v1398 = vlaneseq
    %v1399 = vshrl.u32 %v1398, 7
    %v1400 = vsub.s32 0, %v1399
    %v1401 = vrot.slane %v1351, %v1400
    %v1402 = vadd.f32 %v1396, %v1401
    %v1403 = vadd.f32 %v1397, %v1401
    %v1404 = vlaneseq
    %v1405 = vshrl.u32 %v1404, 7
    %v1406 = vsub.s32 0, %v1405
    %v1407 = vrot.slane %v1356, %v1406
    %v1409 = vsel %vm45, %v1402, 0
    %v1412 = vsel %vm45, %v1403, 0
    %1414 = vmatprep.subr.mxu0 0.0
    %1415 = vmatpush1.msra.mxu0 %v1352
    %1416 = vmatprep.subr.mxu0 0.0
    %1417 = vmatpush1.msra.mxu0 %v1353
    %1418 = vmatprep.subr.mxu0 0.0
    %1419 = vmatpush1.msra.mxu0 %v1354
    %1420 = vmatprep.subr.mxu0 0.0
    %1421 = vmatpush1.msra.mxu0 %v1355
    %1422 = vmatprep.subr.mxu0 0.0
    %1423 = vmatpush1.msra.mxu0 0.0
    %1424 = vmatprep.subr.mxu0 0.0
    %1425 = vmatpush1.msra.mxu0 0.0
    %1426 = vmatprep.subr.mxu0 0.0
    %1427 = vmatpush1.msra.mxu0 0.0
    %1428 = vmatprep.subr.mxu0 0.0
    %1429 = vmatpush1.msra.mxu0 0.0
    %1430 = vmatprep.subr.mxu0 0.0
    %1431 = vmatpush1.msra.mxu0 0.0
    %1432 = vmatprep.subr.mxu0 0.0
    %1433 = vmatpush1.msra.mxu0 0.0
    %1434 = vmatprep.subr.mxu0 0.0
    %1435 = vmatpush1.msra.mxu0 0.0
    %1436 = vmatprep.subr.mxu0 0.0
    %1437 = vmatpush1.msra.mxu0 0.0
    %1438 = vmatprep.subr.mxu0 0.0
    %1439 = vmatpush1.msra.mxu0 0.0
    %1440 = vmatprep.subr.mxu0 0.0
    %1441 = vmatpush1.msra.mxu0 0.0
    %1442 = vmatprep.subr.mxu0 0.0
    %1443 = vmatpush1.msra.mxu0 0.0
    %1444 = vmatprep.subr.mxu0 0.0
    %1445 = vmatpush1.msra.mxu0 0.0
    %1446 = vmatprep.subr.mxu0 0.0
    %1447 = vmatpush1.msra.mxu0 0.0
    %1448 = vmatprep.subr.mxu0 0.0
    %1449 = vmatpush1.msra.mxu0 0.0
    %1450 = vmatprep.subr.mxu0 0.0
    %1451 = vmatpush1.msra.mxu0 0.0
    %1452 = vmatprep.subr.mxu0 0.0
    %1453 = vmatpush1.msra.mxu0 0.0
    %1454 = vmatprep.subr.mxu0 0.0
    %1455 = vmatpush1.msra.mxu0 0.0
    %1456 = vmatprep.subr.mxu0 0.0
    %1457 = vmatpush1.msra.mxu0 0.0
    %1458 = vmatprep.subr.mxu0 0.0
    %1459 = vmatpush1.msra.mxu0 0.0
    %1460 = vmatprep.subr.mxu0 0.0
    %1461 = vmatpush1.msra.mxu0 0.0
    %1462 = vmatprep.subr.mxu0 0.0
    %1463 = vmatpush1.msra.mxu0 0.0
    %1464 = vmatprep.subr.mxu0 0.0
    %1465 = vmatpush1.msra.mxu0 0.0
    %1466 = vmatprep.subr.mxu0 0.0
    %1467 = vmatpush1.msra.mxu0 0.0
    %1468 = vmatprep.subr.mxu0 0.0
    %1469 = vmatpush1.msra.mxu0 0.0
    %1470 = vmatprep.subr.mxu0 0.0
    %1471 = vmatpush1.msra.mxu0 0.0
    %1472 = vmatprep.subr.mxu0 0.0
    %1473 = vmatpush1.msra.mxu0 0.0
    %1474 = vmatprep.subr.mxu0 0.0
    %1475 = vmatpush1.msra.mxu0 0.0
    %1476 = vmatprep.subr.mxu0 0.0
    %1477 = vmatpush1.msra.mxu0 0.0
    %1478 = vmatprep.mubr.f32.mxu0 0.0
    %1479 = vmatmul.mubr.f32.gmra.mrb[0].mxu0 %v1409
    %v1480 = vpop.f32.mrb[0].mxu0
    %v1481 = vadd.f32 %v1407, %v1480
    %v1482 = vpop.f32.mrb[0].mxu0
    %1483 = vmatprep.mubr.f32.mxu0 0.0
    %1484 = vmatmul.mubr.f32.gmra.mrb[0].mxu0 %v1412
    %v1485 = vpop.f32.mrb[0].mxu0
    %v1486 = vadd.f32 %v1407, %v1485
    %v1487 = vpop.f32.mrb[0].mxu0
    %1488 = vdwg.mxu0
    %v1489 = vmax.f32 %v1481, 0.0
    %v1490 = vmax.f32 %v1486, 0.0
    %vm1491 = vcmask 523264
    %v1493 = vsel %vm1491, %v1489, 0
    %v1496 = vsel %vm1491, %v1490, 0
    %1498 = vmatprep.subr.mxu0 0.0
    %1499 = vmatpush1.msra.mxu0 %v1357
    %1500 = vmatprep.subr.mxu0 0.0
    %1501 = vmatpush1.msra.mxu0 %v1358
    %1502 = vmatprep.subr.mxu0 0.0
    %1503 = vmatpush1.msra.mxu0 %v1359
    %1504 = vmatprep.subr.mxu0 0.0
    %1505 = vmatpush1.msra.mxu0 %v1360
    %1506 = vmatprep.subr.mxu0 0.0
    %1507 = vmatpush1.msra.mxu0 %v1361
    %1508 = vmatprep.subr.mxu0 0.0
    %1509 = vmatpush1.msra.mxu0 %v1362
    %1510 = vmatprep.subr.mxu0 0.0
    %1511 = vmatpush1.msra.mxu0 %v1363
    %1512 = vmatprep.subr.mxu0 0.0
    %1513 = vmatpush1.msra.mxu0 %v1364
    %1514 = vmatprep.subr.mxu0 0.0
    %1515 = vmatpush1.msra.mxu0 0.0
    %1516 = vmatprep.subr.mxu0 0.0
    %1517 = vmatpush1.msra.mxu0 0.0
    %1518 = vmatprep.subr.mxu0 0.0
    %1519 = vmatpush1.msra.mxu0 0.0
    %1520 = vmatprep.subr.mxu0 0.0
    %1521 = vmatpush1.msra.mxu0 0.0
    %1522 = vmatprep.subr.mxu0 0.0
    %1523 = vmatpush1.msra.mxu0 0.0
    %1524 = vmatprep.subr.mxu0 0.0
    %1525 = vmatpush1.msra.mxu0 0.0
    %1526 = vmatprep.subr.mxu0 0.0
    %1527 = vmatpush1.msra.mxu0 0.0
    %1528 = vmatprep.subr.mxu0 0.0
    %1529 = vmatpush1.msra.mxu0 0.0
    %1530 = vmatprep.subr.mxu0 0.0
    %1531 = vmatpush1.msra.mxu0 0.0
    %1532 = vmatprep.subr.mxu0 0.0
    %1533 = vmatpush1.msra.mxu0 0.0
    %1534 = vmatprep.subr.mxu0 0.0
    %1535 = vmatpush1.msra.mxu0 0.0
    %1536 = vmatprep.subr.mxu0 0.0
    %1537 = vmatpush1.msra.mxu0 0.0
    %1538 = vmatprep.subr.mxu0 0.0
    %1539 = vmatpush1.msra.mxu0 0.0
    %1540 = vmatprep.subr.mxu0 0.0
    %1541 = vmatpush1.msra.mxu0 0.0
    %1542 = vmatprep.subr.mxu0 0.0
    %1543 = vmatpush1.msra.mxu0 0.0
    %1544 = vmatprep.subr.mxu0 0.0
    %1545 = vmatpush1.msra.mxu0 0.0
    %1546 = vmatprep.subr.mxu0 0.0
    %1547 = vmatpush1.msra.mxu0 0.0
    %1548 = vmatprep.subr.mxu0 0.0
    %1549 = vmatpush1.msra.mxu0 0.0
    %1550 = vmatprep.subr.mxu0 0.0
    %1551 = vmatpush1.msra.mxu0 0.0
    %1552 = vmatprep.subr.mxu0 0.0
    %1553 = vmatpush1.msra.mxu0 0.0
    %1554 = vmatprep.subr.mxu0 0.0
    %1555 = vmatpush1.msra.mxu0 0.0
    %1556 = vmatprep.subr.mxu0 0.0
    %1557 = vmatpush1.msra.mxu0 0.0
    %1558 = vmatprep.subr.mxu0 0.0
    %1559 = vmatpush1.msra.mxu0 0.0
    %1560 = vmatprep.subr.mxu0 0.0
    %1561 = vmatpush1.msra.mxu0 0.0
    %1562 = vmatprep.mubr.f32.mxu0 0.0
    %1563 = vmatmul.mubr.f32.gmra.mrb[0].mxu0 %v1493
    %v1564 = vpop.f32.mrb[0].mxu0
    %v1565 = vadd.f32 0.0, %v1564
    %v1566 = vpop.f32.mrb[0].mxu0
    %1567 = vmatprep.mubr.f32.mxu0 0.0
    %1568 = vmatmul.mubr.f32.gmra.mrb[0].mxu0 %v1496
    %v1569 = vpop.f32.mrb[0].mxu0
    %v1570 = vadd.f32 0.0, %v1569
    %v1571 = vpop.f32.mrb[0].mxu0
    %1572 = vdwg.mxu0
    %v1573 = vadd.f32 %v1348, %v1565
    %v1574 = vadd.f32 %v1349, %v1570
    %v1575 = vlaneseq
    %v1576 = vshrl.u32 %v1575, 7
    %v1577 = vsub.s32 0, %v1576
    %v1578 = vrot.slane %v1365, %v1577
    %v1579 = vadd.f32 %v1573, %v1578
    %v1580 = vadd.f32 %v1574, %v1578
    %v1581 = vld [vmem:[%s4 + $0xe] sm:$0x1]
    %v1582 = vld [vmem:[%s4 + $0x14] sm:$0x1]
    %v1583 = vld [vmem:[%s3 + $0x40] sm:$0xff]
    %v1584 = vld [vmem:[%s3 + $0x48] sm:$0xff]
    %v1585 = vld [vmem:[%s3 + $0x50] sm:$0xff]
    %v1586 = vld [vmem:[%s3 + $0x58] sm:$0xff]
    %v1587 = vld [vmem:[%s4 + $0x2] sm:$0x1]
    %v1588 = vld [vmem:[%s3 + $0x100] sm:$0xff]
    %v1589 = vld [vmem:[%s3 + $0x108] sm:$0xff]
    %v1590 = vld [vmem:[%s3 + $0x110] sm:$0xff]
    %v1591 = vld [vmem:[%s3 + $0x118] sm:$0xff]
    %v1592 = vld [vmem:[%s4 + $0x8] sm:$0x1]
    %v1593 = vsel %vm45, %v1579, 0.0
    %1594 = vadd.xlane.f32.xlu0 %v1593
    %v1595 = vpop.xlane.xlu0 %1594
    %v1596 = vsel %vm45, %v1580, 0.0
    %1597 = vadd.xlane.f32.xlu0 %v1596
    %v1598 = vpop.xlane.xlu0 %1597
    %v1599 = vmul.f32 %v1595, %v52
    %v1600 = vmul.f32 %v1598, %v52
    %v1601 = vsub.f32 %v1579, %v1599
    %v1602 = vsub.f32 %v1580, %v1600
    %v1603 = vmul.f32 %v1601, %v1601
    %v1604 = vmul.f32 %v1602, %v1602
    %v1605 = vsel %vm45, %v1603, 0.0
    %1606 = vadd.xlane.f32.xlu0 %v1605
    %v1607 = vpop.xlane.xlu0 %1606
    %v1608 = vsel %vm45, %v1604, 0.0
    %1609 = vadd.xlane.f32.xlu0 %v1608
    %v1610 = vpop.xlane.xlu0 %1609
    %v1611 = vmul.f32 %v1607, %v52
    %v1612 = vmul.f32 %v1610, %v52
    %v1613 = vadd.f32 %v1611, 1e-05
    %v1614 = vadd.f32 %v1612, 1e-05
    %v1615 = vrsqrt.pop %v1613
    %v1616 = vrsqrt.pop %v1614
    %v1617 = vmul.f32 %v1601, %v1615
    %v1618 = vmul.f32 %v1602, %v1616
    %v1619 = vlaneseq
    %v1620 = vshrl.u32 %v1619, 7
    %v1621 = vsub.s32 0, %v1620
    %v1622 = vrot.slane %v1581, %v1621
    %v1623 = vmul.f32 %v1617, %v1622
    %v1624 = vmul.f32 %v1618, %v1622
    %v1625 = vlaneseq
    %v1626 = vshrl.u32 %v1625, 7
    %v1627 = vsub.s32 0, %v1626
    %v1628 = vrot.slane %v1582, %v1627
    %v1629 = vadd.f32 %v1623, %v1628
    %v1630 = vadd.f32 %v1624, %v1628
    %v1631 = vlaneseq
    %v1632 = vshrl.u32 %v1631, 7
    %v1633 = vsub.s32 0, %v1632
    %v1634 = vrot.slane %v1587, %v1633
    %v1636 = vsel %vm45, %v1629, 0
    %v1639 = vsel %vm45, %v1630, 0
    %1641 = vmatprep.subr.mxu0 0.0
    %1642 = vmatpush1.msra.mxu0 %v1583
    %1643 = vmatprep.subr.mxu0 0.0
    %1644 = vmatpush1.msra.mxu0 %v1584
    %1645 = vmatprep.subr.mxu0 0.0
    %1646 = vmatpush1.msra.mxu0 %v1585
    %1647 = vmatprep.subr.mxu0 0.0
    %1648 = vmatpush1.msra.mxu0 %v1586
    %1649 = vmatprep.subr.mxu0 0.0
    %1650 = vmatpush1.msra.mxu0 0.0
    %1651 = vmatprep.subr.mxu0 0.0
    %1652 = vmatpush1.msra.mxu0 0.0
    %1653 = vmatprep.subr.mxu0 0.0
    %1654 = vmatpush1.msra.mxu0 0.0
    %1655 = vmatprep.subr.mxu0 0.0
    %1656 = vmatpush1.msra.mxu0 0.0
    %1657 = vmatprep.subr.mxu0 0.0
    %1658 = vmatpush1.msra.mxu0 0.0
    %1659 = vmatprep.subr.mxu0 0.0
    %1660 = vmatpush1.msra.mxu0 0.0
    %1661 = vmatprep.subr.mxu0 0.0
    %1662 = vmatpush1.msra.mxu0 0.0
    %1663 = vmatprep.subr.mxu0 0.0
    %1664 = vmatpush1.msra.mxu0 0.0
    %1665 = vmatprep.subr.mxu0 0.0
    %1666 = vmatpush1.msra.mxu0 0.0
    %1667 = vmatprep.subr.mxu0 0.0
    %1668 = vmatpush1.msra.mxu0 0.0
    %1669 = vmatprep.subr.mxu0 0.0
    %1670 = vmatpush1.msra.mxu0 0.0
    %1671 = vmatprep.subr.mxu0 0.0
    %1672 = vmatpush1.msra.mxu0 0.0
    %1673 = vmatprep.subr.mxu0 0.0
    %1674 = vmatpush1.msra.mxu0 0.0
    %1675 = vmatprep.subr.mxu0 0.0
    %1676 = vmatpush1.msra.mxu0 0.0
    %1677 = vmatprep.subr.mxu0 0.0
    %1678 = vmatpush1.msra.mxu0 0.0
    %1679 = vmatprep.subr.mxu0 0.0
    %1680 = vmatpush1.msra.mxu0 0.0
    %1681 = vmatprep.subr.mxu0 0.0
    %1682 = vmatpush1.msra.mxu0 0.0
    %1683 = vmatprep.subr.mxu0 0.0
    %1684 = vmatpush1.msra.mxu0 0.0
    %1685 = vmatprep.subr.mxu0 0.0
    %1686 = vmatpush1.msra.mxu0 0.0
    %1687 = vmatprep.subr.mxu0 0.0
    %1688 = vmatpush1.msra.mxu0 0.0
    %1689 = vmatprep.subr.mxu0 0.0
    %1690 = vmatpush1.msra.mxu0 0.0
    %1691 = vmatprep.subr.mxu0 0.0
    %1692 = vmatpush1.msra.mxu0 0.0
    %1693 = vmatprep.subr.mxu0 0.0
    %1694 = vmatpush1.msra.mxu0 0.0
    %1695 = vmatprep.subr.mxu0 0.0
    %1696 = vmatpush1.msra.mxu0 0.0
    %1697 = vmatprep.subr.mxu0 0.0
    %1698 = vmatpush1.msra.mxu0 0.0
    %1699 = vmatprep.subr.mxu0 0.0
    %1700 = vmatpush1.msra.mxu0 0.0
    %1701 = vmatprep.subr.mxu0 0.0
    %1702 = vmatpush1.msra.mxu0 0.0
    %1703 = vmatprep.subr.mxu0 0.0
    %1704 = vmatpush1.msra.mxu0 0.0
    %1705 = vmatprep.mubr.f32.mxu0 0.0
    %1706 = vmatmul.mubr.f32.gmra.mrb[0].mxu0 %v1636
    %v1707 = vpop.f32.mrb[0].mxu0
    %v1708 = vadd.f32 %v1634, %v1707
    %v1709 = vpop.f32.mrb[0].mxu0
    %1710 = vmatprep.mubr.f32.mxu0 0.0
    %1711 = vmatmul.mubr.f32.gmra.mrb[0].mxu0 %v1639
    %v1712 = vpop.f32.mrb[0].mxu0
    %v1713 = vadd.f32 %v1634, %v1712
    %v1714 = vpop.f32.mrb[0].mxu0
    %1715 = vdwg.mxu0
    %v1716 = vmul.f32 %v1708, %v25
    %v1717 = vmul.f32 %v1713, %v26
    %v1718 = vmul.f32 %v1708, %v27
    %v1719 = vmul.f32 %v1713, %v28
    %v1720 = vmul.f32 %v1708, %v29
    %v1721 = vmul.f32 %v1713, %v30
    %v1722 = vmul.f32 %v1708, %v31
    %v1723 = vmul.f32 %v1713, %v32
    %1726 = vrot.lane.b32.xlu0 %v1708, 96
    %v1727 = vpop.permute.xlu0 %1726
    %1728 = vrot.lane.b32.xlu0 %v1713, 96
    %v1729 = vpop.permute.xlu0 %1728
    %v1731 = vsel %vm45, %v1716, 0
    %v1734 = vsel %vm45, %v1717, 0
    %v1737 = vsel %vm45, %v1718, 0
    %v1740 = vsel %vm45, %v1719, 0
    %v1743 = vsel %vm45, %v1720, 0
    %v1746 = vsel %vm45, %v1721, 0
    %v1749 = vsel %vm45, %v1722, 0
    %v1752 = vsel %vm45, %v1723, 0
    %v1754 = vsel %vm45, %v1727, 0
    %v1756 = vsel %vm45, %v1729, 0
    %1758 = vmatprep.subr.mxu0 0.0
    %1759 = vmatpush1.xpose.msra.mxu0 %v1754
    %1760 = vmatprep.subr.mxu0 0.0
    %1761 = vmatpush1.xpose.msra.mxu0 %v1756
    %1762 = vmatprep.subr.mxu0 0.0
    %1763 = vmatpush1.xpose.msra.mxu0 0.0
    %1764 = vmatprep.subr.mxu0 0.0
    %1765 = vmatpush1.xpose.msra.mxu0 0.0
    %1766 = vmatprep.subr.mxu0 0.0
    %1767 = vmatpush1.xpose.msra.mxu0 0.0
    %1768 = vmatprep.subr.mxu0 0.0
    %1769 = vmatpush1.xpose.msra.mxu0 0.0
    %1770 = vmatprep.subr.mxu0 0.0
    %1771 = vmatpush1.xpose.msra.mxu0 0.0
    %1772 = vmatprep.subr.mxu0 0.0
    %1773 = vmatpush1.xpose.msra.mxu0 0.0
    %1774 = vmatprep.subr.mxu0 0.0
    %1775 = vmatpush1.xpose.msra.mxu0 0.0
    %1776 = vmatprep.subr.mxu0 0.0
    %1777 = vmatpush1.xpose.msra.mxu0 0.0
    %1778 = vmatprep.subr.mxu0 0.0
    %1779 = vmatpush1.xpose.msra.mxu0 0.0
    %1780 = vmatprep.subr.mxu0 0.0
    %1781 = vmatpush1.xpose.msra.mxu0 0.0
    %1782 = vmatprep.subr.mxu0 0.0
    %1783 = vmatpush1.xpose.msra.mxu0 0.0
    %1784 = vmatprep.subr.mxu0 0.0
    %1785 = vmatpush1.xpose.msra.mxu0 0.0
    %1786 = vmatprep.subr.mxu0 0.0
    %1787 = vmatpush1.xpose.msra.mxu0 0.0
    %1788 = vmatprep.subr.mxu0 0.0
    %1789 = vmatpush1.xpose.msra.mxu0 0.0
    %1790 = vmatprep.subr.mxu0 0.0
    %1791 = vmatpush1.xpose.msra.mxu0 0.0
    %1792 = vmatprep.subr.mxu0 0.0
    %1793 = vmatpush1.xpose.msra.mxu0 0.0
    %1794 = vmatprep.subr.mxu0 0.0
    %1795 = vmatpush1.xpose.msra.mxu0 0.0
    %1796 = vmatprep.subr.mxu0 0.0
    %1797 = vmatpush1.xpose.msra.mxu0 0.0
    %1798 = vmatprep.subr.mxu0 0.0
    %1799 = vmatpush1.xpose.msra.mxu0 0.0
    %1800 = vmatprep.subr.mxu0 0.0
    %1801 = vmatpush1.xpose.msra.mxu0 0.0
    %1802 = vmatprep.subr.mxu0 0.0
    %1803 = vmatpush1.xpose.msra.mxu0 0.0
    %1804 = vmatprep.subr.mxu0 0.0
    %1805 = vmatpush1.xpose.msra.mxu0 0.0
    %1806 = vmatprep.subr.mxu0 0.0
    %1807 = vmatpush1.xpose.msra.mxu0 0.0
    %1808 = vmatprep.subr.mxu0 0.0
    %1809 = vmatpush1.xpose.msra.mxu0 0.0
    %1810 = vmatprep.subr.mxu0 0.0
    %1811 = vmatpush1.xpose.msra.mxu0 0.0
    %1812 = vmatprep.subr.mxu0 0.0
    %1813 = vmatpush1.xpose.msra.mxu0 0.0
    %1814 = vmatprep.subr.mxu0 0.0
    %1815 = vmatpush1.xpose.msra.mxu0 0.0
    %1816 = vmatprep.subr.mxu0 0.0
    %1817 = vmatpush1.xpose.msra.mxu0 0.0
    %1818 = vmatprep.subr.mxu0 0.0
    %1819 = vmatpush1.xpose.msra.mxu0 0.0
    %1820 = vmatprep.subr.mxu0 0.0
    %1821 = vmatpush1.xpose.msra.mxu0 0.0
    %1822 = vmatprep.mubr.f32.mxu0 0.0
    %1823 = vmatmul.mubr.f32.gmra.mrb[0].mxu0 %v1731
    %v1824 = vpop.f32.mrb[0].mxu0
    %v1825 = vadd.f32 %v193, %v1824
    %v1826 = vpop.f32.mrb[0].mxu0
    %1827 = vmatprep.mubr.f32.mxu0 0.0
    %1828 = vmatmul.mubr.f32.gmra.mrb[0].mxu0 %v1734
    %v1829 = vpop.f32.mrb[0].mxu0
    %v1830 = vadd.f32 %v195, %v1829
    %v1831 = vpop.f32.mrb[0].mxu0
    %1832 = vmatprep.mubr.f32.mxu0 0.0
    %1833 = vmatmul.mubr.f32.gmra.mrb[0].mxu0 %v1737
    %v1834 = vpop.f32.mrb[0].mxu0
    %v1835 = vadd.f32 %v197, %v1834
    %v1836 = vpop.f32.mrb[0].mxu0
    %1837 = vmatprep.mubr.f32.mxu0 0.0
    %1838 = vmatmul.mubr.f32.gmra.mrb[0].mxu0 %v1740
    %v1839 = vpop.f32.mrb[0].mxu0
    %v1840 = vadd.f32 %v199, %v1839
    %v1841 = vpop.f32.mrb[0].mxu0
    %1842 = vmatprep.mubr.f32.mxu0 0.0
    %1843 = vmatmul.mubr.f32.gmra.mrb[0].mxu0 %v1743
    %v1844 = vpop.f32.mrb[0].mxu0
    %v1845 = vadd.f32 %v201, %v1844
    %v1846 = vpop.f32.mrb[0].mxu0
    %1847 = vmatprep.mubr.f32.mxu0 0.0
    %1848 = vmatmul.mubr.f32.gmra.mrb[0].mxu0 %v1746
    %v1849 = vpop.f32.mrb[0].mxu0
    %v1850 = vadd.f32 %v203, %v1849
    %v1851 = vpop.f32.mrb[0].mxu0
    %1852 = vmatprep.mubr.f32.mxu0 0.0
    %1853 = vmatmul.mubr.f32.gmra.mrb[0].mxu0 %v1749
    %v1854 = vpop.f32.mrb[0].mxu0
    %v1855 = vadd.f32 %v205, %v1854
    %v1856 = vpop.f32.mrb[0].mxu0
    %1857 = vmatprep.mubr.f32.mxu0 0.0
    %1858 = vmatmul.mubr.f32.gmra.mrb[0].mxu0 %v1752
    %v1859 = vpop.f32.mrb[0].mxu0
    %v1860 = vadd.f32 %v207, %v1859
    %v1861 = vpop.f32.mrb[0].mxu0
    %1862 = vdwg.mxu0
    %v1863 = vsel %vm349, %v1825, -inf
    %1864 = vmax.xlane.f32.xlu0 %v1863
    %v1865 = vpop.xlane.xlu0 %1864
    %v1866 = vsel %vm349, %v1830, -inf
    %1867 = vmax.xlane.f32.xlu0 %v1866
    %v1868 = vpop.xlane.xlu0 %1867
    %v1869 = vsel %vm349, %v1835, -inf
    %1870 = vmax.xlane.f32.xlu0 %v1869
    %v1871 = vpop.xlane.xlu0 %1870
    %v1872 = vsel %vm349, %v1840, -inf
    %1873 = vmax.xlane.f32.xlu0 %v1872
    %v1874 = vpop.xlane.xlu0 %1873
    %v1875 = vsel %vm349, %v1845, -inf
    %1876 = vmax.xlane.f32.xlu0 %v1875
    %v1877 = vpop.xlane.xlu0 %1876
    %v1878 = vsel %vm349, %v1850, -inf
    %1879 = vmax.xlane.f32.xlu0 %v1878
    %v1880 = vpop.xlane.xlu0 %1879
    %v1881 = vsel %vm349, %v1855, -inf
    %1882 = vmax.xlane.f32.xlu0 %v1881
    %v1883 = vpop.xlane.xlu0 %1882
    %v1884 = vsel %vm349, %v1860, -inf
    %1885 = vmax.xlane.f32.xlu0 %v1884
    %v1886 = vpop.xlane.xlu0 %1885
    %v1887 = vsub.f32 %v1825, %v1865
    %v1888 = vsub.f32 %v1830, %v1868
    %v1889 = vsub.f32 %v1835, %v1871
    %v1890 = vsub.f32 %v1840, %v1874
    %v1891 = vsub.f32 %v1845, %v1877
    %v1892 = vsub.f32 %v1850, %v1880
    %v1893 = vsub.f32 %v1855, %v1883
    %v1894 = vsub.f32 %v1860, %v1886
    %v1895 = vmul.f32 %v1887, 1.442695
    %v1896 = vpow.pop %v1895
    %v1897 = vmul.f32 %v1888, 1.442695
    %v1898 = vpow.pop %v1897
    %v1899 = vmul.f32 %v1889, 1.442695
    %v1900 = vpow.pop %v1899
    %v1901 = vmul.f32 %v1890, 1.442695
    %v1902 = vpow.pop %v1901
    %v1903 = vmul.f32 %v1891, 1.442695
    %v1904 = vpow.pop %v1903
    %v1905 = vmul.f32 %v1892, 1.442695
    %v1906 = vpow.pop %v1905
    %v1907 = vmul.f32 %v1893, 1.442695
    %v1908 = vpow.pop %v1907
    %v1909 = vmul.f32 %v1894, 1.442695
    %v1910 = vpow.pop %v1909
    %v1911 = vsel %vm349, %v1896, 0.0
    %1912 = vadd.xlane.f32.xlu0 %v1911
    %v1913 = vpop.xlane.xlu0 %1912
    %v1914 = vsel %vm349, %v1898, 0.0
    %1915 = vadd.xlane.f32.xlu0 %v1914
    %v1916 = vpop.xlane.xlu0 %1915
    %v1917 = vsel %vm349, %v1900, 0.0
    %1918 = vadd.xlane.f32.xlu0 %v1917
    %v1919 = vpop.xlane.xlu0 %1918
    %v1920 = vsel %vm349, %v1902, 0.0
    %1921 = vadd.xlane.f32.xlu0 %v1920
    %v1922 = vpop.xlane.xlu0 %1921
    %v1923 = vsel %vm349, %v1904, 0.0
    %1924 = vadd.xlane.f32.xlu0 %v1923
    %v1925 = vpop.xlane.xlu0 %1924
    %v1926 = vsel %vm349, %v1906, 0.0
    %1927 = vadd.xlane.f32.xlu0 %v1926
    %v1928 = vpop.xlane.xlu0 %1927
    %v1929 = vsel %vm349, %v1908, 0.0
    %1930 = vadd.xlane.f32.xlu0 %v1929
    %v1931 = vpop.xlane.xlu0 %1930
    %v1932 = vsel %vm349, %v1910, 0.0
    %1933 = vadd.xlane.f32.xlu0 %v1932
    %v1934 = vpop.xlane.xlu0 %1933
    %v1935 = vrcp.pop %v1913
    %v1936 = vmul.f32 %v1896, %v1935
    %v1937 = vrcp.pop %v1916
    %v1938 = vmul.f32 %v1898, %v1937
    %v1939 = vrcp.pop %v1919
    %v1940 = vmul.f32 %v1900, %v1939
    %v1941 = vrcp.pop %v1922
    %v1942 = vmul.f32 %v1902, %v1941
    %v1943 = vrcp.pop %v1925
    %v1944 = vmul.f32 %v1904, %v1943
    %v1945 = vrcp.pop %v1928
    %v1946 = vmul.f32 %v1906, %v1945
    %v1947 = vrcp.pop %v1931
    %v1948 = vmul.f32 %v1908, %v1947
    %v1949 = vrcp.pop %v1934
    %v1950 = vmul.f32 %v1910, %v1949
    %1951 = vrot.lane.b32.xlu0 %v1708, 64
    %v1952 = vpop.permute.xlu0 %1951
    %1953 = vrot.lane.b32.xlu0 %v1713, 64
    %v1954 = vpop.permute.xlu0 %1953
    %v1958 = vsel %vm349, %v1936, 0
    %v1961 = vsel %vm349, %v1938, 0
    %v1964 = vsel %vm349, %v1940, 0
    %v1967 = vsel %vm349, %v1942, 0
    %v1970 = vsel %vm349, %v1944, 0
    %v1973 = vsel %vm349, %v1946, 0
    %v1976 = vsel %vm349, %v1948, 0
    %v1979 = vsel %vm349, %v1950, 0
    %1981 = vmatprep.subr.mxu0 0.0
    %1982 = vmatpush1.msra.mxu0 %v1952
    %1983 = vmatprep.subr.mxu0 0.0
    %1984 = vmatpush1.msra.mxu0 %v1954
    %1985 = vmatprep.subr.mxu0 0.0
    %1986 = vmatpush1.msra.mxu0 0.0
    %1987 = vmatprep.subr.mxu0 0.0
    %1988 = vmatpush1.msra.mxu0 0.0
    %1989 = vmatprep.subr.mxu0 0.0
    %1990 = vmatpush1.msra.mxu0 0.0
    %1991 = vmatprep.subr.mxu0 0.0
    %1992 = vmatpush1.msra.mxu0 0.0
    %1993 = vmatprep.subr.mxu0 0.0
    %1994 = vmatpush1.msra.mxu0 0.0
    %1995 = vmatprep.subr.mxu0 0.0
    %1996 = vmatpush1.msra.mxu0 0.0
    %1997 = vmatprep.subr.mxu0 0.0
    %1998 = vmatpush1.msra.mxu0 0.0
    %1999 = vmatprep.subr.mxu0 0.0
    %2000 = vmatpush1.msra.mxu0 0.0
    %2001 = vmatprep.subr.mxu0 0.0
    %2002 = vmatpush1.msra.mxu0 0.0
    %2003 = vmatprep.subr.mxu0 0.0
    %2004 = vmatpush1.msra.mxu0 0.0
    %2005 = vmatprep.subr.mxu0 0.0
    %2006 = vmatpush1.msra.mxu0 0.0
    %2007 = vmatprep.subr.mxu0 0.0
    %2008 = vmatpush1.msra.mxu0 0.0
    %2009 = vmatprep.subr.mxu0 0.0
    %2010 = vmatpush1.msra.mxu0 0.0
    %2011 = vmatprep.subr.mxu0 0.0
    %2012 = vmatpush1.msra.mxu0 0.0
    %2013 = vmatprep.subr.mxu0 0.0
    %2014 = vmatpush1.msra.mxu0 0.0
    %2015 = vmatprep.subr.mxu0 0.0
    %2016 = vmatpush1.msra.mxu0 0.0
    %2017 = vmatprep.subr.mxu0 0.0
    %2018 = vmatpush1.msra.mxu0 0.0
    %2019 = vmatprep.subr.mxu0 0.0
    %2020 = vmatpush1.msra.mxu0 0.0
    %2021 = vmatprep.subr.mxu0 0.0
    %2022 = vmatpush1.msra.mxu0 0.0
    %2023 = vmatprep.subr.mxu0 0.0
    %2024 = vmatpush1.msra.mxu0 0.0
    %2025 = vmatprep.subr.mxu0 0.0
    %2026 = vmatpush1.msra.mxu0 0.0
    %2027 = vmatprep.subr.mxu0 0.0
    %2028 = vmatpush1.msra.mxu0 0.0
    %2029 = vmatprep.subr.mxu0 0.0
    %2030 = vmatpush1.msra.mxu0 0.0
    %2031 = vmatprep.subr.mxu0 0.0
    %2032 = vmatpush1.msra.mxu0 0.0
    %2033 = vmatprep.subr.mxu0 0.0
    %2034 = vmatpush1.msra.mxu0 0.0
    %2035 = vmatprep.subr.mxu0 0.0
    %2036 = vmatpush1.msra.mxu0 0.0
    %2037 = vmatprep.subr.mxu0 0.0
    %2038 = vmatpush1.msra.mxu0 0.0
    %2039 = vmatprep.subr.mxu0 0.0
    %2040 = vmatpush1.msra.mxu0 0.0
    %2041 = vmatprep.subr.mxu0 0.0
    %2042 = vmatpush1.msra.mxu0 0.0
    %2043 = vmatprep.subr.mxu0 0.0
    %2044 = vmatpush1.msra.mxu0 0.0
    %2045 = vmatprep.mubr.f32.mxu0 0.0
    %2046 = vmatmul.mubr.f32.gmra.mrb[0].mxu0 %v1958
    %v2047 = vpop.f32.mrb[0].mxu0
    %v2048 = vadd.f32 0.0, %v2047
    %v2049 = vpop.f32.mrb[0].mxu0
    %2050 = vmatprep.mubr.f32.mxu0 0.0
    %2051 = vmatmul.mubr.f32.gmra.mrb[0].mxu0 %v1961
    %v2052 = vpop.f32.mrb[0].mxu0
    %v2053 = vadd.f32 0.0, %v2052
    %v2054 = vpop.f32.mrb[0].mxu0
    %2055 = vmatprep.mubr.f32.mxu0 0.0
    %2056 = vmatmul.mubr.f32.gmra.mrb[0].mxu0 %v1964
    %v2057 = vpop.f32.mrb[0].mxu0
    %v2058 = vadd.f32 0.0, %v2057
    %v2059 = vpop.f32.mrb[0].mxu0
    %2060 = vmatprep.mubr.f32.mxu0 0.0
    %2061 = vmatmul.mubr.f32.gmra.mrb[0].mxu0 %v1967
    %v2062 = vpop.f32.mrb[0].mxu0
    %v2063 = vadd.f32 0.0, %v2062
    %v2064 = vpop.f32.mrb[0].mxu0
    %2065 = vmatprep.mubr.f32.mxu0 0.0
    %2066 = vmatmul.mubr.f32.gmra.mrb[0].mxu0 %v1970
    %v2067 = vpop.f32.mrb[0].mxu0
    %v2068 = vadd.f32 0.0, %v2067
    %v2069 = vpop.f32.mrb[0].mxu0
    %2070 = vmatprep.mubr.f32.mxu0 0.0
    %2071 = vmatmul.mubr.f32.gmra.mrb[0].mxu0 %v1973
    %v2072 = vpop.f32.mrb[0].mxu0
    %v2073 = vadd.f32 0.0, %v2072
    %v2074 = vpop.f32.mrb[0].mxu0
    %2075 = vmatprep.mubr.f32.mxu0 0.0
    %2076 = vmatmul.mubr.f32.gmra.mrb[0].mxu0 %v1976
    %v2077 = vpop.f32.mrb[0].mxu0
    %v2078 = vadd.f32 0.0, %v2077
    %v2079 = vpop.f32.mrb[0].mxu0
    %2080 = vmatprep.mubr.f32.mxu0 0.0
    %2081 = vmatmul.mubr.f32.gmra.mrb[0].mxu0 %v1979
    %v2082 = vpop.f32.mrb[0].mxu0
    %v2083 = vadd.f32 0.0, %v2082
    %v2084 = vpop.f32.mrb[0].mxu0
    %2085 = vdwg.mxu0
    %v2086 = vmul.f32 %v2048, %v25
    %v2087 = vmul.f32 %v2053, %v26
    %v2088 = vmul.f32 %v2058, %v27
    %v2089 = vmul.f32 %v2063, %v28
    %v2090 = vmul.f32 %v2068, %v29
    %v2091 = vmul.f32 %v2073, %v30
    %v2092 = vmul.f32 %v2078, %v31
    %v2093 = vmul.f32 %v2083, %v32
    %v2094 = vadd.f32 %v2086, %v2088
    %v2095 = vadd.f32 %v2087, %v2089
    %v2096 = vadd.f32 %v2094, %v2090
    %v2097 = vadd.f32 %v2095, %v2091
    %v2098 = vadd.f32 %v2096, %v2092
    %v2099 = vadd.f32 %v2097, %v2093
    %v2100 = vlaneseq
    %v2101 = vshrl.u32 %v2100, 7
    %v2102 = vsub.s32 0, %v2101
    %v2103 = vrot.slane %v1592, %v2102
    %v2105 = vsel %vm45, %v2098, 0
    %v2108 = vsel %vm45, %v2099, 0
    %2110 = vmatprep.subr.mxu0 0.0
    %2111 = vmatpush1.msra.mxu0 %v1588
    %2112 = vmatprep.subr.mxu0 0.0
    %2113 = vmatpush1.msra.mxu0 %v1589
    %2114 = vmatprep.subr.mxu0 0.0
    %2115 = vmatpush1.msra.mxu0 %v1590
    %2116 = vmatprep.subr.mxu0 0.0
    %2117 = vmatpush1.msra.mxu0 %v1591
    %2118 = vmatprep.subr.mxu0 0.0
    %2119 = vmatpush1.msra.mxu0 0.0
    %2120 = vmatprep.subr.mxu0 0.0
    %2121 = vmatpush1.msra.mxu0 0.0
    %2122 = vmatprep.subr.mxu0 0.0
    %2123 = vmatpush1.msra.mxu0 0.0
    %2124 = vmatprep.subr.mxu0 0.0
    %2125 = vmatpush1.msra.mxu0 0.0
    %2126 = vmatprep.subr.mxu0 0.0
    %2127 = vmatpush1.msra.mxu0 0.0
    %2128 = vmatprep.subr.mxu0 0.0
    %2129 = vmatpush1.msra.mxu0 0.0
    %2130 = vmatprep.subr.mxu0 0.0
    %2131 = vmatpush1.msra.mxu0 0.0
    %2132 = vmatprep.subr.mxu0 0.0
    %2133 = vmatpush1.msra.mxu0 0.0
    %2134 = vmatprep.subr.mxu0 0.0
    %2135 = vmatpush1.msra.mxu0 0.0
    %2136 = vmatprep.subr.mxu0 0.0
    %2137 = vmatpush1.msra.mxu0 0.0
    %2138 = vmatprep.subr.mxu0 0.0
    %2139 = vmatpush1.msra.mxu0 0.0
    %2140 = vmatprep.subr.mxu0 0.0
    %2141 = vmatpush1.msra.mxu0 0.0
    %2142 = vmatprep.subr.mxu0 0.0
    %2143 = vmatpush1.msra.mxu0 0.0
    %2144 = vmatprep.subr.mxu0 0.0
    %2145 = vmatpush1.msra.mxu0 0.0
    %2146 = vmatprep.subr.mxu0 0.0
    %2147 = vmatpush1.msra.mxu0 0.0
    %2148 = vmatprep.subr.mxu0 0.0
    %2149 = vmatpush1.msra.mxu0 0.0
    %2150 = vmatprep.subr.mxu0 0.0
    %2151 = vmatpush1.msra.mxu0 0.0
    %2152 = vmatprep.subr.mxu0 0.0
    %2153 = vmatpush1.msra.mxu0 0.0
    %2154 = vmatprep.subr.mxu0 0.0
    %2155 = vmatpush1.msra.mxu0 0.0
    %2156 = vmatprep.subr.mxu0 0.0
    %2157 = vmatpush1.msra.mxu0 0.0
    %2158 = vmatprep.subr.mxu0 0.0
    %2159 = vmatpush1.msra.mxu0 0.0
    %2160 = vmatprep.subr.mxu0 0.0
    %2161 = vmatpush1.msra.mxu0 0.0
    %2162 = vmatprep.subr.mxu0 0.0
    %2163 = vmatpush1.msra.mxu0 0.0
    %2164 = vmatprep.subr.mxu0 0.0
    %2165 = vmatpush1.msra.mxu0 0.0
    %2166 = vmatprep.subr.mxu0 0.0
    %2167 = vmatpush1.msra.mxu0 0.0
    %2168 = vmatprep.subr.mxu0 0.0
    %2169 = vmatpush1.msra.mxu0 0.0
    %2170 = vmatprep.subr.mxu0 0.0
    %2171 = vmatpush1.msra.mxu0 0.0
    %2172 = vmatprep.subr.mxu0 0.0
    %2173 = vmatpush1.msra.mxu0 0.0
    %2174 = vmatprep.mubr.f32.mxu0 0.0
    %2175 = vmatmul.mubr.f32.gmra.mrb[0].mxu0 %v2105
    %v2176 = vpop.f32.mrb[0].mxu0
    %v2177 = vadd.f32 %v2103, %v2176
    %v2178 = vpop.f32.mrb[0].mxu0
    %2179 = vmatprep.mubr.f32.mxu0 0.0
    %2180 = vmatmul.mubr.f32.gmra.mrb[0].mxu0 %v2108
    %v2181 = vpop.f32.mrb[0].mxu0
    %v2182 = vadd.f32 %v2103, %v2181
    %v2183 = vpop.f32.mrb[0].mxu0
    %2184 = vdwg.mxu0
    %v2185 = vadd.f32 %v1579, %v2177
    %v2186 = vadd.f32 %v1580, %v2182
    %v2187 = vld [vmem:[%s4 + $0xf] sm:$0x1]
    %v2188 = vld [vmem:[%s4 + $0x15] sm:$0x1]
    %v2189 = vld [vmem:[%s3 + $0x60] sm:$0xff]
    %v2190 = vld [vmem:[%s3 + $0x68] sm:$0xff]
    %v2191 = vld [vmem:[%s3 + $0x70] sm:$0xff]
    %v2192 = vld [vmem:[%s3 + $0x78] sm:$0xff]
    %v2193 = vld [vmem:[%s4 + $0x3] sm:$0x1]
    %v2194 = vld [vmem:[%s3 + $0x120] sm:$0xff]
    %v2195 = vld [vmem:[%s3 + $0x128] sm:$0xff]
    %v2196 = vld [vmem:[%s3 + $0x130] sm:$0xff]
    %v2197 = vld [vmem:[%s3 + $0x138] sm:$0xff]
    %v2198 = vld [vmem:[%s4 + $0x9] sm:$0x1]
    %v2199 = vsel %vm45, %v2185, 0.0
    %2200 = vadd.xlane.f32.xlu0 %v2199
    %v2201 = vpop.xlane.xlu0 %2200
    %v2202 = vsel %vm45, %v2186, 0.0
    %2203 = vadd.xlane.f32.xlu0 %v2202
    %v2204 = vpop.xlane.xlu0 %2203
    %v2205 = vmul.f32 %v2201, %v52
    %v2206 = vmul.f32 %v2204, %v52
    %v2207 = vsub.f32 %v2185, %v2205
    %v2208 = vsub.f32 %v2186, %v2206
    %v2209 = vmul.f32 %v2207, %v2207
    %v2210 = vmul.f32 %v2208, %v2208
    %v2211 = vsel %vm45, %v2209, 0.0
    %2212 = vadd.xlane.f32.xlu0 %v2211
    %v2213 = vpop.xlane.xlu0 %2212
    %v2214 = vsel %vm45, %v2210, 0.0
    %2215 = vadd.xlane.f32.xlu0 %v2214
    %v2216 = vpop.xlane.xlu0 %2215
    %v2217 = vmul.f32 %v2213, %v52
    %v2218 = vmul.f32 %v2216, %v52
    %v2219 = vadd.f32 %v2217, 1e-05
    %v2220 = vadd.f32 %v2218, 1e-05
    %v2221 = vrsqrt.pop %v2219
    %v2222 = vrsqrt.pop %v2220
    %v2223 = vmul.f32 %v2207, %v2221
    %v2224 = vmul.f32 %v2208, %v2222
    %v2225 = vlaneseq
    %v2226 = vshrl.u32 %v2225, 7
    %v2227 = vsub.s32 0, %v2226
    %v2228 = vrot.slane %v2187, %v2227
    %v2229 = vmul.f32 %v2223, %v2228
    %v2230 = vmul.f32 %v2224, %v2228
    %v2231 = vmul.f32 %v736, %v2228
    %v2232 = vmul.f32 %v737, %v2228
    %v2233 = vlaneseq
    %v2234 = vshrl.u32 %v2233, 7
    %v2235 = vsub.s32 0, %v2234
    %v2236 = vrot.slane %v2188, %v2235
    %v2237 = vadd.f32 %v2229, %v2236
    %v2238 = vadd.f32 %v2230, %v2236
    %v2239 = vadd.f32 %v2231, %v2236
    %v2240 = vadd.f32 %v2232, %v2236
    %v2241 = vlaneseq
    %v2242 = vshrl.u32 %v2241, 7
    %v2243 = vsub.s32 0, %v2242
    %v2244 = vrot.slane %v2193, %v2243
    %v2246 = vsel %vm45, %v2237, 0
    %v2249 = vsel %vm45, %v2238, 0
    %v2252 = vsel %vm45, %v2239, 0
    %v2255 = vsel %vm45, %v2240, 0
    %2257 = vmatprep.subr.mxu0 0.0
    %2258 = vmatpush1.msra.mxu0 %v2189
    %2259 = vmatprep.subr.mxu0 0.0
    %2260 = vmatpush1.msra.mxu0 %v2190
    %2261 = vmatprep.subr.mxu0 0.0
    %2262 = vmatpush1.msra.mxu0 %v2191
    %2263 = vmatprep.subr.mxu0 0.0
    %2264 = vmatpush1.msra.mxu0 %v2192
    %2265 = vmatprep.subr.mxu0 0.0
    %2266 = vmatpush1.msra.mxu0 0.0
    %2267 = vmatprep.subr.mxu0 0.0
    %2268 = vmatpush1.msra.mxu0 0.0
    %2269 = vmatprep.subr.mxu0 0.0
    %2270 = vmatpush1.msra.mxu0 0.0
    %2271 = vmatprep.subr.mxu0 0.0
    %2272 = vmatpush1.msra.mxu0 0.0
    %2273 = vmatprep.subr.mxu0 0.0
    %2274 = vmatpush1.msra.mxu0 0.0
    %2275 = vmatprep.subr.mxu0 0.0
    %2276 = vmatpush1.msra.mxu0 0.0
    %2277 = vmatprep.subr.mxu0 0.0
    %2278 = vmatpush1.msra.mxu0 0.0
    %2279 = vmatprep.subr.mxu0 0.0
    %2280 = vmatpush1.msra.mxu0 0.0
    %2281 = vmatprep.subr.mxu0 0.0
    %2282 = vmatpush1.msra.mxu0 0.0
    %2283 = vmatprep.subr.mxu0 0.0
    %2284 = vmatpush1.msra.mxu0 0.0
    %2285 = vmatprep.subr.mxu0 0.0
    %2286 = vmatpush1.msra.mxu0 0.0
    %2287 = vmatprep.subr.mxu0 0.0
    %2288 = vmatpush1.msra.mxu0 0.0
    %2289 = vmatprep.subr.mxu0 0.0
    %2290 = vmatpush1.msra.mxu0 0.0
    %2291 = vmatprep.subr.mxu0 0.0
    %2292 = vmatpush1.msra.mxu0 0.0
    %2293 = vmatprep.subr.mxu0 0.0
    %2294 = vmatpush1.msra.mxu0 0.0
    %2295 = vmatprep.subr.mxu0 0.0
    %2296 = vmatpush1.msra.mxu0 0.0
    %2297 = vmatprep.subr.mxu0 0.0
    %2298 = vmatpush1.msra.mxu0 0.0
    %2299 = vmatprep.subr.mxu0 0.0
    %2300 = vmatpush1.msra.mxu0 0.0
    %2301 = vmatprep.subr.mxu0 0.0
    %2302 = vmatpush1.msra.mxu0 0.0
    %2303 = vmatprep.subr.mxu0 0.0
    %2304 = vmatpush1.msra.mxu0 0.0
    %2305 = vmatprep.subr.mxu0 0.0
    %2306 = vmatpush1.msra.mxu0 0.0
    %2307 = vmatprep.subr.mxu0 0.0
    %2308 = vmatpush1.msra.mxu0 0.0
    %2309 = vmatprep.subr.mxu0 0.0
    %2310 = vmatpush1.msra.mxu0 0.0
    %2311 = vmatprep.subr.mxu0 0.0
    %2312 = vmatpush1.msra.mxu0 0.0
    %2313 = vmatprep.subr.mxu0 0.0
    %2314 = vmatpush1.msra.mxu0 0.0
    %2315 = vmatprep.subr.mxu0 0.0
    %2316 = vmatpush1.msra.mxu0 0.0
    %2317 = vmatprep.subr.mxu0 0.0
    %2318 = vmatpush1.msra.mxu0 0.0
    %2319 = vmatprep.subr.mxu0 0.0
    %2320 = vmatpush1.msra.mxu0 0.0
    %2321 = vmatprep.mubr.f32.mxu0 0.0
    %2322 = vmatmul.mubr.f32.gmra.mrb[0].mxu0 %v2246
    %v2323 = vpop.f32.mrb[0].mxu0
    %v2324 = vadd.f32 %v2244, %v2323
    %v2325 = vpop.f32.mrb[0].mxu0
    %2326 = vmatprep.mubr.f32.mxu0 0.0
    %2327 = vmatmul.mubr.f32.gmra.mrb[0].mxu0 %v2249
    %v2328 = vpop.f32.mrb[0].mxu0
    %v2329 = vadd.f32 %v2244, %v2328
    %v2330 = vpop.f32.mrb[0].mxu0
    %2331 = vmatprep.mubr.f32.mxu0 0.0
    %2332 = vmatmul.mubr.f32.gmra.mrb[0].mxu0 %v2252
    %v2333 = vpop.f32.mrb[0].mxu0
    %v2334 = vadd.f32 %v2244, %v2333
    %v2335 = vpop.f32.mrb[0].mxu0
    %2336 = vmatprep.mubr.f32.mxu0 0.0
    %2337 = vmatmul.mubr.f32.gmra.mrb[0].mxu0 %v2255
    %v2338 = vpop.f32.mrb[0].mxu0
    %v2339 = vadd.f32 %v2244, %v2338
    %v2340 = vpop.f32.mrb[0].mxu0
    %2341 = vdwg.mxu0
    %v2342 = vmul.f32 %v2324, %v25
    %v2343 = vmul.f32 %v2329, %v26
    %v2344 = vmul.f32 %v2324, %v27
    %v2345 = vmul.f32 %v2329, %v28
    %v2346 = vmul.f32 %v2324, %v29
    %v2347 = vmul.f32 %v2329, %v30
    %v2348 = vmul.f32 %v2324, %v31
    %v2349 = vmul.f32 %v2329, %v32
    %2352 = vrot.lane.b32.xlu0 %v2334, 96
    %v2353 = vpop.permute.xlu0 %2352
    %2354 = vrot.lane.b32.xlu0 %v2339, 96
    %v2355 = vpop.permute.xlu0 %2354
    %v2357 = vsel %vm45, %v2342, 0
    %v2360 = vsel %vm45, %v2343, 0
    %v2363 = vsel %vm45, %v2344, 0
    %v2366 = vsel %vm45, %v2345, 0
    %v2369 = vsel %vm45, %v2346, 0
    %v2372 = vsel %vm45, %v2347, 0
    %v2375 = vsel %vm45, %v2348, 0
    %v2378 = vsel %vm45, %v2349, 0
    %v2380 = vsel %vm45, %v2353, 0
    %v2382 = vsel %vm45, %v2355, 0
    %2384 = vmatprep.subr.mxu0 0.0
    %2385 = vmatpush1.xpose.msra.mxu0 %v2380
    %2386 = vmatprep.subr.mxu0 0.0
    %2387 = vmatpush1.xpose.msra.mxu0 %v2382
    %2388 = vmatprep.subr.mxu0 0.0
    %2389 = vmatpush1.xpose.msra.mxu0 0.0
    %2390 = vmatprep.subr.mxu0 0.0
    %2391 = vmatpush1.xpose.msra.mxu0 0.0
    %2392 = vmatprep.subr.mxu0 0.0
    %2393 = vmatpush1.xpose.msra.mxu0 0.0
    %2394 = vmatprep.subr.mxu0 0.0
    %2395 = vmatpush1.xpose.msra.mxu0 0.0
    %2396 = vmatprep.subr.mxu0 0.0
    %2397 = vmatpush1.xpose.msra.mxu0 0.0
    %2398 = vmatprep.subr.mxu0 0.0
    %2399 = vmatpush1.xpose.msra.mxu0 0.0
    %2400 = vmatprep.subr.mxu0 0.0
    %2401 = vmatpush1.xpose.msra.mxu0 0.0
    %2402 = vmatprep.subr.mxu0 0.0
    %2403 = vmatpush1.xpose.msra.mxu0 0.0
    %2404 = vmatprep.subr.mxu0 0.0
    %2405 = vmatpush1.xpose.msra.mxu0 0.0
    %2406 = vmatprep.subr.mxu0 0.0
    %2407 = vmatpush1.xpose.msra.mxu0 0.0
    %2408 = vmatprep.subr.mxu0 0.0
    %2409 = vmatpush1.xpose.msra.mxu0 0.0
    %2410 = vmatprep.subr.mxu0 0.0
    %2411 = vmatpush1.xpose.msra.mxu0 0.0
    %2412 = vmatprep.subr.mxu0 0.0
    %2413 = vmatpush1.xpose.msra.mxu0 0.0
    %2414 = vmatprep.subr.mxu0 0.0
    %2415 = vmatpush1.xpose.msra.mxu0 0.0
    %2416 = vmatprep.subr.mxu0 0.0
    %2417 = vmatpush1.xpose.msra.mxu0 0.0
    %2418 = vmatprep.subr.mxu0 0.0
    %2419 = vmatpush1.xpose.msra.mxu0 0.0
    %2420 = vmatprep.subr.mxu0 0.0
    %2421 = vmatpush1.xpose.msra.mxu0 0.0
    %2422 = vmatprep.subr.mxu0 0.0
    %2423 = vmatpush1.xpose.msra.mxu0 0.0
    %2424 = vmatprep.subr.mxu0 0.0
    %2425 = vmatpush1.xpose.msra.mxu0 0.0
    %2426 = vmatprep.subr.mxu0 0.0
    %2427 = vmatpush1.xpose.msra.mxu0 0.0
    %2428 = vmatprep.subr.mxu0 0.0
    %2429 = vmatpush1.xpose.msra.mxu0 0.0
    %2430 = vmatprep.subr.mxu0 0.0
    %2431 = vmatpush1.xpose.msra.mxu0 0.0
    %2432 = vmatprep.subr.mxu0 0.0
    %2433 = vmatpush1.xpose.msra.mxu0 0.0
    %2434 = vmatprep.subr.mxu0 0.0
    %2435 = vmatpush1.xpose.msra.mxu0 0.0
    %2436 = vmatprep.subr.mxu0 0.0
    %2437 = vmatpush1.xpose.msra.mxu0 0.0
    %2438 = vmatprep.subr.mxu0 0.0
    %2439 = vmatpush1.xpose.msra.mxu0 0.0
    %2440 = vmatprep.subr.mxu0 0.0
    %2441 = vmatpush1.xpose.msra.mxu0 0.0
    %2442 = vmatprep.subr.mxu0 0.0
    %2443 = vmatpush1.xpose.msra.mxu0 0.0
    %2444 = vmatprep.subr.mxu0 0.0
    %2445 = vmatpush1.xpose.msra.mxu0 0.0
    %2446 = vmatprep.subr.mxu0 0.0
    %2447 = vmatpush1.xpose.msra.mxu0 0.0
    %2448 = vmatprep.mubr.f32.mxu0 0.0
    %2449 = vmatmul.mubr.f32.gmra.mrb[0].mxu0 %v2357
    %v2450 = vpop.f32.mrb[0].mxu0
    %v2451 = vadd.f32 %v870, %v2450
    %v2452 = vpop.f32.mrb[0].mxu0
    %2453 = vmatprep.mubr.f32.mxu0 0.0
    %2454 = vmatmul.mubr.f32.gmra.mrb[0].mxu0 %v2360
    %v2455 = vpop.f32.mrb[0].mxu0
    %v2456 = vadd.f32 %v872, %v2455
    %v2457 = vpop.f32.mrb[0].mxu0
    %2458 = vmatprep.mubr.f32.mxu0 0.0
    %2459 = vmatmul.mubr.f32.gmra.mrb[0].mxu0 %v2363
    %v2460 = vpop.f32.mrb[0].mxu0
    %v2461 = vadd.f32 %v874, %v2460
    %v2462 = vpop.f32.mrb[0].mxu0
    %2463 = vmatprep.mubr.f32.mxu0 0.0
    %2464 = vmatmul.mubr.f32.gmra.mrb[0].mxu0 %v2366
    %v2465 = vpop.f32.mrb[0].mxu0
    %v2466 = vadd.f32 %v876, %v2465
    %v2467 = vpop.f32.mrb[0].mxu0
    %2468 = vmatprep.mubr.f32.mxu0 0.0
    %2469 = vmatmul.mubr.f32.gmra.mrb[0].mxu0 %v2369
    %v2470 = vpop.f32.mrb[0].mxu0
    %v2471 = vadd.f32 %v878, %v2470
    %v2472 = vpop.f32.mrb[0].mxu0
    %2473 = vmatprep.mubr.f32.mxu0 0.0
    %2474 = vmatmul.mubr.f32.gmra.mrb[0].mxu0 %v2372
    %v2475 = vpop.f32.mrb[0].mxu0
    %v2476 = vadd.f32 %v880, %v2475
    %v2477 = vpop.f32.mrb[0].mxu0
    %2478 = vmatprep.mubr.f32.mxu0 0.0
    %2479 = vmatmul.mubr.f32.gmra.mrb[0].mxu0 %v2375
    %v2480 = vpop.f32.mrb[0].mxu0
    %v2481 = vadd.f32 %v882, %v2480
    %v2482 = vpop.f32.mrb[0].mxu0
    %2483 = vmatprep.mubr.f32.mxu0 0.0
    %2484 = vmatmul.mubr.f32.gmra.mrb[0].mxu0 %v2378
    %v2485 = vpop.f32.mrb[0].mxu0
    %v2486 = vadd.f32 %v884, %v2485
    %v2487 = vpop.f32.mrb[0].mxu0
    %2488 = vdwg.mxu0
    %v2489 = vsel %vm349, %v2451, -inf
    %2490 = vmax.xlane.f32.xlu0 %v2489
    %v2491 = vpop.xlane.xlu0 %2490
    %v2492 = vsel %vm349, %v2456, -inf
    %2493 = vmax.xlane.f32.xlu0 %v2492
    %v2494 = vpop.xlane.xlu0 %2493
    %v2495 = vsel %vm349, %v2461, -inf
    %2496 = vmax.xlane.f32.xlu0 %v2495
    %v2497 = vpop.xlane.xlu0 %2496
    %v2498 = vsel %vm349, %v2466, -inf
    %2499 = vmax.xlane.f32.xlu0 %v2498
    %v2500 = vpop.xlane.xlu0 %2499
    %v2501 = vsel %vm349, %v2471, -inf
    %2502 = vmax.xlane.f32.xlu0 %v2501
    %v2503 = vpop.xlane.xlu0 %2502
    %v2504 = vsel %vm349, %v2476, -inf
    %2505 = vmax.xlane.f32.xlu0 %v2504
    %v2506 = vpop.xlane.xlu0 %2505
    %v2507 = vsel %vm349, %v2481, -inf
    %2508 = vmax.xlane.f32.xlu0 %v2507
    %v2509 = vpop.xlane.xlu0 %2508
    %v2510 = vsel %vm349, %v2486, -inf
    %2511 = vmax.xlane.f32.xlu0 %v2510
    %v2512 = vpop.xlane.xlu0 %2511
    %v2513 = vsub.f32 %v2451, %v2491
    %v2514 = vsub.f32 %v2456, %v2494
    %v2515 = vsub.f32 %v2461, %v2497
    %v2516 = vsub.f32 %v2466, %v2500
    %v2517 = vsub.f32 %v2471, %v2503
    %v2518 = vsub.f32 %v2476, %v2506
    %v2519 = vsub.f32 %v2481, %v2509
    %v2520 = vsub.f32 %v2486, %v2512
    %v2521 = vmul.f32 %v2513, 1.442695
    %v2522 = vpow.pop %v2521
    %v2523 = vmul.f32 %v2514, 1.442695
    %v2524 = vpow.pop %v2523
    %v2525 = vmul.f32 %v2515, 1.442695
    %v2526 = vpow.pop %v2525
    %v2527 = vmul.f32 %v2516, 1.442695
    %v2528 = vpow.pop %v2527
    %v2529 = vmul.f32 %v2517, 1.442695
    %v2530 = vpow.pop %v2529
    %v2531 = vmul.f32 %v2518, 1.442695
    %v2532 = vpow.pop %v2531
    %v2533 = vmul.f32 %v2519, 1.442695
    %v2534 = vpow.pop %v2533
    %v2535 = vmul.f32 %v2520, 1.442695
    %v2536 = vpow.pop %v2535
    %v2537 = vsel %vm349, %v2522, 0.0
    %2538 = vadd.xlane.f32.xlu0 %v2537
    %v2539 = vpop.xlane.xlu0 %2538
    %v2540 = vsel %vm349, %v2524, 0.0
    %2541 = vadd.xlane.f32.xlu0 %v2540
    %v2542 = vpop.xlane.xlu0 %2541
    %v2543 = vsel %vm349, %v2526, 0.0
    %2544 = vadd.xlane.f32.xlu0 %v2543
    %v2545 = vpop.xlane.xlu0 %2544
    %v2546 = vsel %vm349, %v2528, 0.0
    %2547 = vadd.xlane.f32.xlu0 %v2546
    %v2548 = vpop.xlane.xlu0 %2547
    %v2549 = vsel %vm349, %v2530, 0.0
    %2550 = vadd.xlane.f32.xlu0 %v2549
    %v2551 = vpop.xlane.xlu0 %2550
    %v2552 = vsel %vm349, %v2532, 0.0
    %2553 = vadd.xlane.f32.xlu0 %v2552
    %v2554 = vpop.xlane.xlu0 %2553
    %v2555 = vsel %vm349, %v2534, 0.0
    %2556 = vadd.xlane.f32.xlu0 %v2555
    %v2557 = vpop.xlane.xlu0 %2556
    %v2558 = vsel %vm349, %v2536, 0.0
    %2559 = vadd.xlane.f32.xlu0 %v2558
    %v2560 = vpop.xlane.xlu0 %2559
    %v2561 = vrcp.pop %v2539
    %v2562 = vmul.f32 %v2522, %v2561
    %v2563 = vrcp.pop %v2542
    %v2564 = vmul.f32 %v2524, %v2563
    %v2565 = vrcp.pop %v2545
    %v2566 = vmul.f32 %v2526, %v2565
    %v2567 = vrcp.pop %v2548
    %v2568 = vmul.f32 %v2528, %v2567
    %v2569 = vrcp.pop %v2551
    %v2570 = vmul.f32 %v2530, %v2569
    %v2571 = vrcp.pop %v2554
    %v2572 = vmul.f32 %v2532, %v2571
    %v2573 = vrcp.pop %v2557
    %v2574 = vmul.f32 %v2534, %v2573
    %v2575 = vrcp.pop %v2560
    %v2576 = vmul.f32 %v2536, %v2575
    %2577 = vrot.lane.b32.xlu0 %v2334, 64
    %v2578 = vpop.permute.xlu0 %2577
    %2579 = vrot.lane.b32.xlu0 %v2339, 64
    %v2580 = vpop.permute.xlu0 %2579
    %v2584 = vsel %vm349, %v2562, 0
    %v2587 = vsel %vm349, %v2564, 0
    %v2590 = vsel %vm349, %v2566, 0
    %v2593 = vsel %vm349, %v2568, 0
    %v2596 = vsel %vm349, %v2570, 0
    %v2599 = vsel %vm349, %v2572, 0
    %v2602 = vsel %vm349, %v2574, 0
    %v2605 = vsel %vm349, %v2576, 0
    %2607 = vmatprep.subr.mxu0 0.0
    %2608 = vmatpush1.msra.mxu0 %v2578
    %2609 = vmatprep.subr.mxu0 0.0
    %2610 = vmatpush1.msra.mxu0 %v2580
    %2611 = vmatprep.subr.mxu0 0.0
    %2612 = vmatpush1.msra.mxu0 0.0
    %2613 = vmatprep.subr.mxu0 0.0
    %2614 = vmatpush1.msra.mxu0 0.0
    %2615 = vmatprep.subr.mxu0 0.0
    %2616 = vmatpush1.msra.mxu0 0.0
    %2617 = vmatprep.subr.mxu0 0.0
    %2618 = vmatpush1.msra.mxu0 0.0
    %2619 = vmatprep.subr.mxu0 0.0
    %2620 = vmatpush1.msra.mxu0 0.0
    %2621 = vmatprep.subr.mxu0 0.0
    %2622 = vmatpush1.msra.mxu0 0.0
    %2623 = vmatprep.subr.mxu0 0.0
    %2624 = vmatpush1.msra.mxu0 0.0
    %2625 = vmatprep.subr.mxu0 0.0
    %2626 = vmatpush1.msra.mxu0 0.0
    %2627 = vmatprep.subr.mxu0 0.0
    %2628 = vmatpush1.msra.mxu0 0.0
    %2629 = vmatprep.subr.mxu0 0.0
    %2630 = vmatpush1.msra.mxu0 0.0
    %2631 = vmatprep.subr.mxu0 0.0
    %2632 = vmatpush1.msra.mxu0 0.0
    %2633 = vmatprep.subr.mxu0 0.0
    %2634 = vmatpush1.msra.mxu0 0.0
    %2635 = vmatprep.subr.mxu0 0.0
    %2636 = vmatpush1.msra.mxu0 0.0
    %2637 = vmatprep.subr.mxu0 0.0
    %2638 = vmatpush1.msra.mxu0 0.0
    %2639 = vmatprep.subr.mxu0 0.0
    %2640 = vmatpush1.msra.mxu0 0.0
    %2641 = vmatprep.subr.mxu0 0.0
    %2642 = vmatpush1.msra.mxu0 0.0
    %2643 = vmatprep.subr.mxu0 0.0
    %2644 = vmatpush1.msra.mxu0 0.0
    %2645 = vmatprep.subr.mxu0 0.0
    %2646 = vmatpush1.msra.mxu0 0.0
    %2647 = vmatprep.subr.mxu0 0.0
    %2648 = vmatpush1.msra.mxu0 0.0
    %2649 = vmatprep.subr.mxu0 0.0
    %2650 = vmatpush1.msra.mxu0 0.0
    %2651 = vmatprep.subr.mxu0 0.0
    %2652 = vmatpush1.msra.mxu0 0.0
    %2653 = vmatprep.subr.mxu0 0.0
    %2654 = vmatpush1.msra.mxu0 0.0
    %2655 = vmatprep.subr.mxu0 0.0
    %2656 = vmatpush1.msra.mxu0 0.0
    %2657 = vmatprep.subr.mxu0 0.0
    %2658 = vmatpush1.msra.mxu0 0.0
    %2659 = vmatprep.subr.mxu0 0.0
    %2660 = vmatpush1.msra.mxu0 0.0
    %2661 = vmatprep.subr.mxu0 0.0
    %2662 = vmatpush1.msra.mxu0 0.0
    %2663 = vmatprep.subr.mxu0 0.0
    %2664 = vmatpush1.msra.mxu0 0.0
    %2665 = vmatprep.subr.mxu0 0.0
    %2666 = vmatpush1.msra.mxu0 0.0
    %2667 = vmatprep.subr.mxu0 0.0
    %2668 = vmatpush1.msra.mxu0 0.0
    %2669 = vmatprep.subr.mxu0 0.0
    %2670 = vmatpush1.msra.mxu0 0.0
    %2671 = vmatprep.mubr.f32.mxu0 0.0
    %2672 = vmatmul.mubr.f32.gmra.mrb[0].mxu0 %v2584
    %v2673 = vpop.f32.mrb[0].mxu0
    %v2674 = vadd.f32 0.0, %v2673
    %v2675 = vpop.f32.mrb[0].mxu0
    %2676 = vmatprep.mubr.f32.mxu0 0.0
    %2677 = vmatmul.mubr.f32.gmra.mrb[0].mxu0 %v2587
    %v2678 = vpop.f32.mrb[0].mxu0
    %v2679 = vadd.f32 0.0, %v2678
    %v2680 = vpop.f32.mrb[0].mxu0
    %2681 = vmatprep.mubr.f32.mxu0 0.0
    %2682 = vmatmul.mubr.f32.gmra.mrb[0].mxu0 %v2590
    %v2683 = vpop.f32.mrb[0].mxu0
    %v2684 = vadd.f32 0.0, %v2683
    %v2685 = vpop.f32.mrb[0].mxu0
    %2686 = vmatprep.mubr.f32.mxu0 0.0
    %2687 = vmatmul.mubr.f32.gmra.mrb[0].mxu0 %v2593
    %v2688 = vpop.f32.mrb[0].mxu0
    %v2689 = vadd.f32 0.0, %v2688
    %v2690 = vpop.f32.mrb[0].mxu0
    %2691 = vmatprep.mubr.f32.mxu0 0.0
    %2692 = vmatmul.mubr.f32.gmra.mrb[0].mxu0 %v2596
    %v2693 = vpop.f32.mrb[0].mxu0
    %v2694 = vadd.f32 0.0, %v2693
    %v2695 = vpop.f32.mrb[0].mxu0
    %2696 = vmatprep.mubr.f32.mxu0 0.0
    %2697 = vmatmul.mubr.f32.gmra.mrb[0].mxu0 %v2599
    %v2698 = vpop.f32.mrb[0].mxu0
    %v2699 = vadd.f32 0.0, %v2698
    %v2700 = vpop.f32.mrb[0].mxu0
    %2701 = vmatprep.mubr.f32.mxu0 0.0
    %2702 = vmatmul.mubr.f32.gmra.mrb[0].mxu0 %v2602
    %v2703 = vpop.f32.mrb[0].mxu0
    %v2704 = vadd.f32 0.0, %v2703
    %v2705 = vpop.f32.mrb[0].mxu0
    %2706 = vmatprep.mubr.f32.mxu0 0.0
    %2707 = vmatmul.mubr.f32.gmra.mrb[0].mxu0 %v2605
    %v2708 = vpop.f32.mrb[0].mxu0
    %v2709 = vadd.f32 0.0, %v2708
    %v2710 = vpop.f32.mrb[0].mxu0
    %2711 = vdwg.mxu0
    %v2712 = vmul.f32 %v2674, %v25
    %v2713 = vmul.f32 %v2679, %v26
    %v2714 = vmul.f32 %v2684, %v27
    %v2715 = vmul.f32 %v2689, %v28
    %v2716 = vmul.f32 %v2694, %v29
    %v2717 = vmul.f32 %v2699, %v30
    %v2718 = vmul.f32 %v2704, %v31
    %v2719 = vmul.f32 %v2709, %v32
    %v2720 = vadd.f32 %v2712, %v2714
    %v2721 = vadd.f32 %v2713, %v2715
    %v2722 = vadd.f32 %v2720, %v2716
    %v2723 = vadd.f32 %v2721, %v2717
    %v2724 = vadd.f32 %v2722, %v2718
    %v2725 = vadd.f32 %v2723, %v2719
    %v2726 = vlaneseq
    %v2727 = vshrl.u32 %v2726, 7
    %v2728 = vsub.s32 0, %v2727
    %v2729 = vrot.slane %v2198, %v2728
    %v2731 = vsel %vm45, %v2724, 0
    %v2734 = vsel %vm45, %v2725, 0
    %2736 = vmatprep.subr.mxu0 0.0
    %2737 = vmatpush1.msra.mxu0 %v2194
    %2738 = vmatprep.subr.mxu0 0.0
    %2739 = vmatpush1.msra.mxu0 %v2195
    %2740 = vmatprep.subr.mxu0 0.0
    %2741 = vmatpush1.msra.mxu0 %v2196
    %2742 = vmatprep.subr.mxu0 0.0
    %2743 = vmatpush1.msra.mxu0 %v2197
    %2744 = vmatprep.subr.mxu0 0.0
    %2745 = vmatpush1.msra.mxu0 0.0
    %2746 = vmatprep.subr.mxu0 0.0
    %2747 = vmatpush1.msra.mxu0 0.0
    %2748 = vmatprep.subr.mxu0 0.0
    %2749 = vmatpush1.msra.mxu0 0.0
    %2750 = vmatprep.subr.mxu0 0.0
    %2751 = vmatpush1.msra.mxu0 0.0
    %2752 = vmatprep.subr.mxu0 0.0
    %2753 = vmatpush1.msra.mxu0 0.0
    %2754 = vmatprep.subr.mxu0 0.0
    %2755 = vmatpush1.msra.mxu0 0.0
    %2756 = vmatprep.subr.mxu0 0.0
    %2757 = vmatpush1.msra.mxu0 0.0
    %2758 = vmatprep.subr.mxu0 0.0
    %2759 = vmatpush1.msra.mxu0 0.0
    %2760 = vmatprep.subr.mxu0 0.0
    %2761 = vmatpush1.msra.mxu0 0.0
    %2762 = vmatprep.subr.mxu0 0.0
    %2763 = vmatpush1.msra.mxu0 0.0
    %2764 = vmatprep.subr.mxu0 0.0
    %2765 = vmatpush1.msra.mxu0 0.0
    %2766 = vmatprep.subr.mxu0 0.0
    %2767 = vmatpush1.msra.mxu0 0.0
    %2768 = vmatprep.subr.mxu0 0.0
    %2769 = vmatpush1.msra.mxu0 0.0
    %2770 = vmatprep.subr.mxu0 0.0
    %2771 = vmatpush1.msra.mxu0 0.0
    %2772 = vmatprep.subr.mxu0 0.0
    %2773 = vmatpush1.msra.mxu0 0.0
    %2774 = vmatprep.subr.mxu0 0.0
    %2775 = vmatpush1.msra.mxu0 0.0
    %2776 = vmatprep.subr.mxu0 0.0
    %2777 = vmatpush1.msra.mxu0 0.0
    %2778 = vmatprep.subr.mxu0 0.0
    %2779 = vmatpush1.msra.mxu0 0.0
    %2780 = vmatprep.subr.mxu0 0.0
    %2781 = vmatpush1.msra.mxu0 0.0
    %2782 = vmatprep.subr.mxu0 0.0
    %2783 = vmatpush1.msra.mxu0 0.0
    %2784 = vmatprep.subr.mxu0 0.0
    %2785 = vmatpush1.msra.mxu0 0.0
    %2786 = vmatprep.subr.mxu0 0.0
    %2787 = vmatpush1.msra.mxu0 0.0
    %2788 = vmatprep.subr.mxu0 0.0
    %2789 = vmatpush1.msra.mxu0 0.0
    %2790 = vmatprep.subr.mxu0 0.0
    %2791 = vmatpush1.msra.mxu0 0.0
    %2792 = vmatprep.subr.mxu0 0.0
    %2793 = vmatpush1.msra.mxu0 0.0
    %2794 = vmatprep.subr.mxu0 0.0
    %2795 = vmatpush1.msra.mxu0 0.0
    %2796 = vmatprep.subr.mxu0 0.0
    %2797 = vmatpush1.msra.mxu0 0.0
    %2798 = vmatprep.subr.mxu0 0.0
    %2799 = vmatpush1.msra.mxu0 0.0
    %2800 = vmatprep.mubr.f32.mxu0 0.0
    %2801 = vmatmul.mubr.f32.gmra.mrb[0].mxu0 %v2731
    %v2802 = vpop.f32.mrb[0].mxu0
    %v2803 = vadd.f32 %v2729, %v2802
    %v2804 = vpop.f32.mrb[0].mxu0
    %2805 = vmatprep.mubr.f32.mxu0 0.0
    %2806 = vmatmul.mubr.f32.gmra.mrb[0].mxu0 %v2734
    %v2807 = vpop.f32.mrb[0].mxu0
    %v2808 = vadd.f32 %v2729, %v2807
    %v2809 = vpop.f32.mrb[0].mxu0
    %2810 = vdwg.mxu0
    %v2811 = vadd.f32 %v2185, %v2803
    %v2812 = vadd.f32 %v2186, %v2808
    %v2813 = vld [vmem:[%s4 + $0x1f] sm:$0x1]
    %v2814 = vld [vmem:[%s4 + $0x22] sm:$0x1]
    %v2815 = vld [vmem:[%s3 + $0x1a0] sm:$0xff]
    %v2816 = vld [vmem:[%s3 + $0x1a8] sm:$0xff]
    %v2817 = vld [vmem:[%s3 + $0x1b0] sm:$0xff]
    %v2818 = vld [vmem:[%s3 + $0x1b8] sm:$0xff]
    %v2819 = vld [vmem:[%s4 + $0x19] sm:$0x1]
    %v2820 = vld [vmem:[%s3 + $0x220] sm:$0xff]
    %v2821 = vld [vmem:[%s3 + $0x228] sm:$0xff]
    %v2822 = vld [vmem:[%s3 + $0x230] sm:$0xff]
    %v2823 = vld [vmem:[%s3 + $0x238] sm:$0xff]
    %v2824 = vld [vmem:[%s3 + $0x240] sm:$0xff]
    %v2825 = vld [vmem:[%s3 + $0x248] sm:$0xff]
    %v2826 = vld [vmem:[%s3 + $0x250] sm:$0xff]
    %v2827 = vld [vmem:[%s3 + $0x258] sm:$0xff]
    %v2828 = vld [vmem:[%s4 + $0x1c] sm:$0x1]
    %v2829 = vsel %vm45, %v2811, 0.0
    %2830 = vadd.xlane.f32.xlu0 %v2829
    %v2831 = vpop.xlane.xlu0 %2830
    %v2832 = vsel %vm45, %v2812, 0.0
    %2833 = vadd.xlane.f32.xlu0 %v2832
    %v2834 = vpop.xlane.xlu0 %2833
    %v2835 = vmul.f32 %v2831, %v52
    %v2836 = vmul.f32 %v2834, %v52
    %v2837 = vsub.f32 %v2811, %v2835
    %v2838 = vsub.f32 %v2812, %v2836
    %v2839 = vmul.f32 %v2837, %v2837
    %v2840 = vmul.f32 %v2838, %v2838
    %v2841 = vsel %vm45, %v2839, 0.0
    %2842 = vadd.xlane.f32.xlu0 %v2841
    %v2843 = vpop.xlane.xlu0 %2842
    %v2844 = vsel %vm45, %v2840, 0.0
    %2845 = vadd.xlane.f32.xlu0 %v2844
    %v2846 = vpop.xlane.xlu0 %2845
    %v2847 = vmul.f32 %v2843, %v52
    %v2848 = vmul.f32 %v2846, %v52
    %v2849 = vadd.f32 %v2847, 1e-05
    %v2850 = vadd.f32 %v2848, 1e-05
    %v2851 = vrsqrt.pop %v2849
    %v2852 = vrsqrt.pop %v2850
    %v2853 = vmul.f32 %v2837, %v2851
    %v2854 = vmul.f32 %v2838, %v2852
    %v2855 = vlaneseq
    %v2856 = vshrl.u32 %v2855, 7
    %v2857 = vsub.s32 0, %v2856
    %v2858 = vrot.slane %v2813, %v2857
    %v2859 = vmul.f32 %v2853, %v2858
    %v2860 = vmul.f32 %v2854, %v2858
    %v2861 = vlaneseq
    %v2862 = vshrl.u32 %v2861, 7
    %v2863 = vsub.s32 0, %v2862
    %v2864 = vrot.slane %v2814, %v2863
    %v2865 = vadd.f32 %v2859, %v2864
    %v2866 = vadd.f32 %v2860, %v2864
    %v2867 = vlaneseq
    %v2868 = vshrl.u32 %v2867, 7
    %v2869 = vsub.s32 0, %v2868
    %v2870 = vrot.slane %v2819, %v2869
    %v2872 = vsel %vm45, %v2865, 0
    %v2875 = vsel %vm45, %v2866, 0
    %2877 = vmatprep.subr.mxu0 0.0
    %2878 = vmatpush1.msra.mxu0 %v2815
    %2879 = vmatprep.subr.mxu0 0.0
    %2880 = vmatpush1.msra.mxu0 %v2816
    %2881 = vmatprep.subr.mxu0 0.0
    %2882 = vmatpush1.msra.mxu0 %v2817
    %2883 = vmatprep.subr.mxu0 0.0
    %2884 = vmatpush1.msra.mxu0 %v2818
    %2885 = vmatprep.subr.mxu0 0.0
    %2886 = vmatpush1.msra.mxu0 0.0
    %2887 = vmatprep.subr.mxu0 0.0
    %2888 = vmatpush1.msra.mxu0 0.0
    %2889 = vmatprep.subr.mxu0 0.0
    %2890 = vmatpush1.msra.mxu0 0.0
    %2891 = vmatprep.subr.mxu0 0.0
    %2892 = vmatpush1.msra.mxu0 0.0
    %2893 = vmatprep.subr.mxu0 0.0
    %2894 = vmatpush1.msra.mxu0 0.0
    %2895 = vmatprep.subr.mxu0 0.0
    %2896 = vmatpush1.msra.mxu0 0.0
    %2897 = vmatprep.subr.mxu0 0.0
    %2898 = vmatpush1.msra.mxu0 0.0
    %2899 = vmatprep.subr.mxu0 0.0
    %2900 = vmatpush1.msra.mxu0 0.0
    %2901 = vmatprep.subr.mxu0 0.0
    %2902 = vmatpush1.msra.mxu0 0.0
    %2903 = vmatprep.subr.mxu0 0.0
    %2904 = vmatpush1.msra.mxu0 0.0
    %2905 = vmatprep.subr.mxu0 0.0
    %2906 = vmatpush1.msra.mxu0 0.0
    %2907 = vmatprep.subr.mxu0 0.0
    %2908 = vmatpush1.msra.mxu0 0.0
    %2909 = vmatprep.subr.mxu0 0.0
    %2910 = vmatpush1.msra.mxu0 0.0
    %2911 = vmatprep.subr.mxu0 0.0
    %2912 = vmatpush1.msra.mxu0 0.0
    %2913 = vmatprep.subr.mxu0 0.0
    %2914 = vmatpush1.msra.mxu0 0.0
    %2915 = vmatprep.subr.mxu0 0.0
    %2916 = vmatpush1.msra.mxu0 0.0
    %2917 = vmatprep.subr.mxu0 0.0
    %2918 = vmatpush1.msra.mxu0 0.0
    %2919 = vmatprep.subr.mxu0 0.0
    %2920 = vmatpush1.msra.mxu0 0.0
    %2921 = vmatprep.subr.mxu0 0.0
    %2922 = vmatpush1.msra.mxu0 0.0
    %2923 = vmatprep.subr.mxu0 0.0
    %2924 = vmatpush1.msra.mxu0 0.0
    %2925 = vmatprep.subr.mxu0 0.0
    %2926 = vmatpush1.msra.mxu0 0.0
    %2927 = vmatprep.subr.mxu0 0.0
    %2928 = vmatpush1.msra.mxu0 0.0
    %2929 = vmatprep.subr.mxu0 0.0
    %2930 = vmatpush1.msra.mxu0 0.0
    %2931 = vmatprep.subr.mxu0 0.0
    %2932 = vmatpush1.msra.mxu0 0.0
    %2933 = vmatprep.subr.mxu0 0.0
    %2934 = vmatpush1.msra.mxu0 0.0
    %2935 = vmatprep.subr.mxu0 0.0
    %2936 = vmatpush1.msra.mxu0 0.0
    %2937 = vmatprep.subr.mxu0 0.0
    %2938 = vmatpush1.msra.mxu0 0.0
    %2939 = vmatprep.subr.mxu0 0.0
    %2940 = vmatpush1.msra.mxu0 0.0
    %2941 = vmatprep.mubr.f32.mxu0 0.0
    %2942 = vmatmul.mubr.f32.gmra.mrb[0].mxu0 %v2872
    %v2943 = vpop.f32.mrb[0].mxu0
    %v2944 = vadd.f32 %v2870, %v2943
    %v2945 = vpop.f32.mrb[0].mxu0
    %2946 = vmatprep.mubr.f32.mxu0 0.0
    %2947 = vmatmul.mubr.f32.gmra.mrb[0].mxu0 %v2875
    %v2948 = vpop.f32.mrb[0].mxu0
    %v2949 = vadd.f32 %v2870, %v2948
    %v2950 = vpop.f32.mrb[0].mxu0
    %2951 = vdwg.mxu0
    %v2952 = vmax.f32 %v2944, 0.0
    %v2953 = vmax.f32 %v2949, 0.0
    %v2955 = vsel %vm1491, %v2952, 0
    %v2958 = vsel %vm1491, %v2953, 0
    %2960 = vmatprep.subr.mxu0 0.0
    %2961 = vmatpush1.msra.mxu0 %v2820
    %2962 = vmatprep.subr.mxu0 0.0
    %2963 = vmatpush1.msra.mxu0 %v2821
    %2964 = vmatprep.subr.mxu0 0.0
    %2965 = vmatpush1.msra.mxu0 %v2822
    %2966 = vmatprep.subr.mxu0 0.0
    %2967 = vmatpush1.msra.mxu0 %v2823
    %2968 = vmatprep.subr.mxu0 0.0
    %2969 = vmatpush1.msra.mxu0 %v2824
    %2970 = vmatprep.subr.mxu0 0.0
    %2971 = vmatpush1.msra.mxu0 %v2825
    %2972 = vmatprep.subr.mxu0 0.0
    %2973 = vmatpush1.msra.mxu0 %v2826
    %2974 = vmatprep.subr.mxu0 0.0
    %2975 = vmatpush1.msra.mxu0 %v2827
    %2976 = vmatprep.subr.mxu0 0.0
    %2977 = vmatpush1.msra.mxu0 0.0
    %2978 = vmatprep.subr.mxu0 0.0
    %2979 = vmatpush1.msra.mxu0 0.0
    %2980 = vmatprep.subr.mxu0 0.0
    %2981 = vmatpush1.msra.mxu0 0.0
    %2982 = vmatprep.subr.mxu0 0.0
    %2983 = vmatpush1.msra.mxu0 0.0
    %2984 = vmatprep.subr.mxu0 0.0
    %2985 = vmatpush1.msra.mxu0 0.0
    %2986 = vmatprep.subr.mxu0 0.0
    %2987 = vmatpush1.msra.mxu0 0.0
    %2988 = vmatprep.subr.mxu0 0.0
    %2989 = vmatpush1.msra.mxu0 0.0
    %2990 = vmatprep.subr.mxu0 0.0
    %2991 = vmatpush1.msra.mxu0 0.0
    %2992 = vmatprep.subr.mxu0 0.0
    %2993 = vmatpush1.msra.mxu0 0.0
    %2994 = vmatprep.subr.mxu0 0.0
    %2995 = vmatpush1.msra.mxu0 0.0
    %2996 = vmatprep.subr.mxu0 0.0
    %2997 = vmatpush1.msra.mxu0 0.0
    %2998 = vmatprep.subr.mxu0 0.0
    %2999 = vmatpush1.msra.mxu0 0.0
    %3000 = vmatprep.subr.mxu0 0.0
    %3001 = vmatpush1.msra.mxu0 0.0
    %3002 = vmatprep.subr.mxu0 0.0
    %3003 = vmatpush1.msra.mxu0 0.0
    %3004 = vmatprep.subr.mxu0 0.0
    %3005 = vmatpush1.msra.mxu0 0.0
    %3006 = vmatprep.subr.mxu0 0.0
    %3007 = vmatpush1.msra.mxu0 0.0
    %3008 = vmatprep.subr.mxu0 0.0
    %3009 = vmatpush1.msra.mxu0 0.0
    %3010 = vmatprep.subr.mxu0 0.0
    %3011 = vmatpush1.msra.mxu0 0.0
    %3012 = vmatprep.subr.mxu0 0.0
    %3013 = vmatpush1.msra.mxu0 0.0
    %3014 = vmatprep.subr.mxu0 0.0
    %3015 = vmatpush1.msra.mxu0 0.0
    %3016 = vmatprep.subr.mxu0 0.0
    %3017 = vmatpush1.msra.mxu0 0.0
    %3018 = vmatprep.subr.mxu0 0.0
    %3019 = vmatpush1.msra.mxu0 0.0
    %3020 = vmatprep.subr.mxu0 0.0
    %3021 = vmatpush1.msra.mxu0 0.0
    %3022 = vmatprep.subr.mxu0 0.0
    %3023 = vmatpush1.msra.mxu0 0.0
    %3024 = vmatprep.mubr.f32.mxu0 0.0
    %3025 = vmatmul.mubr.f32.gmra.mrb[0].mxu0 %v2955
    %v3026 = vpop.f32.mrb[0].mxu0
    %v3027 = vadd.f32 0.0, %v3026
    %v3028 = vpop.f32.mrb[0].mxu0
    %3029 = vmatprep.mubr.f32.mxu0 0.0
    %3030 = vmatmul.mubr.f32.gmra.mrb[0].mxu0 %v2958
    %v3031 = vpop.f32.mrb[0].mxu0
    %v3032 = vadd.f32 0.0, %v3031
    %v3033 = vpop.f32.mrb[0].mxu0
    %3034 = vdwg.mxu0
    %v3035 = vadd.f32 %v2811, %v3027
    %v3036 = vadd.f32 %v2812, %v3032
    %v3037 = vlaneseq
    %v3038 = vshrl.u32 %v3037, 7
    %v3039 = vsub.s32 0, %v3038
    %v3040 = vrot.slane %v2828, %v3039
    %v3041 = vadd.f32 %v3035, %v3040
    %v3042 = vadd.f32 %v3036, %v3040
    %v3043 = vld [vmem:[%s4 + $0x10] sm:$0x1]
    %v3044 = vld [vmem:[%s4 + $0x16] sm:$0x1]
    %v3045 = vld [vmem:[%s3 + $0x80] sm:$0xff]
    %v3046 = vld [vmem:[%s3 + $0x88] sm:$0xff]
    %v3047 = vld [vmem:[%s3 + $0x90] sm:$0xff]
    %v3048 = vld [vmem:[%s3 + $0x98] sm:$0xff]
    %v3049 = vld [vmem:[%s4 + $0x4] sm:$0x1]
    %v3050 = vld [vmem:[%s3 + $0x140] sm:$0xff]
    %v3051 = vld [vmem:[%s3 + $0x148] sm:$0xff]
    %v3052 = vld [vmem:[%s3 + $0x150] sm:$0xff]
    %v3053 = vld [vmem:[%s3 + $0x158] sm:$0xff]
    %v3054 = vld [vmem:[%s4 + $0xa] sm:$0x1]
    %v3055 = vsel %vm45, %v3041, 0.0
    %3056 = vadd.xlane.f32.xlu0 %v3055
    %v3057 = vpop.xlane.xlu0 %3056
    %v3058 = vsel %vm45, %v3042, 0.0
    %3059 = vadd.xlane.f32.xlu0 %v3058
    %v3060 = vpop.xlane.xlu0 %3059
    %v3061 = vmul.f32 %v3057, %v52
    %v3062 = vmul.f32 %v3060, %v52
    %v3063 = vsub.f32 %v3041, %v3061
    %v3064 = vsub.f32 %v3042, %v3062
    %v3065 = vmul.f32 %v3063, %v3063
    %v3066 = vmul.f32 %v3064, %v3064
    %v3067 = vsel %vm45, %v3065, 0.0
    %3068 = vadd.xlane.f32.xlu0 %v3067
    %v3069 = vpop.xlane.xlu0 %3068
    %v3070 = vsel %vm45, %v3066, 0.0
    %3071 = vadd.xlane.f32.xlu0 %v3070
    %v3072 = vpop.xlane.xlu0 %3071
    %v3073 = vmul.f32 %v3069, %v52
    %v3074 = vmul.f32 %v3072, %v52
    %v3075 = vadd.f32 %v3073, 1e-05
    %v3076 = vadd.f32 %v3074, 1e-05
    %v3077 = vrsqrt.pop %v3075
    %v3078 = vrsqrt.pop %v3076
    %v3079 = vmul.f32 %v3063, %v3077
    %v3080 = vmul.f32 %v3064, %v3078
    %v3081 = vlaneseq
    %v3082 = vshrl.u32 %v3081, 7
    %v3083 = vsub.s32 0, %v3082
    %v3084 = vrot.slane %v3043, %v3083
    %v3085 = vmul.f32 %v3079, %v3084
    %v3086 = vmul.f32 %v3080, %v3084
    %v3087 = vlaneseq
    %v3088 = vshrl.u32 %v3087, 7
    %v3089 = vsub.s32 0, %v3088
    %v3090 = vrot.slane %v3044, %v3089
    %v3091 = vadd.f32 %v3085, %v3090
    %v3092 = vadd.f32 %v3086, %v3090
    %v3093 = vlaneseq
    %v3094 = vshrl.u32 %v3093, 7
    %v3095 = vsub.s32 0, %v3094
    %v3096 = vrot.slane %v3049, %v3095
    %v3098 = vsel %vm45, %v3091, 0
    %v3101 = vsel %vm45, %v3092, 0
    %3103 = vmatprep.subr.mxu0 0.0
    %3104 = vmatpush1.msra.mxu0 %v3045
    %3105 = vmatprep.subr.mxu0 0.0
    %3106 = vmatpush1.msra.mxu0 %v3046
    %3107 = vmatprep.subr.mxu0 0.0
    %3108 = vmatpush1.msra.mxu0 %v3047
    %3109 = vmatprep.subr.mxu0 0.0
    %3110 = vmatpush1.msra.mxu0 %v3048
    %3111 = vmatprep.subr.mxu0 0.0
    %3112 = vmatpush1.msra.mxu0 0.0
    %3113 = vmatprep.subr.mxu0 0.0
    %3114 = vmatpush1.msra.mxu0 0.0
    %3115 = vmatprep.subr.mxu0 0.0
    %3116 = vmatpush1.msra.mxu0 0.0
    %3117 = vmatprep.subr.mxu0 0.0
    %3118 = vmatpush1.msra.mxu0 0.0
    %3119 = vmatprep.subr.mxu0 0.0
    %3120 = vmatpush1.msra.mxu0 0.0
    %3121 = vmatprep.subr.mxu0 0.0
    %3122 = vmatpush1.msra.mxu0 0.0
    %3123 = vmatprep.subr.mxu0 0.0
    %3124 = vmatpush1.msra.mxu0 0.0
    %3125 = vmatprep.subr.mxu0 0.0
    %3126 = vmatpush1.msra.mxu0 0.0
    %3127 = vmatprep.subr.mxu0 0.0
    %3128 = vmatpush1.msra.mxu0 0.0
    %3129 = vmatprep.subr.mxu0 0.0
    %3130 = vmatpush1.msra.mxu0 0.0
    %3131 = vmatprep.subr.mxu0 0.0
    %3132 = vmatpush1.msra.mxu0 0.0
    %3133 = vmatprep.subr.mxu0 0.0
    %3134 = vmatpush1.msra.mxu0 0.0
    %3135 = vmatprep.subr.mxu0 0.0
    %3136 = vmatpush1.msra.mxu0 0.0
    %3137 = vmatprep.subr.mxu0 0.0
    %3138 = vmatpush1.msra.mxu0 0.0
    %3139 = vmatprep.subr.mxu0 0.0
    %3140 = vmatpush1.msra.mxu0 0.0
    %3141 = vmatprep.subr.mxu0 0.0
    %3142 = vmatpush1.msra.mxu0 0.0
    %3143 = vmatprep.subr.mxu0 0.0
    %3144 = vmatpush1.msra.mxu0 0.0
    %3145 = vmatprep.subr.mxu0 0.0
    %3146 = vmatpush1.msra.mxu0 0.0
    %3147 = vmatprep.subr.mxu0 0.0
    %3148 = vmatpush1.msra.mxu0 0.0
    %3149 = vmatprep.subr.mxu0 0.0
    %3150 = vmatpush1.msra.mxu0 0.0
    %3151 = vmatprep.subr.mxu0 0.0
    %3152 = vmatpush1.msra.mxu0 0.0
    %3153 = vmatprep.subr.mxu0 0.0
    %3154 = vmatpush1.msra.mxu0 0.0
    %3155 = vmatprep.subr.mxu0 0.0
    %3156 = vmatpush1.msra.mxu0 0.0
    %3157 = vmatprep.subr.mxu0 0.0
    %3158 = vmatpush1.msra.mxu0 0.0
    %3159 = vmatprep.subr.mxu0 0.0
    %3160 = vmatpush1.msra.mxu0 0.0
    %3161 = vmatprep.subr.mxu0 0.0
    %3162 = vmatpush1.msra.mxu0 0.0
    %3163 = vmatprep.subr.mxu0 0.0
    %3164 = vmatpush1.msra.mxu0 0.0
    %3165 = vmatprep.subr.mxu0 0.0
    %3166 = vmatpush1.msra.mxu0 0.0
    %3167 = vmatprep.mubr.f32.mxu0 0.0
    %3168 = vmatmul.mubr.f32.gmra.mrb[0].mxu0 %v3098
    %v3169 = vpop.f32.mrb[0].mxu0
    %v3170 = vadd.f32 %v3096, %v3169
    %v3171 = vpop.f32.mrb[0].mxu0
    %3172 = vmatprep.mubr.f32.mxu0 0.0
    %3173 = vmatmul.mubr.f32.gmra.mrb[0].mxu0 %v3101
    %v3174 = vpop.f32.mrb[0].mxu0
    %v3175 = vadd.f32 %v3096, %v3174
    %v3176 = vpop.f32.mrb[0].mxu0
    %3177 = vdwg.mxu0
    %v3178 = vmul.f32 %v3170, %v25
    %v3179 = vmul.f32 %v3175, %v26
    %v3180 = vmul.f32 %v3170, %v27
    %v3181 = vmul.f32 %v3175, %v28
    %v3182 = vmul.f32 %v3170, %v29
    %v3183 = vmul.f32 %v3175, %v30
    %v3184 = vmul.f32 %v3170, %v31
    %v3185 = vmul.f32 %v3175, %v32
    %3188 = vrot.lane.b32.xlu0 %v3170, 96
    %v3189 = vpop.permute.xlu0 %3188
    %3190 = vrot.lane.b32.xlu0 %v3175, 96
    %v3191 = vpop.permute.xlu0 %3190
    %v3193 = vsel %vm45, %v3178, 0
    %v3196 = vsel %vm45, %v3179, 0
    %v3199 = vsel %vm45, %v3180, 0
    %v3202 = vsel %vm45, %v3181, 0
    %v3205 = vsel %vm45, %v3182, 0
    %v3208 = vsel %vm45, %v3183, 0
    %v3211 = vsel %vm45, %v3184, 0
    %v3214 = vsel %vm45, %v3185, 0
    %v3216 = vsel %vm45, %v3189, 0
    %v3218 = vsel %vm45, %v3191, 0
    %3220 = vmatprep.subr.mxu0 0.0
    %3221 = vmatpush1.xpose.msra.mxu0 %v3216
    %3222 = vmatprep.subr.mxu0 0.0
    %3223 = vmatpush1.xpose.msra.mxu0 %v3218
    %3224 = vmatprep.subr.mxu0 0.0
    %3225 = vmatpush1.xpose.msra.mxu0 0.0
    %3226 = vmatprep.subr.mxu0 0.0
    %3227 = vmatpush1.xpose.msra.mxu0 0.0
    %3228 = vmatprep.subr.mxu0 0.0
    %3229 = vmatpush1.xpose.msra.mxu0 0.0
    %3230 = vmatprep.subr.mxu0 0.0
    %3231 = vmatpush1.xpose.msra.mxu0 0.0
    %3232 = vmatprep.subr.mxu0 0.0
    %3233 = vmatpush1.xpose.msra.mxu0 0.0
    %3234 = vmatprep.subr.mxu0 0.0
    %3235 = vmatpush1.xpose.msra.mxu0 0.0
    %3236 = vmatprep.subr.mxu0 0.0
    %3237 = vmatpush1.xpose.msra.mxu0 0.0
    %3238 = vmatprep.subr.mxu0 0.0
    %3239 = vmatpush1.xpose.msra.mxu0 0.0
    %3240 = vmatprep.subr.mxu0 0.0
    %3241 = vmatpush1.xpose.msra.mxu0 0.0
    %3242 = vmatprep.subr.mxu0 0.0
    %3243 = vmatpush1.xpose.msra.mxu0 0.0
    %3244 = vmatprep.subr.mxu0 0.0
    %3245 = vmatpush1.xpose.msra.mxu0 0.0
    %3246 = vmatprep.subr.mxu0 0.0
    %3247 = vmatpush1.xpose.msra.mxu0 0.0
    %3248 = vmatprep.subr.mxu0 0.0
    %3249 = vmatpush1.xpose.msra.mxu0 0.0
    %3250 = vmatprep.subr.mxu0 0.0
    %3251 = vmatpush1.xpose.msra.mxu0 0.0
    %3252 = vmatprep.subr.mxu0 0.0
    %3253 = vmatpush1.xpose.msra.mxu0 0.0
    %3254 = vmatprep.subr.mxu0 0.0
    %3255 = vmatpush1.xpose.msra.mxu0 0.0
    %3256 = vmatprep.subr.mxu0 0.0
    %3257 = vmatpush1.xpose.msra.mxu0 0.0
    %3258 = vmatprep.subr.mxu0 0.0
    %3259 = vmatpush1.xpose.msra.mxu0 0.0
    %3260 = vmatprep.subr.mxu0 0.0
    %3261 = vmatpush1.xpose.msra.mxu0 0.0
    %3262 = vmatprep.subr.mxu0 0.0
    %3263 = vmatpush1.xpose.msra.mxu0 0.0
    %3264 = vmatprep.subr.mxu0 0.0
    %3265 = vmatpush1.xpose.msra.mxu0 0.0
    %3266 = vmatprep.subr.mxu0 0.0
    %3267 = vmatpush1.xpose.msra.mxu0 0.0
    %3268 = vmatprep.subr.mxu0 0.0
    %3269 = vmatpush1.xpose.msra.mxu0 0.0
    %3270 = vmatprep.subr.mxu0 0.0
    %3271 = vmatpush1.xpose.msra.mxu0 0.0
    %3272 = vmatprep.subr.mxu0 0.0
    %3273 = vmatpush1.xpose.msra.mxu0 0.0
    %3274 = vmatprep.subr.mxu0 0.0
    %3275 = vmatpush1.xpose.msra.mxu0 0.0
    %3276 = vmatprep.subr.mxu0 0.0
    %3277 = vmatpush1.xpose.msra.mxu0 0.0
    %3278 = vmatprep.subr.mxu0 0.0
    %3279 = vmatpush1.xpose.msra.mxu0 0.0
    %3280 = vmatprep.subr.mxu0 0.0
    %3281 = vmatpush1.xpose.msra.mxu0 0.0
    %3282 = vmatprep.subr.mxu0 0.0
    %3283 = vmatpush1.xpose.msra.mxu0 0.0
    %3284 = vmatprep.mubr.f32.mxu0 0.0
    %3285 = vmatmul.mubr.f32.gmra.mrb[0].mxu0 %v3193
    %v3286 = vpop.f32.mrb[0].mxu0
    %v3287 = vadd.f32 %v193, %v3286
    %v3288 = vpop.f32.mrb[0].mxu0
    %3289 = vmatprep.mubr.f32.mxu0 0.0
    %3290 = vmatmul.mubr.f32.gmra.mrb[0].mxu0 %v3196
    %v3291 = vpop.f32.mrb[0].mxu0
    %v3292 = vadd.f32 %v195, %v3291
    %v3293 = vpop.f32.mrb[0].mxu0
    %3294 = vmatprep.mubr.f32.mxu0 0.0
    %3295 = vmatmul.mubr.f32.gmra.mrb[0].mxu0 %v3199
    %v3296 = vpop.f32.mrb[0].mxu0
    %v3297 = vadd.f32 %v197, %v3296
    %v3298 = vpop.f32.mrb[0].mxu0
    %3299 = vmatprep.mubr.f32.mxu0 0.0
    %3300 = vmatmul.mubr.f32.gmra.mrb[0].mxu0 %v3202
    %v3301 = vpop.f32.mrb[0].mxu0
    %v3302 = vadd.f32 %v199, %v3301
    %v3303 = vpop.f32.mrb[0].mxu0
    %3304 = vmatprep.mubr.f32.mxu0 0.0
    %3305 = vmatmul.mubr.f32.gmra.mrb[0].mxu0 %v3205
    %v3306 = vpop.f32.mrb[0].mxu0
    %v3307 = vadd.f32 %v201, %v3306
    %v3308 = vpop.f32.mrb[0].mxu0
    %3309 = vmatprep.mubr.f32.mxu0 0.0
    %3310 = vmatmul.mubr.f32.gmra.mrb[0].mxu0 %v3208
    %v3311 = vpop.f32.mrb[0].mxu0
    %v3312 = vadd.f32 %v203, %v3311
    %v3313 = vpop.f32.mrb[0].mxu0
    %3314 = vmatprep.mubr.f32.mxu0 0.0
    %3315 = vmatmul.mubr.f32.gmra.mrb[0].mxu0 %v3211
    %v3316 = vpop.f32.mrb[0].mxu0
    %v3317 = vadd.f32 %v205, %v3316
    %v3318 = vpop.f32.mrb[0].mxu0
    %3319 = vmatprep.mubr.f32.mxu0 0.0
    %3320 = vmatmul.mubr.f32.gmra.mrb[0].mxu0 %v3214
    %v3321 = vpop.f32.mrb[0].mxu0
    %v3322 = vadd.f32 %v207, %v3321
    %v3323 = vpop.f32.mrb[0].mxu0
    %3324 = vdwg.mxu0
    %v3325 = vsel %vm349, %v3287, -inf
    %3326 = vmax.xlane.f32.xlu0 %v3325
    %v3327 = vpop.xlane.xlu0 %3326
    %v3328 = vsel %vm349, %v3292, -inf
    %3329 = vmax.xlane.f32.xlu0 %v3328
    %v3330 = vpop.xlane.xlu0 %3329
    %v3331 = vsel %vm349, %v3297, -inf
    %3332 = vmax.xlane.f32.xlu0 %v3331
    %v3333 = vpop.xlane.xlu0 %3332
    %v3334 = vsel %vm349, %v3302, -inf
    %3335 = vmax.xlane.f32.xlu0 %v3334
    %v3336 = vpop.xlane.xlu0 %3335
    %v3337 = vsel %vm349, %v3307, -inf
    %3338 = vmax.xlane.f32.xlu0 %v3337
    %v3339 = vpop.xlane.xlu0 %3338
    %v3340 = vsel %vm349, %v3312, -inf
    %3341 = vmax.xlane.f32.xlu0 %v3340
    %v3342 = vpop.xlane.xlu0 %3341
    %v3343 = vsel %vm349, %v3317, -inf
    %3344 = vmax.xlane.f32.xlu0 %v3343
    %v3345 = vpop.xlane.xlu0 %3344
    %v3346 = vsel %vm349, %v3322, -inf
    %3347 = vmax.xlane.f32.xlu0 %v3346
    %v3348 = vpop.xlane.xlu0 %3347
    %v3349 = vsub.f32 %v3287, %v3327
    %v3350 = vsub.f32 %v3292, %v3330
    %v3351 = vsub.f32 %v3297, %v3333
    %v3352 = vsub.f32 %v3302, %v3336
    %v3353 = vsub.f32 %v3307, %v3339
    %v3354 = vsub.f32 %v3312, %v3342
    %v3355 = vsub.f32 %v3317, %v3345
    %v3356 = vsub.f32 %v3322, %v3348
    %v3357 = vmul.f32 %v3349, 1.442695
    %v3358 = vpow.pop %v3357
    %v3359 = vmul.f32 %v3350, 1.442695
    %v3360 = vpow.pop %v3359
    %v3361 = vmul.f32 %v3351, 1.442695
    %v3362 = vpow.pop %v3361
    %v3363 = vmul.f32 %v3352, 1.442695
    %v3364 = vpow.pop %v3363
    %v3365 = vmul.f32 %v3353, 1.442695
    %v3366 = vpow.pop %v3365
    %v3367 = vmul.f32 %v3354, 1.442695
    %v3368 = vpow.pop %v3367
    %v3369 = vmul.f32 %v3355, 1.442695
    %v3370 = vpow.pop %v3369
    %v3371 = vmul.f32 %v3356, 1.442695
    %v3372 = vpow.pop %v3371
    %v3373 = vsel %vm349, %v3358, 0.0
    %3374 = vadd.xlane.f32.xlu0 %v3373
    %v3375 = vpop.xlane.xlu0 %3374
    %v3376 = vsel %vm349, %v3360, 0.0
    %3377 = vadd.xlane.f32.xlu0 %v3376
    %v3378 = vpop.xlane.xlu0 %3377
    %v3379 = vsel %vm349, %v3362, 0.0
    %3380 = vadd.xlane.f32.xlu0 %v3379
    %v3381 = vpop.xlane.xlu0 %3380
    %v3382 = vsel %vm349, %v3364, 0.0
    %3383 = vadd.xlane.f32.xlu0 %v3382
    %v3384 = vpop.xlane.xlu0 %3383
    %v3385 = vsel %vm349, %v3366, 0.0
    %3386 = vadd.xlane.f32.xlu0 %v3385
    %v3387 = vpop.xlane.xlu0 %3386
    %v3388 = vsel %vm349, %v3368, 0.0
    %3389 = vadd.xlane.f32.xlu0 %v3388
    %v3390 = vpop.xlane.xlu0 %3389
    %v3391 = vsel %vm349, %v3370, 0.0
    %3392 = vadd.xlane.f32.xlu0 %v3391
    %v3393 = vpop.xlane.xlu0 %3392
    %v3394 = vsel %vm349, %v3372, 0.0
    %3395 = vadd.xlane.f32.xlu0 %v3394
    %v3396 = vpop.xlane.xlu0 %3395
    %v3397 = vrcp.pop %v3375
    %v3398 = vmul.f32 %v3358, %v3397
    %v3399 = vrcp.pop %v3378
    %v3400 = vmul.f32 %v3360, %v3399
    %v3401 = vrcp.pop %v3381
    %v3402 = vmul.f32 %v3362, %v3401
    %v3403 = vrcp.pop %v3384
    %v3404 = vmul.f32 %v3364, %v3403
    %v3405 = vrcp.pop %v3387
    %v3406 = vmul.f32 %v3366, %v3405
    %v3407 = vrcp.pop %v3390
    %v3408 = vmul.f32 %v3368, %v3407
    %v3409 = vrcp.pop %v3393
    %v3410 = vmul.f32 %v3370, %v3409
    %v3411 = vrcp.pop %v3396
    %v3412 = vmul.f32 %v3372, %v3411
    %3413 = vrot.lane.b32.xlu0 %v3170, 64
    %v3414 = vpop.permute.xlu0 %3413
    %3415 = vrot.lane.b32.xlu0 %v3175, 64
    %v3416 = vpop.permute.xlu0 %3415
    %v3420 = vsel %vm349, %v3398, 0
    %v3423 = vsel %vm349, %v3400, 0
    %v3426 = vsel %vm349, %v3402, 0
    %v3429 = vsel %vm349, %v3404, 0
    %v3432 = vsel %vm349, %v3406, 0
    %v3435 = vsel %vm349, %v3408, 0
    %v3438 = vsel %vm349, %v3410, 0
    %v3441 = vsel %vm349, %v3412, 0
    %3443 = vmatprep.subr.mxu0 0.0
    %3444 = vmatpush1.msra.mxu0 %v3414
    %3445 = vmatprep.subr.mxu0 0.0
    %3446 = vmatpush1.msra.mxu0 %v3416
    %3447 = vmatprep.subr.mxu0 0.0
    %3448 = vmatpush1.msra.mxu0 0.0
    %3449 = vmatprep.subr.mxu0 0.0
    %3450 = vmatpush1.msra.mxu0 0.0
    %3451 = vmatprep.subr.mxu0 0.0
    %3452 = vmatpush1.msra.mxu0 0.0
    %3453 = vmatprep.subr.mxu0 0.0
    %3454 = vmatpush1.msra.mxu0 0.0
    %3455 = vmatprep.subr.mxu0 0.0
    %3456 = vmatpush1.msra.mxu0 0.0
    %3457 = vmatprep.subr.mxu0 0.0
    %3458 = vmatpush1.msra.mxu0 0.0
    %3459 = vmatprep.subr.mxu0 0.0
    %3460 = vmatpush1.msra.mxu0 0.0
    %3461 = vmatprep.subr.mxu0 0.0
    %3462 = vmatpush1.msra.mxu0 0.0
    %3463 = vmatprep.subr.mxu0 0.0
    %3464 = vmatpush1.msra.mxu0 0.0
    %3465 = vmatprep.subr.mxu0 0.0
    %3466 = vmatpush1.msra.mxu0 0.0
    %3467 = vmatprep.subr.mxu0 0.0
    %3468 = vmatpush1.msra.mxu0 0.0
    %3469 = vmatprep.subr.mxu0 0.0
    %3470 = vmatpush1.msra.mxu0 0.0
    %3471 = vmatprep.subr.mxu0 0.0
    %3472 = vmatpush1.msra.mxu0 0.0
    %3473 = vmatprep.subr.mxu0 0.0
    %3474 = vmatpush1.msra.mxu0 0.0
    %3475 = vmatprep.subr.mxu0 0.0
    %3476 = vmatpush1.msra.mxu0 0.0
    %3477 = vmatprep.subr.mxu0 0.0
    %3478 = vmatpush1.msra.mxu0 0.0
    %3479 = vmatprep.subr.mxu0 0.0
    %3480 = vmatpush1.msra.mxu0 0.0
    %3481 = vmatprep.subr.mxu0 0.0
    %3482 = vmatpush1.msra.mxu0 0.0
    %3483 = vmatprep.subr.mxu0 0.0
    %3484 = vmatpush1.msra.mxu0 0.0
    %3485 = vmatprep.subr.mxu0 0.0
    %3486 = vmatpush1.msra.mxu0 0.0
    %3487 = vmatprep.subr.mxu0 0.0
    %3488 = vmatpush1.msra.mxu0 0.0
    %3489 = vmatprep.subr.mxu0 0.0
    %3490 = vmatpush1.msra.mxu0 0.0
    %3491 = vmatprep.subr.mxu0 0.0
    %3492 = vmatpush1.msra.mxu0 0.0
    %3493 = vmatprep.subr.mxu0 0.0
    %3494 = vmatpush1.msra.mxu0 0.0
    %3495 = vmatprep.subr.mxu0 0.0
    %3496 = vmatpush1.msra.mxu0 0.0
    %3497 = vmatprep.subr.mxu0 0.0
    %3498 = vmatpush1.msra.mxu0 0.0
    %3499 = vmatprep.subr.mxu0 0.0
    %3500 = vmatpush1.msra.mxu0 0.0
    %3501 = vmatprep.subr.mxu0 0.0
    %3502 = vmatpush1.msra.mxu0 0.0
    %3503 = vmatprep.subr.mxu0 0.0
    %3504 = vmatpush1.msra.mxu0 0.0
    %3505 = vmatprep.subr.mxu0 0.0
    %3506 = vmatpush1.msra.mxu0 0.0
    %3507 = vmatprep.mubr.f32.mxu0 0.0
    %3508 = vmatmul.mubr.f32.gmra.mrb[0].mxu0 %v3420
    %v3509 = vpop.f32.mrb[0].mxu0
    %v3510 = vadd.f32 0.0, %v3509
    %v3511 = vpop.f32.mrb[0].mxu0
    %3512 = vmatprep.mubr.f32.mxu0 0.0
    %3513 = vmatmul.mubr.f32.gmra.mrb[0].mxu0 %v3423
    %v3514 = vpop.f32.mrb[0].mxu0
    %v3515 = vadd.f32 0.0, %v3514
    %v3516 = vpop.f32.mrb[0].mxu0
    %3517 = vmatprep.mubr.f32.mxu0 0.0
    %3518 = vmatmul.mubr.f32.gmra.mrb[0].mxu0 %v3426
    %v3519 = vpop.f32.mrb[0].mxu0
    %v3520 = vadd.f32 0.0, %v3519
    %v3521 = vpop.f32.mrb[0].mxu0
    %3522 = vmatprep.mubr.f32.mxu0 0.0
    %3523 = vmatmul.mubr.f32.gmra.mrb[0].mxu0 %v3429
    %v3524 = vpop.f32.mrb[0].mxu0
    %v3525 = vadd.f32 0.0, %v3524
    %v3526 = vpop.f32.mrb[0].mxu0
    %3527 = vmatprep.mubr.f32.mxu0 0.0
    %3528 = vmatmul.mubr.f32.gmra.mrb[0].mxu0 %v3432
    %v3529 = vpop.f32.mrb[0].mxu0
    %v3530 = vadd.f32 0.0, %v3529
    %v3531 = vpop.f32.mrb[0].mxu0
    %3532 = vmatprep.mubr.f32.mxu0 0.0
    %3533 = vmatmul.mubr.f32.gmra.mrb[0].mxu0 %v3435
    %v3534 = vpop.f32.mrb[0].mxu0
    %v3535 = vadd.f32 0.0, %v3534
    %v3536 = vpop.f32.mrb[0].mxu0
    %3537 = vmatprep.mubr.f32.mxu0 0.0
    %3538 = vmatmul.mubr.f32.gmra.mrb[0].mxu0 %v3438
    %v3539 = vpop.f32.mrb[0].mxu0
    %v3540 = vadd.f32 0.0, %v3539
    %v3541 = vpop.f32.mrb[0].mxu0
    %3542 = vmatprep.mubr.f32.mxu0 0.0
    %3543 = vmatmul.mubr.f32.gmra.mrb[0].mxu0 %v3441
    %v3544 = vpop.f32.mrb[0].mxu0
    %v3545 = vadd.f32 0.0, %v3544
    %v3546 = vpop.f32.mrb[0].mxu0
    %3547 = vdwg.mxu0
    %v3548 = vmul.f32 %v3510, %v25
    %v3549 = vmul.f32 %v3515, %v26
    %v3550 = vmul.f32 %v3520, %v27
    %v3551 = vmul.f32 %v3525, %v28
    %v3552 = vmul.f32 %v3530, %v29
    %v3553 = vmul.f32 %v3535, %v30
    %v3554 = vmul.f32 %v3540, %v31
    %v3555 = vmul.f32 %v3545, %v32
    %v3556 = vadd.f32 %v3548, %v3550
    %v3557 = vadd.f32 %v3549, %v3551
    %v3558 = vadd.f32 %v3556, %v3552
    %v3559 = vadd.f32 %v3557, %v3553
    %v3560 = vadd.f32 %v3558, %v3554
    %v3561 = vadd.f32 %v3559, %v3555
    %v3562 = vlaneseq
    %v3563 = vshrl.u32 %v3562, 7
    %v3564 = vsub.s32 0, %v3563
    %v3565 = vrot.slane %v3054, %v3564
    %v3567 = vsel %vm45, %v3560, 0
    %v3570 = vsel %vm45, %v3561, 0
    %3572 = vmatprep.subr.mxu0 0.0
    %3573 = vmatpush1.msra.mxu0 %v3050
    %3574 = vmatprep.subr.mxu0 0.0
    %3575 = vmatpush1.msra.mxu0 %v3051
    %3576 = vmatprep.subr.mxu0 0.0
    %3577 = vmatpush1.msra.mxu0 %v3052
    %3578 = vmatprep.subr.mxu0 0.0
    %3579 = vmatpush1.msra.mxu0 %v3053
    %3580 = vmatprep.subr.mxu0 0.0
    %3581 = vmatpush1.msra.mxu0 0.0
    %3582 = vmatprep.subr.mxu0 0.0
    %3583 = vmatpush1.msra.mxu0 0.0
    %3584 = vmatprep.subr.mxu0 0.0
    %3585 = vmatpush1.msra.mxu0 0.0
    %3586 = vmatprep.subr.mxu0 0.0
    %3587 = vmatpush1.msra.mxu0 0.0
    %3588 = vmatprep.subr.mxu0 0.0
    %3589 = vmatpush1.msra.mxu0 0.0
    %3590 = vmatprep.subr.mxu0 0.0
    %3591 = vmatpush1.msra.mxu0 0.0
    %3592 = vmatprep.subr.mxu0 0.0
    %3593 = vmatpush1.msra.mxu0 0.0
    %3594 = vmatprep.subr.mxu0 0.0
    %3595 = vmatpush1.msra.mxu0 0.0
    %3596 = vmatprep.subr.mxu0 0.0
    %3597 = vmatpush1.msra.mxu0 0.0
    %3598 = vmatprep.subr.mxu0 0.0
    %3599 = vmatpush1.msra.mxu0 0.0
    %3600 = vmatprep.subr.mxu0 0.0
    %3601 = vmatpush1.msra.mxu0 0.0
    %3602 = vmatprep.subr.mxu0 0.0
    %3603 = vmatpush1.msra.mxu0 0.0
    %3604 = vmatprep.subr.mxu0 0.0
    %3605 = vmatpush1.msra.mxu0 0.0
    %3606 = vmatprep.subr.mxu0 0.0
    %3607 = vmatpush1.msra.mxu0 0.0
    %3608 = vmatprep.subr.mxu0 0.0
    %3609 = vmatpush1.msra.mxu0 0.0
    %3610 = vmatprep.subr.mxu0 0.0
    %3611 = vmatpush1.msra.mxu0 0.0
    %3612 = vmatprep.subr.mxu0 0.0
    %3613 = vmatpush1.msra.mxu0 0.0
    %3614 = vmatprep.subr.mxu0 0.0
    %3615 = vmatpush1.msra.mxu0 0.0
    %3616 = vmatprep.subr.mxu0 0.0
    %3617 = vmatpush1.msra.mxu0 0.0
    %3618 = vmatprep.subr.mxu0 0.0
    %3619 = vmatpush1.msra.mxu0 0.0
    %3620 = vmatprep.subr.mxu0 0.0
    %3621 = vmatpush1.msra.mxu0 0.0
    %3622 = vmatprep.subr.mxu0 0.0
    %3623 = vmatpush1.msra.mxu0 0.0
    %3624 = vmatprep.subr.mxu0 0.0
    %3625 = vmatpush1.msra.mxu0 0.0
    %3626 = vmatprep.subr.mxu0 0.0
    %3627 = vmatpush1.msra.mxu0 0.0
    %3628 = vmatprep.subr.mxu0 0.0
    %3629 = vmatpush1.msra.mxu0 0.0
    %3630 = vmatprep.subr.mxu0 0.0
    %3631 = vmatpush1.msra.mxu0 0.0
    %3632 = vmatprep.subr.mxu0 0.0
    %3633 = vmatpush1.msra.mxu0 0.0
    %3634 = vmatprep.subr.mxu0 0.0
    %3635 = vmatpush1.msra.mxu0 0.0
    %3636 = vmatprep.mubr.f32.mxu0 0.0
    %3637 = vmatmul.mubr.f32.gmra.mrb[0].mxu0 %v3567
    %v3638 = vpop.f32.mrb[0].mxu0
    %v3639 = vadd.f32 %v3565, %v3638
    %v3640 = vpop.f32.mrb[0].mxu0
    %3641 = vmatprep.mubr.f32.mxu0 0.0
    %3642 = vmatmul.mubr.f32.gmra.mrb[0].mxu0 %v3570
    %v3643 = vpop.f32.mrb[0].mxu0
    %v3644 = vadd.f32 %v3565, %v3643
    %v3645 = vpop.f32.mrb[0].mxu0
    %3646 = vdwg.mxu0
    %v3647 = vadd.f32 %v3041, %v3639
    %v3648 = vadd.f32 %v3042, %v3644
    %v3649 = vld [vmem:[%s4 + $0x11] sm:$0x1]
    %v3650 = vld [vmem:[%s4 + $0x17] sm:$0x1]
    %v3651 = vld [vmem:[%s3 + $0xa0] sm:$0xff]
    %v3652 = vld [vmem:[%s3 + $0xa8] sm:$0xff]
    %v3653 = vld [vmem:[%s3 + $0xb0] sm:$0xff]
    %v3654 = vld [vmem:[%s3 + $0xb8] sm:$0xff]
    %v3655 = vld [vmem:[%s4 + $0x5] sm:$0x1]
    %v3656 = vld [vmem:[%s3 + $0x160] sm:$0xff]
    %v3657 = vld [vmem:[%s3 + $0x168] sm:$0xff]
    %v3658 = vld [vmem:[%s3 + $0x170] sm:$0xff]
    %v3659 = vld [vmem:[%s3 + $0x178] sm:$0xff]
    %v3660 = vld [vmem:[%s4 + $0xb] sm:$0x1]
    %v3661 = vsel %vm45, %v3647, 0.0
    %3662 = vadd.xlane.f32.xlu0 %v3661
    %v3663 = vpop.xlane.xlu0 %3662
    %v3664 = vsel %vm45, %v3648, 0.0
    %3665 = vadd.xlane.f32.xlu0 %v3664
    %v3666 = vpop.xlane.xlu0 %3665
    %v3667 = vmul.f32 %v3663, %v52
    %v3668 = vmul.f32 %v3666, %v52
    %v3669 = vsub.f32 %v3647, %v3667
    %v3670 = vsub.f32 %v3648, %v3668
    %v3671 = vmul.f32 %v3669, %v3669
    %v3672 = vmul.f32 %v3670, %v3670
    %v3673 = vsel %vm45, %v3671, 0.0
    %3674 = vadd.xlane.f32.xlu0 %v3673
    %v3675 = vpop.xlane.xlu0 %3674
    %v3676 = vsel %vm45, %v3672, 0.0
    %3677 = vadd.xlane.f32.xlu0 %v3676
    %v3678 = vpop.xlane.xlu0 %3677
    %v3679 = vmul.f32 %v3675, %v52
    %v3680 = vmul.f32 %v3678, %v52
    %v3681 = vadd.f32 %v3679, 1e-05
    %v3682 = vadd.f32 %v3680, 1e-05
    %v3683 = vrsqrt.pop %v3681
    %v3684 = vrsqrt.pop %v3682
    %v3685 = vmul.f32 %v3669, %v3683
    %v3686 = vmul.f32 %v3670, %v3684
    %v3687 = vlaneseq
    %v3688 = vshrl.u32 %v3687, 7
    %v3689 = vsub.s32 0, %v3688
    %v3690 = vrot.slane %v3649, %v3689
    %v3691 = vmul.f32 %v3685, %v3690
    %v3692 = vmul.f32 %v3686, %v3690
    %v3693 = vmul.f32 %v736, %v3690
    %v3694 = vmul.f32 %v737, %v3690
    %v3695 = vlaneseq
    %v3696 = vshrl.u32 %v3695, 7
    %v3697 = vsub.s32 0, %v3696
    %v3698 = vrot.slane %v3650, %v3697
    %v3699 = vadd.f32 %v3691, %v3698
    %v3700 = vadd.f32 %v3692, %v3698
    %v3701 = vadd.f32 %v3693, %v3698
    %v3702 = vadd.f32 %v3694, %v3698
    %v3703 = vlaneseq
    %v3704 = vshrl.u32 %v3703, 7
    %v3705 = vsub.s32 0, %v3704
    %v3706 = vrot.slane %v3655, %v3705
    %v3708 = vsel %vm45, %v3699, 0
    %v3711 = vsel %vm45, %v3700, 0
    %v3714 = vsel %vm45, %v3701, 0
    %v3717 = vsel %vm45, %v3702, 0
    %3719 = vmatprep.subr.mxu0 0.0
    %3720 = vmatpush1.msra.mxu0 %v3651
    %3721 = vmatprep.subr.mxu0 0.0
    %3722 = vmatpush1.msra.mxu0 %v3652
    %3723 = vmatprep.subr.mxu0 0.0
    %3724 = vmatpush1.msra.mxu0 %v3653
    %3725 = vmatprep.subr.mxu0 0.0
    %3726 = vmatpush1.msra.mxu0 %v3654
    %3727 = vmatprep.subr.mxu0 0.0
    %3728 = vmatpush1.msra.mxu0 0.0
    %3729 = vmatprep.subr.mxu0 0.0
    %3730 = vmatpush1.msra.mxu0 0.0
    %3731 = vmatprep.subr.mxu0 0.0
    %3732 = vmatpush1.msra.mxu0 0.0
    %3733 = vmatprep.subr.mxu0 0.0
    %3734 = vmatpush1.msra.mxu0 0.0
    %3735 = vmatprep.subr.mxu0 0.0
    %3736 = vmatpush1.msra.mxu0 0.0
    %3737 = vmatprep.subr.mxu0 0.0
    %3738 = vmatpush1.msra.mxu0 0.0
    %3739 = vmatprep.subr.mxu0 0.0
    %3740 = vmatpush1.msra.mxu0 0.0
    %3741 = vmatprep.subr.mxu0 0.0
    %3742 = vmatpush1.msra.mxu0 0.0
    %3743 = vmatprep.subr.mxu0 0.0
    %3744 = vmatpush1.msra.mxu0 0.0
    %3745 = vmatprep.subr.mxu0 0.0
    %3746 = vmatpush1.msra.mxu0 0.0
    %3747 = vmatprep.subr.mxu0 0.0
    %3748 = vmatpush1.msra.mxu0 0.0
    %3749 = vmatprep.subr.mxu0 0.0
    %3750 = vmatpush1.msra.mxu0 0.0
    %3751 = vmatprep.subr.mxu0 0.0
    %3752 = vmatpush1.msra.mxu0 0.0
    %3753 = vmatprep.subr.mxu0 0.0
    %3754 = vmatpush1.msra.mxu0 0.0
    %3755 = vmatprep.subr.mxu0 0.0
    %3756 = vmatpush1.msra.mxu0 0.0
    %3757 = vmatprep.subr.mxu0 0.0
    %3758 = vmatpush1.msra.mxu0 0.0
    %3759 = vmatprep.subr.mxu0 0.0
    %3760 = vmatpush1.msra.mxu0 0.0
    %3761 = vmatprep.subr.mxu0 0.0
    %3762 = vmatpush1.msra.mxu0 0.0
    %3763 = vmatprep.subr.mxu0 0.0
    %3764 = vmatpush1.msra.mxu0 0.0
    %3765 = vmatprep.subr.mxu0 0.0
    %3766 = vmatpush1.msra.mxu0 0.0
    %3767 = vmatprep.subr.mxu0 0.0
    %3768 = vmatpush1.msra.mxu0 0.0
    %3769 = vmatprep.subr.mxu0 0.0
    %3770 = vmatpush1.msra.mxu0 0.0
    %3771 = vmatprep.subr.mxu0 0.0
    %3772 = vmatpush1.msra.mxu0 0.0
    %3773 = vmatprep.subr.mxu0 0.0
    %3774 = vmatpush1.msra.mxu0 0.0
    %3775 = vmatprep.subr.mxu0 0.0
    %3776 = vmatpush1.msra.mxu0 0.0
    %3777 = vmatprep.subr.mxu0 0.0
    %3778 = vmatpush1.msra.mxu0 0.0
    %3779 = vmatprep.subr.mxu0 0.0
    %3780 = vmatpush1.msra.mxu0 0.0
    %3781 = vmatprep.subr.mxu0 0.0
    %3782 = vmatpush1.msra.mxu0 0.0
    %3783 = vmatprep.mubr.f32.mxu0 0.0
    %3784 = vmatmul.mubr.f32.gmra.mrb[0].mxu0 %v3708
    %v3785 = vpop.f32.mrb[0].mxu0
    %v3786 = vadd.f32 %v3706, %v3785
    %v3787 = vpop.f32.mrb[0].mxu0
    %3788 = vmatprep.mubr.f32.mxu0 0.0
    %3789 = vmatmul.mubr.f32.gmra.mrb[0].mxu0 %v3711
    %v3790 = vpop.f32.mrb[0].mxu0
    %v3791 = vadd.f32 %v3706, %v3790
    %v3792 = vpop.f32.mrb[0].mxu0
    %3793 = vmatprep.mubr.f32.mxu0 0.0
    %3794 = vmatmul.mubr.f32.gmra.mrb[0].mxu0 %v3714
    %v3795 = vpop.f32.mrb[0].mxu0
    %v3796 = vadd.f32 %v3706, %v3795
    %v3797 = vpop.f32.mrb[0].mxu0
    %3798 = vmatprep.mubr.f32.mxu0 0.0
    %3799 = vmatmul.mubr.f32.gmra.mrb[0].mxu0 %v3717
    %v3800 = vpop.f32.mrb[0].mxu0
    %v3801 = vadd.f32 %v3706, %v3800
    %v3802 = vpop.f32.mrb[0].mxu0
    %3803 = vdwg.mxu0
    %v3804 = vmul.f32 %v3786, %v25
    %v3805 = vmul.f32 %v3791, %v26
    %v3806 = vmul.f32 %v3786, %v27
    %v3807 = vmul.f32 %v3791, %v28
    %v3808 = vmul.f32 %v3786, %v29
    %v3809 = vmul.f32 %v3791, %v30
    %v3810 = vmul.f32 %v3786, %v31
    %v3811 = vmul.f32 %v3791, %v32
    %3814 = vrot.lane.b32.xlu0 %v3796, 96
    %v3815 = vpop.permute.xlu0 %3814
    %3816 = vrot.lane.b32.xlu0 %v3801, 96
    %v3817 = vpop.permute.xlu0 %3816
    %v3819 = vsel %vm45, %v3804, 0
    %v3822 = vsel %vm45, %v3805, 0
    %v3825 = vsel %vm45, %v3806, 0
    %v3828 = vsel %vm45, %v3807, 0
    %v3831 = vsel %vm45, %v3808, 0
    %v3834 = vsel %vm45, %v3809, 0
    %v3837 = vsel %vm45, %v3810, 0
    %v3840 = vsel %vm45, %v3811, 0
    %v3842 = vsel %vm45, %v3815, 0
    %v3844 = vsel %vm45, %v3817, 0
    %3846 = vmatprep.subr.mxu0 0.0
    %3847 = vmatpush1.xpose.msra.mxu0 %v3842
    %3848 = vmatprep.subr.mxu0 0.0
    %3849 = vmatpush1.xpose.msra.mxu0 %v3844
    %3850 = vmatprep.subr.mxu0 0.0
    %3851 = vmatpush1.xpose.msra.mxu0 0.0
    %3852 = vmatprep.subr.mxu0 0.0
    %3853 = vmatpush1.xpose.msra.mxu0 0.0
    %3854 = vmatprep.subr.mxu0 0.0
    %3855 = vmatpush1.xpose.msra.mxu0 0.0
    %3856 = vmatprep.subr.mxu0 0.0
    %3857 = vmatpush1.xpose.msra.mxu0 0.0
    %3858 = vmatprep.subr.mxu0 0.0
    %3859 = vmatpush1.xpose.msra.mxu0 0.0
    %3860 = vmatprep.subr.mxu0 0.0
    %3861 = vmatpush1.xpose.msra.mxu0 0.0
    %3862 = vmatprep.subr.mxu0 0.0
    %3863 = vmatpush1.xpose.msra.mxu0 0.0
    %3864 = vmatprep.subr.mxu0 0.0
    %3865 = vmatpush1.xpose.msra.mxu0 0.0
    %3866 = vmatprep.subr.mxu0 0.0
    %3867 = vmatpush1.xpose.msra.mxu0 0.0
    %3868 = vmatprep.subr.mxu0 0.0
    %3869 = vmatpush1.xpose.msra.mxu0 0.0
    %3870 = vmatprep.subr.mxu0 0.0
    %3871 = vmatpush1.xpose.msra.mxu0 0.0
    %3872 = vmatprep.subr.mxu0 0.0
    %3873 = vmatpush1.xpose.msra.mxu0 0.0
    %3874 = vmatprep.subr.mxu0 0.0
    %3875 = vmatpush1.xpose.msra.mxu0 0.0
    %3876 = vmatprep.subr.mxu0 0.0
    %3877 = vmatpush1.xpose.msra.mxu0 0.0
    %3878 = vmatprep.subr.mxu0 0.0
    %3879 = vmatpush1.xpose.msra.mxu0 0.0
    %3880 = vmatprep.subr.mxu0 0.0
    %3881 = vmatpush1.xpose.msra.mxu0 0.0
    %3882 = vmatprep.subr.mxu0 0.0
    %3883 = vmatpush1.xpose.msra.mxu0 0.0
    %3884 = vmatprep.subr.mxu0 0.0
    %3885 = vmatpush1.xpose.msra.mxu0 0.0
    %3886 = vmatprep.subr.mxu0 0.0
    %3887 = vmatpush1.xpose.msra.mxu0 0.0
    %3888 = vmatprep.subr.mxu0 0.0
    %3889 = vmatpush1.xpose.msra.mxu0 0.0
    %3890 = vmatprep.subr.mxu0 0.0
    %3891 = vmatpush1.xpose.msra.mxu0 0.0
    %3892 = vmatprep.subr.mxu0 0.0
    %3893 = vmatpush1.xpose.msra.mxu0 0.0
    %3894 = vmatprep.subr.mxu0 0.0
    %3895 = vmatpush1.xpose.msra.mxu0 0.0
    %3896 = vmatprep.subr.mxu0 0.0
    %3897 = vmatpush1.xpose.msra.mxu0 0.0
    %3898 = vmatprep.subr.mxu0 0.0
    %3899 = vmatpush1.xpose.msra.mxu0 0.0
    %3900 = vmatprep.subr.mxu0 0.0
    %3901 = vmatpush1.xpose.msra.mxu0 0.0
    %3902 = vmatprep.subr.mxu0 0.0
    %3903 = vmatpush1.xpose.msra.mxu0 0.0
    %3904 = vmatprep.subr.mxu0 0.0
    %3905 = vmatpush1.xpose.msra.mxu0 0.0
    %3906 = vmatprep.subr.mxu0 0.0
    %3907 = vmatpush1.xpose.msra.mxu0 0.0
    %3908 = vmatprep.subr.mxu0 0.0
    %3909 = vmatpush1.xpose.msra.mxu0 0.0
    %3910 = vmatprep.mubr.f32.mxu0 0.0
    %3911 = vmatmul.mubr.f32.gmra.mrb[0].mxu0 %v3819
    %v3912 = vpop.f32.mrb[0].mxu0
    %v3913 = vadd.f32 %v870, %v3912
    %v3914 = vpop.f32.mrb[0].mxu0
    %3915 = vmatprep.mubr.f32.mxu0 0.0
    %3916 = vmatmul.mubr.f32.gmra.mrb[0].mxu0 %v3822
    %v3917 = vpop.f32.mrb[0].mxu0
    %v3918 = vadd.f32 %v872, %v3917
    %v3919 = vpop.f32.mrb[0].mxu0
    %3920 = vmatprep.mubr.f32.mxu0 0.0
    %3921 = vmatmul.mubr.f32.gmra.mrb[0].mxu0 %v3825
    %v3922 = vpop.f32.mrb[0].mxu0
    %v3923 = vadd.f32 %v874, %v3922
    %v3924 = vpop.f32.mrb[0].mxu0
    %3925 = vmatprep.mubr.f32.mxu0 0.0
    %3926 = vmatmul.mubr.f32.gmra.mrb[0].mxu0 %v3828
    %v3927 = vpop.f32.mrb[0].mxu0
    %v3928 = vadd.f32 %v876, %v3927
    %v3929 = vpop.f32.mrb[0].mxu0
    %3930 = vmatprep.mubr.f32.mxu0 0.0
    %3931 = vmatmul.mubr.f32.gmra.mrb[0].mxu0 %v3831
    %v3932 = vpop.f32.mrb[0].mxu0
    %v3933 = vadd.f32 %v878, %v3932
    %v3934 = vpop.f32.mrb[0].mxu0
    %3935 = vmatprep.mubr.f32.mxu0 0.0
    %3936 = vmatmul.mubr.f32.gmra.mrb[0].mxu0 %v3834
    %v3937 = vpop.f32.mrb[0].mxu0
    %v3938 = vadd.f32 %v880, %v3937
    %v3939 = vpop.f32.mrb[0].mxu0
    %3940 = vmatprep.mubr.f32.mxu0 0.0
    %3941 = vmatmul.mubr.f32.gmra.mrb[0].mxu0 %v3837
    %v3942 = vpop.f32.mrb[0].mxu0
    %v3943 = vadd.f32 %v882, %v3942
    %v3944 = vpop.f32.mrb[0].mxu0
    %3945 = vmatprep.mubr.f32.mxu0 0.0
    %3946 = vmatmul.mubr.f32.gmra.mrb[0].mxu0 %v3840
    %v3947 = vpop.f32.mrb[0].mxu0
    %v3948 = vadd.f32 %v884, %v3947
    %v3949 = vpop.f32.mrb[0].mxu0
    %3950 = vdwg.mxu0
    %v3951 = vsel %vm349, %v3913, -inf
    %3952 = vmax.xlane.f32.xlu0 %v3951
    %v3953 = vpop.xlane.xlu0 %3952
    %v3954 = vsel %vm349, %v3918, -inf
    %3955 = vmax.xlane.f32.xlu0 %v3954
    %v3956 = vpop.xlane.xlu0 %3955
    %v3957 = vsel %vm349, %v3923, -inf
    %3958 = vmax.xlane.f32.xlu0 %v3957
    %v3959 = vpop.xlane.xlu0 %3958
    %v3960 = vsel %vm349, %v3928, -inf
    %3961 = vmax.xlane.f32.xlu0 %v3960
    %v3962 = vpop.xlane.xlu0 %3961
    %v3963 = vsel %vm349, %v3933, -inf
    %3964 = vmax.xlane.f32.xlu0 %v3963
    %v3965 = vpop.xlane.xlu0 %3964
    %v3966 = vsel %vm349, %v3938, -inf
    %3967 = vmax.xlane.f32.xlu0 %v3966
    %v3968 = vpop.xlane.xlu0 %3967
    %v3969 = vsel %vm349, %v3943, -inf
    %3970 = vmax.xlane.f32.xlu0 %v3969
    %v3971 = vpop.xlane.xlu0 %3970
    %v3972 = vsel %vm349, %v3948, -inf
    %3973 = vmax.xlane.f32.xlu0 %v3972
    %v3974 = vpop.xlane.xlu0 %3973
    %v3975 = vsub.f32 %v3913, %v3953
    %v3976 = vsub.f32 %v3918, %v3956
    %v3977 = vsub.f32 %v3923, %v3959
    %v3978 = vsub.f32 %v3928, %v3962
    %v3979 = vsub.f32 %v3933, %v3965
    %v3980 = vsub.f32 %v3938, %v3968
    %v3981 = vsub.f32 %v3943, %v3971
    %v3982 = vsub.f32 %v3948, %v3974
    %v3983 = vmul.f32 %v3975, 1.442695
    %v3984 = vpow.pop %v3983
    %v3985 = vmul.f32 %v3976, 1.442695
    %v3986 = vpow.pop %v3985
    %v3987 = vmul.f32 %v3977, 1.442695
    %v3988 = vpow.pop %v3987
    %v3989 = vmul.f32 %v3978, 1.442695
    %v3990 = vpow.pop %v3989
    %v3991 = vmul.f32 %v3979, 1.442695
    %v3992 = vpow.pop %v3991
    %v3993 = vmul.f32 %v3980, 1.442695
    %v3994 = vpow.pop %v3993
    %v3995 = vmul.f32 %v3981, 1.442695
    %v3996 = vpow.pop %v3995
    %v3997 = vmul.f32 %v3982, 1.442695
    %v3998 = vpow.pop %v3997
    %v3999 = vsel %vm349, %v3984, 0.0
    %4000 = vadd.xlane.f32.xlu0 %v3999
    %v4001 = vpop.xlane.xlu0 %4000
    %v4002 = vsel %vm349, %v3986, 0.0
    %4003 = vadd.xlane.f32.xlu0 %v4002
    %v4004 = vpop.xlane.xlu0 %4003
    %v4005 = vsel %vm349, %v3988, 0.0
    %4006 = vadd.xlane.f32.xlu0 %v4005
    %v4007 = vpop.xlane.xlu0 %4006
    %v4008 = vsel %vm349, %v3990, 0.0
    %4009 = vadd.xlane.f32.xlu0 %v4008
    %v4010 = vpop.xlane.xlu0 %4009
    %v4011 = vsel %vm349, %v3992, 0.0
    %4012 = vadd.xlane.f32.xlu0 %v4011
    %v4013 = vpop.xlane.xlu0 %4012
    %v4014 = vsel %vm349, %v3994, 0.0
    %4015 = vadd.xlane.f32.xlu0 %v4014
    %v4016 = vpop.xlane.xlu0 %4015
    %v4017 = vsel %vm349, %v3996, 0.0
    %4018 = vadd.xlane.f32.xlu0 %v4017
    %v4019 = vpop.xlane.xlu0 %4018
    %v4020 = vsel %vm349, %v3998, 0.0
    %4021 = vadd.xlane.f32.xlu0 %v4020
    %v4022 = vpop.xlane.xlu0 %4021
    %v4023 = vrcp.pop %v4001
    %v4024 = vmul.f32 %v3984, %v4023
    %v4025 = vrcp.pop %v4004
    %v4026 = vmul.f32 %v3986, %v4025
    %v4027 = vrcp.pop %v4007
    %v4028 = vmul.f32 %v3988, %v4027
    %v4029 = vrcp.pop %v4010
    %v4030 = vmul.f32 %v3990, %v4029
    %v4031 = vrcp.pop %v4013
    %v4032 = vmul.f32 %v3992, %v4031
    %v4033 = vrcp.pop %v4016
    %v4034 = vmul.f32 %v3994, %v4033
    %v4035 = vrcp.pop %v4019
    %v4036 = vmul.f32 %v3996, %v4035
    %v4037 = vrcp.pop %v4022
    %v4038 = vmul.f32 %v3998, %v4037
    %4039 = vrot.lane.b32.xlu0 %v3796, 64
    %v4040 = vpop.permute.xlu0 %4039
    %4041 = vrot.lane.b32.xlu0 %v3801, 64
    %v4042 = vpop.permute.xlu0 %4041
    %v4046 = vsel %vm349, %v4024, 0
    %v4049 = vsel %vm349, %v4026, 0
    %v4052 = vsel %vm349, %v4028, 0
    %v4055 = vsel %vm349, %v4030, 0
    %v4058 = vsel %vm349, %v4032, 0
    %v4061 = vsel %vm349, %v4034, 0
    %v4064 = vsel %vm349, %v4036, 0
    %v4067 = vsel %vm349, %v4038, 0
    %4069 = vmatprep.subr.mxu0 0.0
    %4070 = vmatpush1.msra.mxu0 %v4040
    %4071 = vmatprep.subr.mxu0 0.0
    %4072 = vmatpush1.msra.mxu0 %v4042
    %4073 = vmatprep.subr.mxu0 0.0
    %4074 = vmatpush1.msra.mxu0 0.0
    %4075 = vmatprep.subr.mxu0 0.0
    %4076 = vmatpush1.msra.mxu0 0.0
    %4077 = vmatprep.subr.mxu0 0.0
    %4078 = vmatpush1.msra.mxu0 0.0
    %4079 = vmatprep.subr.mxu0 0.0
    %4080 = vmatpush1.msra.mxu0 0.0
    %4081 = vmatprep.subr.mxu0 0.0
    %4082 = vmatpush1.msra.mxu0 0.0
    %4083 = vmatprep.subr.mxu0 0.0
    %4084 = vmatpush1.msra.mxu0 0.0
    %4085 = vmatprep.subr.mxu0 0.0
    %4086 = vmatpush1.msra.mxu0 0.0
    %4087 = vmatprep.subr.mxu0 0.0
    %4088 = vmatpush1.msra.mxu0 0.0
    %4089 = vmatprep.subr.mxu0 0.0
    %4090 = vmatpush1.msra.mxu0 0.0
    %4091 = vmatprep.subr.mxu0 0.0
    %4092 = vmatpush1.msra.mxu0 0.0
    %4093 = vmatprep.subr.mxu0 0.0
    %4094 = vmatpush1.msra.mxu0 0.0
    %4095 = vmatprep.subr.mxu0 0.0
    %4096 = vmatpush1.msra.mxu0 0.0
    %4097 = vmatprep.subr.mxu0 0.0
    %4098 = vmatpush1.msra.mxu0 0.0
    %4099 = vmatprep.subr.mxu0 0.0
    %4100 = vmatpush1.msra.mxu0 0.0
    %4101 = vmatprep.subr.mxu0 0.0
    %4102 = vmatpush1.msra.mxu0 0.0
    %4103 = vmatprep.subr.mxu0 0.0
    %4104 = vmatpush1.msra.mxu0 0.0
    %4105 = vmatprep.subr.mxu0 0.0
    %4106 = vmatpush1.msra.mxu0 0.0
    %4107 = vmatprep.subr.mxu0 0.0
    %4108 = vmatpush1.msra.mxu0 0.0
    %4109 = vmatprep.subr.mxu0 0.0
    %4110 = vmatpush1.msra.mxu0 0.0
    %4111 = vmatprep.subr.mxu0 0.0
    %4112 = vmatpush1.msra.mxu0 0.0
    %4113 = vmatprep.subr.mxu0 0.0
    %4114 = vmatpush1.msra.mxu0 0.0
    %4115 = vmatprep.subr.mxu0 0.0
    %4116 = vmatpush1.msra.mxu0 0.0
    %4117 = vmatprep.subr.mxu0 0.0
    %4118 = vmatpush1.msra.mxu0 0.0
    %4119 = vmatprep.subr.mxu0 0.0
    %4120 = vmatpush1.msra.mxu0 0.0
    %4121 = vmatprep.subr.mxu0 0.0
    %4122 = vmatpush1.msra.mxu0 0.0
    %4123 = vmatprep.subr.mxu0 0.0
    %4124 = vmatpush1.msra.mxu0 0.0
    %4125 = vmatprep.subr.mxu0 0.0
    %4126 = vmatpush1.msra.mxu0 0.0
    %4127 = vmatprep.subr.mxu0 0.0
    %4128 = vmatpush1.msra.mxu0 0.0
    %4129 = vmatprep.subr.mxu0 0.0
    %4130 = vmatpush1.msra.mxu0 0.0
    %4131 = vmatprep.subr.mxu0 0.0
    %4132 = vmatpush1.msra.mxu0 0.0
    %4133 = vmatprep.mubr.f32.mxu0 0.0
    %4134 = vmatmul.mubr.f32.gmra.mrb[0].mxu0 %v4046
    %v4135 = vpop.f32.mrb[0].mxu0
    %v4136 = vadd.f32 0.0, %v4135
    %v4137 = vpop.f32.mrb[0].mxu0
    %4138 = vmatprep.mubr.f32.mxu0 0.0
    %4139 = vmatmul.mubr.f32.gmra.mrb[0].mxu0 %v4049
    %v4140 = vpop.f32.mrb[0].mxu0
    %v4141 = vadd.f32 0.0, %v4140
    %v4142 = vpop.f32.mrb[0].mxu0
    %4143 = vmatprep.mubr.f32.mxu0 0.0
    %4144 = vmatmul.mubr.f32.gmra.mrb[0].mxu0 %v4052
    %v4145 = vpop.f32.mrb[0].mxu0
    %v4146 = vadd.f32 0.0, %v4145
    %v4147 = vpop.f32.mrb[0].mxu0
    %4148 = vmatprep.mubr.f32.mxu0 0.0
    %4149 = vmatmul.mubr.f32.gmra.mrb[0].mxu0 %v4055
    %v4150 = vpop.f32.mrb[0].mxu0
    %v4151 = vadd.f32 0.0, %v4150
    %v4152 = vpop.f32.mrb[0].mxu0
    %4153 = vmatprep.mubr.f32.mxu0 0.0
    %4154 = vmatmul.mubr.f32.gmra.mrb[0].mxu0 %v4058
    %v4155 = vpop.f32.mrb[0].mxu0
    %v4156 = vadd.f32 0.0, %v4155
    %v4157 = vpop.f32.mrb[0].mxu0
    %4158 = vmatprep.mubr.f32.mxu0 0.0
    %4159 = vmatmul.mubr.f32.gmra.mrb[0].mxu0 %v4061
    %v4160 = vpop.f32.mrb[0].mxu0
    %v4161 = vadd.f32 0.0, %v4160
    %v4162 = vpop.f32.mrb[0].mxu0
    %4163 = vmatprep.mubr.f32.mxu0 0.0
    %4164 = vmatmul.mubr.f32.gmra.mrb[0].mxu0 %v4064
    %v4165 = vpop.f32.mrb[0].mxu0
    %v4166 = vadd.f32 0.0, %v4165
    %v4167 = vpop.f32.mrb[0].mxu0
    %4168 = vmatprep.mubr.f32.mxu0 0.0
    %4169 = vmatmul.mubr.f32.gmra.mrb[0].mxu0 %v4067
    %v4170 = vpop.f32.mrb[0].mxu0
    %v4171 = vadd.f32 0.0, %v4170
    %v4172 = vpop.f32.mrb[0].mxu0
    %4173 = vdwg.mxu0
    %v4174 = vmul.f32 %v4136, %v25
    %v4175 = vmul.f32 %v4141, %v26
    %v4176 = vmul.f32 %v4146, %v27
    %v4177 = vmul.f32 %v4151, %v28
    %v4178 = vmul.f32 %v4156, %v29
    %v4179 = vmul.f32 %v4161, %v30
    %v4180 = vmul.f32 %v4166, %v31
    %v4181 = vmul.f32 %v4171, %v32
    %v4182 = vadd.f32 %v4174, %v4176
    %v4183 = vadd.f32 %v4175, %v4177
    %v4184 = vadd.f32 %v4182, %v4178
    %v4185 = vadd.f32 %v4183, %v4179
    %v4186 = vadd.f32 %v4184, %v4180
    %v4187 = vadd.f32 %v4185, %v4181
    %v4188 = vlaneseq
    %v4189 = vshrl.u32 %v4188, 7
    %v4190 = vsub.s32 0, %v4189
    %v4191 = vrot.slane %v3660, %v4190
    %v4193 = vsel %vm45, %v4186, 0
    %v4196 = vsel %vm45, %v4187, 0
    %4198 = vmatprep.subr.mxu0 0.0
    %4199 = vmatpush1.msra.mxu0 %v3656
    %4200 = vmatprep.subr.mxu0 0.0
    %4201 = vmatpush1.msra.mxu0 %v3657
    %4202 = vmatprep.subr.mxu0 0.0
    %4203 = vmatpush1.msra.mxu0 %v3658
    %4204 = vmatprep.subr.mxu0 0.0
    %4205 = vmatpush1.msra.mxu0 %v3659
    %4206 = vmatprep.subr.mxu0 0.0
    %4207 = vmatpush1.msra.mxu0 0.0
    %4208 = vmatprep.subr.mxu0 0.0
    %4209 = vmatpush1.msra.mxu0 0.0
    %4210 = vmatprep.subr.mxu0 0.0
    %4211 = vmatpush1.msra.mxu0 0.0
    %4212 = vmatprep.subr.mxu0 0.0
    %4213 = vmatpush1.msra.mxu0 0.0
    %4214 = vmatprep.subr.mxu0 0.0
    %4215 = vmatpush1.msra.mxu0 0.0
    %4216 = vmatprep.subr.mxu0 0.0
    %4217 = vmatpush1.msra.mxu0 0.0
    %4218 = vmatprep.subr.mxu0 0.0
    %4219 = vmatpush1.msra.mxu0 0.0
    %4220 = vmatprep.subr.mxu0 0.0
    %4221 = vmatpush1.msra.mxu0 0.0
    %4222 = vmatprep.subr.mxu0 0.0
    %4223 = vmatpush1.msra.mxu0 0.0
    %4224 = vmatprep.subr.mxu0 0.0
    %4225 = vmatpush1.msra.mxu0 0.0
    %4226 = vmatprep.subr.mxu0 0.0
    %4227 = vmatpush1.msra.mxu0 0.0
    %4228 = vmatprep.subr.mxu0 0.0
    %4229 = vmatpush1.msra.mxu0 0.0
    %4230 = vmatprep.subr.mxu0 0.0
    %4231 = vmatpush1.msra.mxu0 0.0
    %4232 = vmatprep.subr.mxu0 0.0
    %4233 = vmatpush1.msra.mxu0 0.0
    %4234 = vmatprep.subr.mxu0 0.0
    %4235 = vmatpush1.msra.mxu0 0.0
    %4236 = vmatprep.subr.mxu0 0.0
    %4237 = vmatpush1.msra.mxu0 0.0
    %4238 = vmatprep.subr.mxu0 0.0
    %4239 = vmatpush1.msra.mxu0 0.0
    %4240 = vmatprep.subr.mxu0 0.0
    %4241 = vmatpush1.msra.mxu0 0.0
    %4242 = vmatprep.subr.mxu0 0.0
    %4243 = vmatpush1.msra.mxu0 0.0
    %4244 = vmatprep.subr.mxu0 0.0
    %4245 = vmatpush1.msra.mxu0 0.0
    %4246 = vmatprep.subr.mxu0 0.0
    %4247 = vmatpush1.msra.mxu0 0.0
    %4248 = vmatprep.subr.mxu0 0.0
    %4249 = vmatpush1.msra.mxu0 0.0
    %4250 = vmatprep.subr.mxu0 0.0
    %4251 = vmatpush1.msra.mxu0 0.0
    %4252 = vmatprep.subr.mxu0 0.0
    %4253 = vmatpush1.msra.mxu0 0.0
    %4254 = vmatprep.subr.mxu0 0.0
    %4255 = vmatpush1.msra.mxu0 0.0
    %4256 = vmatprep.subr.mxu0 0.0
    %4257 = vmatpush1.msra.mxu0 0.0
    %4258 = vmatprep.subr.mxu0 0.0
    %4259 = vmatpush1.msra.mxu0 0.0
    %4260 = vmatprep.subr.mxu0 0.0
    %4261 = vmatpush1.msra.mxu0 0.0
    %4262 = vmatprep.mubr.f32.mxu0 0.0
    %4263 = vmatmul.mubr.f32.gmra.mrb[0].mxu0 %v4193
    %v4264 = vpop.f32.mrb[0].mxu0
    %v4265 = vadd.f32 %v4191, %v4264
    %v4266 = vpop.f32.mrb[0].mxu0
    %4267 = vmatprep.mubr.f32.mxu0 0.0
    %4268 = vmatmul.mubr.f32.gmra.mrb[0].mxu0 %v4196
    %v4269 = vpop.f32.mrb[0].mxu0
    %v4270 = vadd.f32 %v4191, %v4269
    %v4271 = vpop.f32.mrb[0].mxu0
    %4272 = vdwg.mxu0
    %v4273 = vadd.f32 %v3647, %v4265
    %v4274 = vadd.f32 %v3648, %v4270
    %v4275 = vld [vmem:[%s4 + $0x20] sm:$0x1]
    %v4276 = vld [vmem:[%s4 + $0x23] sm:$0x1]
    %v4277 = vld [vmem:[%s3 + $0x1c0] sm:$0xff]
    %v4278 = vld [vmem:[%s3 + $0x1c8] sm:$0xff]
    %v4279 = vld [vmem:[%s3 + $0x1d0] sm:$0xff]
    %v4280 = vld [vmem:[%s3 + $0x1d8] sm:$0xff]
    %v4281 = vld [vmem:[%s4 + $0x1a] sm:$0x1]
    %v4282 = vld [vmem:[%s3 + $0x260] sm:$0xff]
    %v4283 = vld [vmem:[%s3 + $0x268] sm:$0xff]
    %v4284 = vld [vmem:[%s3 + $0x270] sm:$0xff]
    %v4285 = vld [vmem:[%s3 + $0x278] sm:$0xff]
    %v4286 = vld [vmem:[%s3 + $0x280] sm:$0xff]
    %v4287 = vld [vmem:[%s3 + $0x288] sm:$0xff]
    %v4288 = vld [vmem:[%s3 + $0x290] sm:$0xff]
    %v4289 = vld [vmem:[%s3 + $0x298] sm:$0xff]
    %v4290 = vld [vmem:[%s4 + $0x1d] sm:$0x1]
    %v4291 = vsel %vm45, %v4273, 0.0
    %4292 = vadd.xlane.f32.xlu0 %v4291
    %v4293 = vpop.xlane.xlu0 %4292
    %v4294 = vsel %vm45, %v4274, 0.0
    %4295 = vadd.xlane.f32.xlu0 %v4294
    %v4296 = vpop.xlane.xlu0 %4295
    %v4297 = vmul.f32 %v4293, %v52
    %v4298 = vmul.f32 %v4296, %v52
    %v4299 = vsub.f32 %v4273, %v4297
    %v4300 = vsub.f32 %v4274, %v4298
    %v4301 = vmul.f32 %v4299, %v4299
    %v4302 = vmul.f32 %v4300, %v4300
    %v4303 = vsel %vm45, %v4301, 0.0
    %4304 = vadd.xlane.f32.xlu0 %v4303
    %v4305 = vpop.xlane.xlu0 %4304
    %v4306 = vsel %vm45, %v4302, 0.0
    %4307 = vadd.xlane.f32.xlu0 %v4306
    %v4308 = vpop.xlane.xlu0 %4307
    %v4309 = vmul.f32 %v4305, %v52
    %v4310 = vmul.f32 %v4308, %v52
    %v4311 = vadd.f32 %v4309, 1e-05
    %v4312 = vadd.f32 %v4310, 1e-05
    %v4313 = vrsqrt.pop %v4311
    %v4314 = vrsqrt.pop %v4312
    %v4315 = vmul.f32 %v4299, %v4313
    %v4316 = vmul.f32 %v4300, %v4314
    %v4317 = vlaneseq
    %v4318 = vshrl.u32 %v4317, 7
    %v4319 = vsub.s32 0, %v4318
    %v4320 = vrot.slane %v4275, %v4319
    %v4321 = vmul.f32 %v4315, %v4320
    %v4322 = vmul.f32 %v4316, %v4320
    %v4323 = vlaneseq
    %v4324 = vshrl.u32 %v4323, 7
    %v4325 = vsub.s32 0, %v4324
    %v4326 = vrot.slane %v4276, %v4325
    %v4327 = vadd.f32 %v4321, %v4326
    %v4328 = vadd.f32 %v4322, %v4326
    %v4329 = vlaneseq
    %v4330 = vshrl.u32 %v4329, 7
    %v4331 = vsub.s32 0, %v4330
    %v4332 = vrot.slane %v4281, %v4331
    %v4334 = vsel %vm45, %v4327, 0
    %v4337 = vsel %vm45, %v4328, 0
    %4339 = vmatprep.subr.mxu0 0.0
    %4340 = vmatpush1.msra.mxu0 %v4277
    %4341 = vmatprep.subr.mxu0 0.0
    %4342 = vmatpush1.msra.mxu0 %v4278
    %4343 = vmatprep.subr.mxu0 0.0
    %4344 = vmatpush1.msra.mxu0 %v4279
    %4345 = vmatprep.subr.mxu0 0.0
    %4346 = vmatpush1.msra.mxu0 %v4280
    %4347 = vmatprep.subr.mxu0 0.0
    %4348 = vmatpush1.msra.mxu0 0.0
    %4349 = vmatprep.subr.mxu0 0.0
    %4350 = vmatpush1.msra.mxu0 0.0
    %4351 = vmatprep.subr.mxu0 0.0
    %4352 = vmatpush1.msra.mxu0 0.0
    %4353 = vmatprep.subr.mxu0 0.0
    %4354 = vmatpush1.msra.mxu0 0.0
    %4355 = vmatprep.subr.mxu0 0.0
    %4356 = vmatpush1.msra.mxu0 0.0
    %4357 = vmatprep.subr.mxu0 0.0
    %4358 = vmatpush1.msra.mxu0 0.0
    %4359 = vmatprep.subr.mxu0 0.0
    %4360 = vmatpush1.msra.mxu0 0.0
    %4361 = vmatprep.subr.mxu0 0.0
    %4362 = vmatpush1.msra.mxu0 0.0
    %4363 = vmatprep.subr.mxu0 0.0
    %4364 = vmatpush1.msra.mxu0 0.0
    %4365 = vmatprep.subr.mxu0 0.0
    %4366 = vmatpush1.msra.mxu0 0.0
    %4367 = vmatprep.subr.mxu0 0.0
    %4368 = vmatpush1.msra.mxu0 0.0
    %4369 = vmatprep.subr.mxu0 0.0
    %4370 = vmatpush1.msra.mxu0 0.0
    %4371 = vmatprep.subr.mxu0 0.0
    %4372 = vmatpush1.msra.mxu0 0.0
    %4373 = vmatprep.subr.mxu0 0.0
    %4374 = vmatpush1.msra.mxu0 0.0
    %4375 = vmatprep.subr.mxu0 0.0
    %4376 = vmatpush1.msra.mxu0 0.0
    %4377 = vmatprep.subr.mxu0 0.0
    %4378 = vmatpush1.msra.mxu0 0.0
    %4379 = vmatprep.subr.mxu0 0.0
    %4380 = vmatpush1.msra.mxu0 0.0
    %4381 = vmatprep.subr.mxu0 0.0
    %4382 = vmatpush1.msra.mxu0 0.0
    %4383 = vmatprep.subr.mxu0 0.0
    %4384 = vmatpush1.msra.mxu0 0.0
    %4385 = vmatprep.subr.mxu0 0.0
    %4386 = vmatpush1.msra.mxu0 0.0
    %4387 = vmatprep.subr.mxu0 0.0
    %4388 = vmatpush1.msra.mxu0 0.0
    %4389 = vmatprep.subr.mxu0 0.0
    %4390 = vmatpush1.msra.mxu0 0.0
    %4391 = vmatprep.subr.mxu0 0.0
    %4392 = vmatpush1.msra.mxu0 0.0
    %4393 = vmatprep.subr.mxu0 0.0
    %4394 = vmatpush1.msra.mxu0 0.0
    %4395 = vmatprep.subr.mxu0 0.0
    %4396 = vmatpush1.msra.mxu0 0.0
    %4397 = vmatprep.subr.mxu0 0.0
    %4398 = vmatpush1.msra.mxu0 0.0
    %4399 = vmatprep.subr.mxu0 0.0
    %4400 = vmatpush1.msra.mxu0 0.0
    %4401 = vmatprep.subr.mxu0 0.0
    %4402 = vmatpush1.msra.mxu0 0.0
    %4403 = vmatprep.mubr.f32.mxu0 0.0
    %4404 = vmatmul.mubr.f32.gmra.mrb[0].mxu0 %v4334
    %v4405 = vpop.f32.mrb[0].mxu0
    %v4406 = vadd.f32 %v4332, %v4405
    %v4407 = vpop.f32.mrb[0].mxu0
    %4408 = vmatprep.mubr.f32.mxu0 0.0
    %4409 = vmatmul.mubr.f32.gmra.mrb[0].mxu0 %v4337
    %v4410 = vpop.f32.mrb[0].mxu0
    %v4411 = vadd.f32 %v4332, %v4410
    %v4412 = vpop.f32.mrb[0].mxu0
    %4413 = vdwg.mxu0
    %v4414 = vmax.f32 %v4406, 0.0
    %v4415 = vmax.f32 %v4411, 0.0
    %v4417 = vsel %vm1491, %v4414, 0
    %v4420 = vsel %vm1491, %v4415, 0
    %4422 = vmatprep.subr.mxu0 0.0
    %4423 = vmatpush1.msra.mxu0 %v4282
    %4424 = vmatprep.subr.mxu0 0.0
    %4425 = vmatpush1.msra.mxu0 %v4283
    %4426 = vmatprep.subr.mxu0 0.0
    %4427 = vmatpush1.msra.mxu0 %v4284
    %4428 = vmatprep.subr.mxu0 0.0
    %4429 = vmatpush1.msra.mxu0 %v4285
    %4430 = vmatprep.subr.mxu0 0.0
    %4431 = vmatpush1.msra.mxu0 %v4286
    %4432 = vmatprep.subr.mxu0 0.0
    %4433 = vmatpush1.msra.mxu0 %v4287
    %4434 = vmatprep.subr.mxu0 0.0
    %4435 = vmatpush1.msra.mxu0 %v4288
    %4436 = vmatprep.subr.mxu0 0.0
    %4437 = vmatpush1.msra.mxu0 %v4289
    %4438 = vmatprep.subr.mxu0 0.0
    %4439 = vmatpush1.msra.mxu0 0.0
    %4440 = vmatprep.subr.mxu0 0.0
    %4441 = vmatpush1.msra.mxu0 0.0
    %4442 = vmatprep.subr.mxu0 0.0
    %4443 = vmatpush1.msra.mxu0 0.0
    %4444 = vmatprep.subr.mxu0 0.0
    %4445 = vmatpush1.msra.mxu0 0.0
    %4446 = vmatprep.subr.mxu0 0.0
    %4447 = vmatpush1.msra.mxu0 0.0
    %4448 = vmatprep.subr.mxu0 0.0
    %4449 = vmatpush1.msra.mxu0 0.0
    %4450 = vmatprep.subr.mxu0 0.0
    %4451 = vmatpush1.msra.mxu0 0.0
    %4452 = vmatprep.subr.mxu0 0.0
    %4453 = vmatpush1.msra.mxu0 0.0
    %4454 = vmatprep.subr.mxu0 0.0
    %4455 = vmatpush1.msra.mxu0 0.0
    %4456 = vmatprep.subr.mxu0 0.0
    %4457 = vmatpush1.msra.mxu0 0.0
    %4458 = vmatprep.subr.mxu0 0.0
    %4459 = vmatpush1.msra.mxu0 0.0
    %4460 = vmatprep.subr.mxu0 0.0
    %4461 = vmatpush1.msra.mxu0 0.0
    %4462 = vmatprep.subr.mxu0 0.0
    %4463 = vmatpush1.msra.mxu0 0.0
    %4464 = vmatprep.subr.mxu0 0.0
    %4465 = vmatpush1.msra.mxu0 0.0
    %4466 = vmatprep.subr.mxu0 0.0
    %4467 = vmatpush1.msra.mxu0 0.0
    %4468 = vmatprep.subr.mxu0 0.0
    %4469 = vmatpush1.msra.mxu0 0.0
    %4470 = vmatprep.subr.mxu0 0.0
    %4471 = vmatpush1.msra.mxu0 0.0
    %4472 = vmatprep.subr.mxu0 0.0
    %4473 = vmatpush1.msra.mxu0 0.0
    %4474 = vmatprep.subr.mxu0 0.0
    %4475 = vmatpush1.msra.mxu0 0.0
    %4476 = vmatprep.subr.mxu0 0.0
    %4477 = vmatpush1.msra.mxu0 0.0
    %4478 = vmatprep.subr.mxu0 0.0
    %4479 = vmatpush1.msra.mxu0 0.0
    %4480 = vmatprep.subr.mxu0 0.0
    %4481 = vmatpush1.msra.mxu0 0.0
    %4482 = vmatprep.subr.mxu0 0.0
    %4483 = vmatpush1.msra.mxu0 0.0
    %4484 = vmatprep.subr.mxu0 0.0
    %4485 = vmatpush1.msra.mxu0 0.0
    %4486 = vmatprep.mubr.f32.mxu0 0.0
    %4487 = vmatmul.mubr.f32.gmra.mrb[0].mxu0 %v4417
    %v4488 = vpop.f32.mrb[0].mxu0
    %v4489 = vadd.f32 0.0, %v4488
    %v4490 = vpop.f32.mrb[0].mxu0
    %4491 = vmatprep.mubr.f32.mxu0 0.0
    %4492 = vmatmul.mubr.f32.gmra.mrb[0].mxu0 %v4420
    %v4493 = vpop.f32.mrb[0].mxu0
    %v4494 = vadd.f32 0.0, %v4493
    %v4495 = vpop.f32.mrb[0].mxu0
    %4496 = vdwg.mxu0
    %v4497 = vadd.f32 %v4273, %v4489
    %v4498 = vadd.f32 %v4274, %v4494
    %v4499 = vlaneseq
    %v4500 = vshrl.u32 %v4499, 7
    %v4501 = vsub.s32 0, %v4500
    %v4502 = vrot.slane %v4290, %v4501
    %v4503 = vadd.f32 %v4497, %v4502
    %v4504 = vadd.f32 %v4498, %v4502
    %4505 = vst.msk [vmem:[#allocation2] sm:$0xff] %vm45, %v4503
    %4506 = vst.msk [vmem:[#allocation2 + $0x8] sm:$0xff] %vm45, %v4504
    // Predicated region
    $region22: #{tpu_custom_call.1} parent=1 // pred_check
      _
    $region23: #{tpu_custom_call.1} parent=1 // pred_check_branch
      %4508 = sbr.rel (0) target = $region25
    $region24: #{tpu_custom_call.1} parent=1 // pred_region
      %s4510 = ssub.s32 256, 256
      %4511 = vsyncadd [#allocation3], %s4510
      %s4512 = sshll.u32 [#allocation2], 4
      %s4513 = int_to_ptr.vmem [resolvable:$true] %s4512
      %4518 = dma.vmem_to_hbm [thread:$0]  %s4513, 256, %s5, [#allocation3], 128, 128, 8
    $region25: #{tpu_custom_call.1} parent=1 // pred_fallthru
      _
    // Predicated region
    $region26: #{tpu_custom_call.1} parent=1 // pred_check
      _
    $region27: #{tpu_custom_call.1} parent=1 // pred_check_branch
      %4520 = sbr.rel (0) target = $region29
    $region28: #{tpu_custom_call.1} parent=1 // pred_region
      %4521 = dma.done [#allocation3], 256
    $region29: #{tpu_custom_call.1} parent=1 // pred_fallthru
      _
    %4522 = vsyncpa [#allocation3], 1

</llo_original>
